<compile_context>
chip_gen: v7x
topology: tpu7x:2x2x1
jax: 0.10.0
libtpu: 0.0.40
codegen_flags: <defaults>
</compile_context>

<pallas_src>
import functools
import math

import jax
import jax.numpy as jnp
from jax.experimental import pallas as pl
from jax.experimental.pallas import tpu as pltpu


# ----------------------------------------------------------------------------
# Generation-aware sizing
# ----------------------------------------------------------------------------

def _vmem_capacity_bytes():
    try:
        return int(getattr(pltpu.get_tpu_info(), "vmem_capacity_bytes"))
    except Exception:
        return 64 * 1024 * 1024          # conservative (v7x per-TC)


_VMEM_CAP = _vmem_capacity_bytes()
_VMEM_LIMIT = min((_VMEM_CAP * 3) // 4, 96 * 1024 * 1024)
if _VMEM_CAP >= 100 * 1024 * 1024:       # v5e / v6e: 128 MiB physical VMEM
    _TM, _TN, _TK = 512, 1024, 1024
else:                                    # v7x: 64 MiB -> keep block footprint small
    _TM, _TN, _TK = 256, 512, 512


def _round_up(x, m):
    return ((x + m - 1) // m) * m


def _tile_and_pad(dim, target, align):
    """Tile size (multiple of `align`, <= max(target, align)) + padded extent.

    Never falls back to the full (possibly huge) dimension -> no VMEM blowups
    for non-divisible sizes; the wrapper zero-pads and slices the result.
    """
    tile = min(max(target, align), _round_up(dim, align))
    tile = max(align, (tile // align) * align)
    return tile, _round_up(dim, tile)


def _divisor_tile(dim, target, align):
    """Largest multiple of `align` dividing `dim` and <= target, else full dim."""
    if dim <= target or dim % align != 0:
        return dim
    t = (min(target, dim) // align) * align
    while t >= align:
        if dim % t == 0:
            return t
        t -= align
    return dim


# ----------------------------------------------------------------------------
# Pallas kernels
# ----------------------------------------------------------------------------

def _linear_kernel(x_ref, w_ref, o_ref, acc_ref, *, relu):
    # x: (tm, tk) bf16, w: (tk, tn) bf16; K-tiled f32 accumulation; bf16/f32 out.
    @pl.when(pl.program_id(2) == 0)
    def _():
        acc_ref[...] = jnp.zeros_like(acc_ref)

    acc_ref[...] += jnp.dot(x_ref[...], w_ref[...],
                            preferred_element_type=jnp.float32)

    @pl.when(pl.program_id(2) == pl.num_programs(2) - 1)
    def _():
        acc = acc_ref[...]
        if relu:
            acc = jnp.maximum(acc, 0.0)
        o_ref[...] = acc.astype(o_ref.dtype)


def _linear_add_ln_kernel(x_ref, w_ref, res_ref, g_ref, o_ref, acc_ref, *, eps):
    # Fused: (x @ w) + residual, then LayerNorm(scale-only).  Output dim is the
    # full d_model (LN needs whole rows); K is the tiled reduction axis.
    @pl.when(pl.program_id(1) == 0)
    def _():
        acc_ref[...] = jnp.zeros_like(acc_ref)

    acc_ref[...] += jnp.dot(x_ref[...], w_ref[...],
                            preferred_element_type=jnp.float32)

    @pl.when(pl.program_id(1) == pl.num_programs(1) - 1)
    def _():
        y = acc_ref[...] + res_ref[...].astype(jnp.float32)
        mean = jnp.mean(y, axis=-1, keepdims=True)
        yc = y - mean
        var = jnp.mean(yc * yc, axis=-1, keepdims=True)
        o_ref[...] = (yc * jax.lax.rsqrt(var + eps) * g_ref[...]).astype(o_ref.dtype)


def _mlp_add_ln_kernel(x_ref, w1_ref, w2_ref, res_ref, g_ref, o_ref, acc_ref, *, eps):
    # Fused: relu(x @ w1) @ w2 (hidden dim tiled as reduction) + residual + LN.
    @pl.when(pl.program_id(1) == 0)
    def _():
        acc_ref[...] = jnp.zeros_like(acc_ref)

    h = jnp.dot(x_ref[...], w1_ref[...], preferred_element_type=jnp.float32)
    h = jnp.maximum(h, 0.0).astype(jnp.bfloat16)
    acc_ref[...] += jnp.dot(h, w2_ref[...], preferred_element_type=jnp.float32)

    @pl.when(pl.program_id(1) == pl.num_programs(1) - 1)
    def _():
        y = acc_ref[...] + res_ref[...].astype(jnp.float32)
        mean = jnp.mean(y, axis=-1, keepdims=True)
        yc = y - mean
        var = jnp.mean(yc * yc, axis=-1, keepdims=True)
        o_ref[...] = (yc * jax.lax.rsqrt(var + eps) * g_ref[...]).astype(o_ref.dtype)


def _mha_kernel(q_ref, k_ref, v_ref, o_ref, *, num_heads, dk, causal, scale):
    # q: (1, tq, d_model) bf16 query tile; k/v: (1, Tk, d_model) bf16 full KV.
    # Softmax in f32; scale folded into Q; per-head outputs written straight
    # into lane slices of the lane-dense (tq, d_model) output block.
    d_model = num_heads * dk
    q_all = q_ref[0]
    k_all = k_ref[0]
    v_all = v_ref[0]
    tq, tkv = q_all.shape[0], k_all.shape[0]
    if causal:
        q0 = pl.program_id(1) * tq
        row = q0 + jax.lax.broadcasted_iota(jnp.int32, (tq, tkv), 0)
        col = jax.lax.broadcasted_iota(jnp.int32, (tq, tkv), 1)
        keep = col <= row
    # NOTE: QK^T contracts only dk lanes (MXU K under-filled at dk << 256);
    # the P@V matmul below contracts over the full KV length and carries flops.
    for h in range(num_heads):
        lo, hi = h * dk, (h + 1) * dk
        q = (q_all[:, lo:hi].astype(jnp.float32) * scale).astype(jnp.bfloat16)
        k = k_all[:, lo:hi]
        v = v_all[:, lo:hi]
        # NT matmul: contract last dims, no explicit transpose of K.
        s = jax.lax.dot_general(q, k, (((1,), (1,)), ((), ())),
                                preferred_element_type=jnp.float32)
        if causal:
            s = jnp.where(keep, s, -1e30)       # finite mask value (NaN-safe)
        m = jnp.max(s, axis=-1, keepdims=True)
        p = jnp.exp(s - m)
        denom = jnp.sum(p, axis=-1, keepdims=True)
        p = p * pl.reciprocal(denom, approx=True)   # EUP slot, nearly free
        o = jnp.dot(p.astype(jnp.bfloat16), v, preferred_element_type=jnp.float32)
        o_ref[0, :, lo:hi] = o.astype(o_ref.dtype)


# ----------------------------------------------------------------------------
# Pallas wrappers
# ----------------------------------------------------------------------------

def linear(x, w, relu=False, out_dtype=jnp.bfloat16):
    """y = x @ w (nn.Linear, bias=False); w stored (Din, Dout) bf16."""
    lead = x.shape[:-1]
    din, dout = w.shape
    x2 = x.reshape(-1, din).astype(jnp.bfloat16)
    m = x2.shape[0]
    tm, mp = _tile_and_pad(m, _TM, 16)        # 16: bf16 sublane packing
    tn, npd = _tile_and_pad(dout, _TN, 128)
    tk, kp = _tile_and_pad(din, _TK, 128)
    if mp != m or kp != din:
        x2 = jnp.pad(x2, ((0, mp - m), (0, kp - din)))
    wp = jnp.pad(w, ((0, kp - din), (0, npd - dout))) if (kp != din or npd != dout) else w
    grid = (mp // tm, npd // tn, kp // tk)
    out = pl.pallas_call(
        functools.partial(_linear_kernel, relu=relu),
        out_shape=jax.ShapeDtypeStruct((mp, npd), out_dtype),
        grid=grid,
        in_specs=[
            pl.BlockSpec((tm, tk), lambda i, j, k: (i, k)),
            pl.BlockSpec((tk, tn), lambda i, j, k: (k, j)),
        ],
        out_specs=pl.BlockSpec((tm, tn), lambda i, j, k: (i, j)),
        scratch_shapes=[pltpu.VMEM((tm, tn), jnp.float32)],
        compiler_params=pltpu.CompilerParams(
            dimension_semantics=("parallel", "parallel", "arbitrary"),
            vmem_limit_bytes=_VMEM_LIMIT),
        cost_estimate=pl.CostEstimate(
            flops=2 * mp * npd * kp,
            transcendentals=0,
            bytes_accessed=2 * (mp * kp + kp * npd + mp * npd)),
    )(x2, wp)
    if mp != m or npd != dout:
        out = out[:m, :dout]
    return out.reshape(*lead, dout)


def linear_add_layernorm(x, w, residual, gamma, eps=1e-5):
    """LayerNorm((x @ w) + residual) with scale-only LN, fused in one kernel."""
    lead = x.shape[:-1]
    din, dout = w.shape
    assert dout % 128 == 0, "LayerNorm-fused linear requires d_model % 128 == 0"
    x2 = x.reshape(-1, din).astype(jnp.bfloat16)
    r2 = residual.reshape(-1, dout).astype(jnp.bfloat16)
    m = x2.shape[0]
    tm, mp = _tile_and_pad(m, _TM, 16)
    tk, kp = _tile_and_pad(din, _TK, 128)
    if mp != m or kp != din:
        x2 = jnp.pad(x2, ((0, mp - m), (0, kp - din)))
    if mp != m:
        r2 = jnp.pad(r2, ((0, mp - m), (0, 0)))
    wp = jnp.pad(w, ((0, kp - din), (0, 0))) if kp != din else w
    g2 = gamma.reshape(1, dout).astype(jnp.float32)
    grid = (mp // tm, kp // tk)
    out = pl.pallas_call(
        functools.partial(_linear_add_ln_kernel, eps=eps),
        out_shape=jax.ShapeDtypeStruct((mp, dout), jnp.bfloat16),
        grid=grid,
        in_specs=[
            pl.BlockSpec((tm, tk), lambda i, k: (i, k)),
            pl.BlockSpec((tk, dout), lambda i, k: (k, 0)),
            pl.BlockSpec((tm, dout), lambda i, k: (i, 0)),
            pl.BlockSpec((1, dout), lambda i, k: (0, 0)),
        ],
        out_specs=pl.BlockSpec((tm, dout), lambda i, k: (i, 0)),
        scratch_shapes=[pltpu.VMEM((tm, dout), jnp.float32)],
        compiler_params=pltpu.CompilerParams(
            dimension_semantics=("parallel", "arbitrary"),
            vmem_limit_bytes=_VMEM_LIMIT),
    )(x2, wp, r2, g2)
    if mp != m:
        out = out[:m]
    return out.reshape(*lead, dout)


def mlp_add_layernorm(x, w1, w2, residual, gamma, eps=1e-5):
    """LayerNorm(relu(x @ w1) @ w2 + residual), fully fused (hidden dim tiled)."""
    lead = x.shape[:-1]
    d = x.shape[-1]
    hidden = w1.shape[1]
    assert d % 128 == 0, "LayerNorm-fused MLP requires d_model % 128 == 0"
    x2 = x.reshape(-1, d).astype(jnp.bfloat16)
    r2 = residual.reshape(-1, d).astype(jnp.bfloat16)
    m = x2.shape[0]
    tm, mp = _tile_and_pad(m, _TM, 16)
    th, hp = _tile_and_pad(hidden, _TK, 128)
    if mp != m:
        x2 = jnp.pad(x2, ((0, mp - m), (0, 0)))
        r2 = jnp.pad(r2, ((0, mp - m), (0, 0)))
    w1p = jnp.pad(w1, ((0, 0), (0, hp - hidden))) if hp != hidden else w1
    w2p = jnp.pad(w2, ((0, hp - hidden), (0, 0))) if hp != hidden else w2
    g2 = gamma.reshape(1, d).astype(jnp.float32)
    grid = (mp // tm, hp // th)
    out = pl.pallas_call(
        functools.partial(_mlp_add_ln_kernel, eps=eps),
        out_shape=jax.ShapeDtypeStruct((mp, d), jnp.bfloat16),
        grid=grid,
        in_specs=[
            pl.BlockSpec((tm, d), lambda i, j: (i, 0)),
            pl.BlockSpec((d, th), lambda i, j: (0, j)),
            pl.BlockSpec((th, d), lambda i, j: (j, 0)),
            pl.BlockSpec((tm, d), lambda i, j: (i, 0)),
            pl.BlockSpec((1, d), lambda i, j: (0, 0)),
        ],
        out_specs=pl.BlockSpec((tm, d), lambda i, j: (i, 0)),
        scratch_shapes=[pltpu.VMEM((tm, d), jnp.float32)],
        compiler_params=pltpu.CompilerParams(
            dimension_semantics=("parallel", "arbitrary"),
            vmem_limit_bytes=_VMEM_LIMIT),
        cost_estimate=pl.CostEstimate(
            flops=4 * mp * d * hp, transcendentals=0,
            bytes_accessed=2 * (2 * mp * d + 2 * d * hp + mp * d)),
    )(x2, w1p, w2p, r2, g2)
    if mp != m:
        out = out[:m]
    return out.reshape(*lead, d)


def self_attention(qkv, num_heads, causal):
    """qkv: (B, T, 3*d_model) packed projection (bf16) -> (B, T, d_model) bf16.

    Q/K/V are selected from the packed array purely via BlockSpec block indices
    (no HBM split); queries are tiled so v7x's 2 TCs get work even at small B.
    """
    B, T, d3 = qkv.shape
    d_model = d3 // 3
    dk = d_model // num_heads
    tq = _divisor_tile(T, 256, 8)
    grid = (B, T // tq)
    return pl.pallas_call(
        functools.partial(_mha_kernel, num_heads=num_heads, dk=dk,
                          causal=causal, scale=1.0 / math.sqrt(dk)),
        out_shape=jax.ShapeDtypeStruct((B, T, d_model), jnp.bfloat16),
        grid=grid,
        in_specs=[
            pl.BlockSpec((1, tq, d_model), lambda b, qi: (b, qi, 0)),  # Q tile
            pl.BlockSpec((1, T, d_model), lambda b, qi: (b, 0, 1)),    # K (resident)
            pl.BlockSpec((1, T, d_model), lambda b, qi: (b, 0, 2)),    # V (resident)
        ],
        out_specs=pl.BlockSpec((1, tq, d_model), lambda b, qi: (b, qi, 0)),
        compiler_params=pltpu.CompilerParams(
            dimension_semantics=("parallel", "parallel"),
            vmem_limit_bytes=_VMEM_LIMIT),
    )(qkv, qkv, qkv)


def cross_attention(q, kv, num_heads):
    """q: (B, Tq, d_model); kv: (B, Tk, 2*d_model) packed -> (B, Tq, d_model)."""
    B, Tq, d_model = q.shape
    _, Tk, _ = kv.shape
    dk = d_model // num_heads
    tq = _divisor_tile(Tq, 256, 8)
    grid = (B, Tq // tq)
    return pl.pallas_call(
        functools.partial(_mha_kernel, num_heads=num_heads, dk=dk,
                          causal=False, scale=1.0 / math.sqrt(dk)),
        out_shape=jax.ShapeDtypeStruct((B, Tq, d_model), jnp.bfloat16),
        grid=grid,
        in_specs=[
            pl.BlockSpec((1, tq, d_model), lambda b, qi: (b, qi, 0)),
            pl.BlockSpec((1, Tk, d_model), lambda b, qi: (b, 0, 0)),   # K
            pl.BlockSpec((1, Tk, d_model), lambda b, qi: (b, 0, 1)),   # V
        ],
        out_specs=pl.BlockSpec((1, tq, d_model), lambda b, qi: (b, qi, 0)),
        compiler_params=pltpu.CompilerParams(
            dimension_semantics=("parallel", "parallel"),
            vmem_limit_bytes=_VMEM_LIMIT),
    )(q, kv, kv)


# ----------------------------------------------------------------------------
# Model (matches the PyTorch module structure; bias=False, dropout=identity)
# ----------------------------------------------------------------------------

def encoder_block(x, p, num_heads):
    qkv = linear(x, p["qkv_w"])                               # (B, T, 3d) bf16
    attn = self_attention(qkv, num_heads, causal=False)
    x = linear_add_layernorm(attn, p["attn_out_w"], x, p["ln1_w"])
    x = mlp_add_layernorm(x, p["mlp_w1"], p["mlp_w2"], x, p["ln2_w"])
    return x


def decoder_block(x, enc, p, num_heads):
    qkv = linear(x, p["qkv_w"])
    a1 = self_attention(qkv, num_heads, causal=True)          # masked self-attn
    x = linear_add_layernorm(a1, p["attn1_out_w"], x, p["ln1_w"])
    q = linear(x, p["q_w"])
    kv = linear(enc, p["kv_w"])                                # (B, T, 2d)
    a2 = cross_attention(q, kv, num_heads)
    x = linear_add_layernorm(a2, p["attn2_out_w"], x, p["ln2_w"])
    x = mlp_add_layernorm(x, p["mlp_w1"], p["mlp_w2"], x, p["ln3_w"])
    return x


def sinusoidal_pos_encoding(max_len, d_model):
    pos = jnp.arange(max_len, dtype=jnp.float32)[:, None]
    i = jnp.arange(0, d_model, 2, dtype=jnp.float32)[None, :]
    angle = pos / jnp.power(10000.0, i / d_model)
    pe = jnp.zeros((max_len, d_model), jnp.float32)
    pe = pe.at[:, 0::2].set(jnp.sin(angle))
    pe = pe.at[:, 1::2].set(jnp.cos(angle))
    return pe


def input_embedding(ids, tok_emb, pos_enc, d_model):
    # Gather is glue (plain JAX); heavy math lives in the Pallas kernels above.
    T = ids.shape[1]
    x = tok_emb[ids] * math.sqrt(d_model) + pos_enc[None, :T, :]
    return x.astype(jnp.bfloat16)          # bf16 residual stream


def transformer_forward(params, src_ids, tgt_ids, num_heads, d_model):
    src = input_embedding(src_ids, params["tok_emb"], params["pos_enc"], d_model)
    tgt = input_embedding(tgt_ids, params["tok_emb"], params["pos_enc"], d_model)
    for p in params["encoders"]:
        src = encoder_block(src, p, num_heads)
    for p in params["decoders"]:
        tgt = decoder_block(tgt, src, p, num_heads)
    return linear(tgt, params["fc_w"], out_dtype=jnp.float32)   # f32 logits


# ----------------------------------------------------------------------------
# Deterministic parameter init (matmul weights bf16 for the MXU; LayerNorm
# weights, embeddings and positional encodings f32)
# ----------------------------------------------------------------------------

def init_params(key, vocab_size, d_model, block_size, num_encoders, num_decoders):
    def nxt():
        nonlocal key
        key, sub = jax.random.split(key)
        return sub

    def w(din, dout):
        return (jax.random.normal(nxt(), (din, dout), jnp.float32) * 0.02
                ).astype(jnp.bfloat16)

    params = {
        "tok_emb": jax.random.normal(nxt(), (vocab_size, d_model), jnp.float32) * 0.02,
        "pos_enc": sinusoidal_pos_encoding(block_size, d_model),
        "fc_w": w(d_model, vocab_size),
        "encoders": [],
        "decoders": [],
    }
    ones = jnp.ones((d_model,), jnp.float32)
    for _ in range(num_encoders):
        params["encoders"].append({
            "qkv_w": w(d_model, 3 * d_model),
            "attn_out_w": w(d_model, d_model),
            "ln1_w": ones,
            "mlp_w1": w(d_model, 4 * d_model),
            "mlp_w2": w(4 * d_model, d_model),
            "ln2_w": ones,
        })
    for _ in range(num_decoders):
        params["decoders"].append({
            "qkv_w": w(d_model, 3 * d_model),
            "attn1_out_w": w(d_model, d_model),
            "ln1_w": ones,
            "q_w": w(d_model, d_model),
            "kv_w": w(d_model, 2 * d_model),
            "attn2_out_w": w(d_model, d_model),
            "ln2_w": ones,
            "mlp_w1": w(d_model, 4 * d_model),
            "mlp_w2": w(4 * d_model, d_model),
            "ln3_w": ones,
        })
    return params


# ----------------------------------------------------------------------------

if __name__ == "__main__":
    vocab_size = 1024      # exercises the N-tiled path in the fc projection
    d_model = 128          # lane-aligned feature dim
    num_heads = 4          # d_k = 32
    block_size = 16
    num_encoders = 2
    num_decoders = 2
    B, T = 2, 8

    key = jax.random.PRNGKey(0)
    kp, ks, kt = jax.random.split(key, 3)
    params = init_params(kp, vocab_size, d_model, block_size, num_encoders, num_decoders)

    src_input = jax.random.randint(ks, (B, T), 0, vocab_size, dtype=jnp.int32)
    tgt_input = jax.random.randint(kt, (B, T), 0, vocab_size, dtype=jnp.int32)

    fwd = jax.jit(functools.partial(transformer_forward,
                                    num_heads=num_heads, d_model=d_model))
    logits = fwd(params, src_input, tgt_input)
    jax.block_until_ready(logits)

    assert logits.shape == (B, T, vocab_size), logits.shape
    assert bool(jnp.all(jnp.isfinite(logits)))
    print("KERNEL_OK")
</pallas_src>

<mosaic_0001>
module attributes {stable_mosaic.version = 11 : i64} {
  func.func @_linear_kernel(%arg0: i32, %arg1: i32, %arg2: i32, %arg3: memref<16x128xbf16, #tpu.memory_space<vmem>>, %arg4: memref<128x384xbf16, #tpu.memory_space<vmem>>, %arg5: memref<16x384xbf16, #tpu.memory_space<vmem>>, %arg6: memref<16x384xf32, #tpu.memory_space<vmem>>) attributes {dimension_semantics = [#tpu.dimension_semantics<parallel>, #tpu.dimension_semantics<parallel>, #tpu.dimension_semantics<arbitrary>], iteration_bounds = array<i64: 1, 1, 1>, scalar_prefetch = 0 : i64, scratch_operands = 1 : i64, tpu.core_type = #tpu.core_type<tc>, window_params = [{transform_indices = @transform_0, window_bounds = array<i64: 16, 128>}, {transform_indices = @transform_1, window_bounds = array<i64: 128, 384>}, {transform_indices = @transform_2, window_bounds = array<i64: 16, 384>}]} {
    %c0_i32 = arith.constant 0 : i32
    %0 = arith.cmpi eq, %arg2, %c0_i32 : i32
    %1 = arith.extui %0 : i1 to i32
    %c0_i32_0 = arith.constant 0 : i32
    %2 = arith.cmpi ne, %1, %c0_i32_0 : i32
    scf.if %2 {
      %cst_10 = arith.constant 0.000000e+00 : f32
      %12 = vector.broadcast %cst_10 : f32 to vector<16x384xf32>
      %c0_11 = arith.constant 0 : index
      %c0_12 = arith.constant 0 : index
      %13 = vector.load %arg6[%c0_11, %c0_12] : memref<16x384xf32, #tpu.memory_space<vmem>>, vector<16x384xf32>
      tpu.vector_store %arg6[%c0_11, %c0_12], %12 {strides = array<i32>} : memref<16x384xf32, #tpu.memory_space<vmem>>, vector<16x384xf32>,
    } else {
    }
    %c0 = arith.constant 0 : index
    %c0_1 = arith.constant 0 : index
    %3 = vector.load %arg6[%c0, %c0_1] : memref<16x384xf32, #tpu.memory_space<vmem>>, vector<16x384xf32>
    %c0_2 = arith.constant 0 : index
    %c0_3 = arith.constant 0 : index
    %4 = vector.load %arg3[%c0_2, %c0_3] : memref<16x128xbf16, #tpu.memory_space<vmem>>, vector<16x128xbf16>
    %c0_4 = arith.constant 0 : index
    %c0_5 = arith.constant 0 : index
    %5 = vector.load %arg4[%c0_4, %c0_5] : memref<128x384xbf16, #tpu.memory_space<vmem>>, vector<128x384xbf16>
    %cst = arith.constant dense<0.000000e+00> : vector<16x384xf32>
    %6 = tpu.matmul %4, %5, %cst {dimension_numbers = #tpu.dot_dimension_numbers<[1], [0], [0], [1], [0, 0, 1, 1], [], []>} : vector<16x128xbf16>, vector<128x384xbf16>, vector<16x384xf32> -> vector<16x384xf32>
    %7 = arith.addf %3, %6 : vector<16x384xf32>
    %c0_6 = arith.constant 0 : index
    %c0_7 = arith.constant 0 : index
    %8 = vector.load %arg6[%c0_6, %c0_7] : memref<16x384xf32, #tpu.memory_space<vmem>>, vector<16x384xf32>
    tpu.vector_store %arg6[%c0_6, %c0_7], %7 {strides = array<i32>} : memref<16x384xf32, #tpu.memory_space<vmem>>, vector<16x384xf32>,
    %c0_i32_8 = arith.constant 0 : i32
    %9 = arith.cmpi eq, %arg2, %c0_i32_8 : i32
    %10 = arith.extui %9 : i1 to i32
    %c0_i32_9 = arith.constant 0 : i32
    %11 = arith.cmpi ne, %10, %c0_i32_9 : i32
    scf.if %11 {
      %c0_10 = arith.constant 0 : index
      %c0_11 = arith.constant 0 : index
      %12 = vector.load %arg6[%c0_10, %c0_11] : memref<16x384xf32, #tpu.memory_space<vmem>>, vector<16x384xf32>
      %13 = arith.truncf %12 : vector<16x384xf32> to vector<16x384xbf16>
      %c0_12 = arith.constant 0 : index
      %c0_13 = arith.constant 0 : index
      %14 = vector.load %arg5[%c0_12, %c0_13] : memref<16x384xbf16, #tpu.memory_space<vmem>>, vector<16x384xbf16>
      tpu.vector_store %arg5[%c0_12, %c0_13], %13 {strides = array<i32>} : memref<16x384xbf16, #tpu.memory_space<vmem>>, vector<16x384xbf16>,
    } else {
    }
    return
  }
  func.func @transform_0(%arg0: i32, %arg1: i32, %arg2: i32) -> (i32, i32) {
    %c0_i32 = arith.constant 0 : i32
    return %arg0, %arg2 : i32, i32
  }
  func.func @transform_1(%arg0: i32, %arg1: i32, %arg2: i32) -> (i32, i32) {
    %c0_i32 = arith.constant 0 : i32
    return %arg2, %arg1 : i32, i32
  }
  func.func @transform_2(%arg0: i32, %arg1: i32, %arg2: i32) -> (i32, i32) {
    %c0_i32 = arith.constant 0 : i32
    return %arg0, %arg1 : i32, i32
  }
}

module attributes {stable_mosaic.version = 11 : i64} {
  func.func @_mha_kernel(%arg0: i32, %arg1: i32, %arg2: memref<1x8x128xbf16, #tpu.memory_space<vmem>>, %arg3: memref<1x8x128xbf16, #tpu.memory_space<vmem>>, %arg4: memref<1x8x128xbf16, #tpu.memory_space<vmem>>, %arg5: memref<1x8x128xbf16, #tpu.memory_space<vmem>>) attributes {dimension_semantics = [#tpu.dimension_semantics<parallel>, #tpu.dimension_semantics<parallel>], iteration_bounds = array<i64: 2, 1>, scalar_prefetch = 0 : i64, scratch_operands = 0 : i64, tpu.core_type = #tpu.core_type<tc>, window_params = [{transform_indices = @transform_0, window_bounds = array<i64: 1, 8, 128>}, {transform_indices = @transform_1, window_bounds = array<i64: 1, 8, 128>}, {transform_indices = @transform_2, window_bounds = array<i64: 1, 8, 128>}, {transform_indices = @transform_3, window_bounds = array<i64: 1, 8, 128>}]} {
    %c0 = arith.constant 0 : index
    %c0_0 = arith.constant 0 : index
    %c0_1 = arith.constant 0 : index
    %0 = vector.load %arg2[%c0, %c0_0, %c0_1] : memref<1x8x128xbf16, #tpu.memory_space<vmem>>, vector<1x8x128xbf16>
    %1 = vector.shape_cast %0 : vector<1x8x128xbf16> to vector<8x128xbf16>
    %c0_2 = arith.constant 0 : index
    %c0_3 = arith.constant 0 : index
    %c0_4 = arith.constant 0 : index
    %2 = vector.load %arg3[%c0_2, %c0_3, %c0_4] : memref<1x8x128xbf16, #tpu.memory_space<vmem>>, vector<1x8x128xbf16>
    %3 = vector.shape_cast %2 : vector<1x8x128xbf16> to vector<8x128xbf16>
    %c0_5 = arith.constant 0 : index
    %c0_6 = arith.constant 0 : index
    %c0_7 = arith.constant 0 : index
    %4 = vector.load %arg4[%c0_5, %c0_6, %c0_7] : memref<1x8x128xbf16, #tpu.memory_space<vmem>>, vector<1x8x128xbf16>
    %5 = vector.shape_cast %4 : vector<1x8x128xbf16> to vector<8x128xbf16>
    %6 = vector.extract_strided_slice %1 {offsets = [0, 0], sizes = [8, 32], strides = [1, 1]} : vector<8x128xbf16> to vector<8x32xbf16>
    %7 = arith.extf %6 : vector<8x32xbf16> to vector<8x32xf32>
    %cst = arith.constant 0.176776692 : f32
    %8 = vector.broadcast %cst : f32 to vector<8x32xf32>
    %9 = arith.mulf %7, %8 : vector<8x32xf32>
    %10 = arith.truncf %9 : vector<8x32xf32> to vector<8x32xbf16>
    %11 = vector.extract_strided_slice %3 {offsets = [0, 0], sizes = [8, 32], strides = [1, 1]} : vector<8x128xbf16> to vector<8x32xbf16>
    %12 = vector.extract_strided_slice %5 {offsets = [0, 0], sizes = [8, 32], strides = [1, 1]} : vector<8x128xbf16> to vector<8x32xbf16>
    %cst_8 = arith.constant dense<0.000000e+00> : vector<8x8xf32>
    %13 = tpu.matmul %10, %11, %cst_8 {dimension_numbers = #tpu.dot_dimension_numbers<[1], [1], [0], [0], [0, 0, 1, 0], [], []>} : vector<8x32xbf16>, vector<8x32xbf16>, vector<8x8xf32> -> vector<8x8xf32>
    %cst_9 = arith.constant dense<0xFF800000> : vector<8xf32>
    %14 = vector.multi_reduction <maximumf>, %13, %cst_9 [1] : vector<8x8xf32> to vector<8xf32>
    %15 = vector.shape_cast %14 : vector<8xf32> to vector<8x1xf32>
    %16 = vector.broadcast %15 : vector<8x1xf32> to vector<8x8xf32>
    %17 = arith.subf %13, %16 : vector<8x8xf32>
    %18 = math.exp %17 : vector<8x8xf32>
    %cst_10 = arith.constant dense<0.000000e+00> : vector<8xf32>
    %19 = vector.multi_reduction <add>, %18, %cst_10 [1] : vector<8x8xf32> to vector<8xf32>
    %20 = vector.shape_cast %19 : vector<8xf32> to vector<8x1xf32>
    %21 = tpu.reciprocal %20 {approx = true} : vector<8x1xf32> -> vector<8x1xf32>
    %22 = vector.broadcast %21 : vector<8x1xf32> to vector<8x8xf32>
    %23 = arith.mulf %18, %22 : vector<8x8xf32>
    %24 = arith.truncf %23 : vector<8x8xf32> to vector<8x8xbf16>
    %cst_11 = arith.constant dense<0.000000e+00> : vector<8x32xf32>
    %25 = tpu.matmul %24, %12, %cst_11 {dimension_numbers = #tpu.dot_dimension_numbers<[1], [0], [0], [1], [0, 0, 1, 1], [], []>} : vector<8x8xbf16>, vector<8x32xbf16>, vector<8x32xf32> -> vector<8x32xf32>
    %26 = arith.truncf %25 : vector<8x32xf32> to vector<8x32xbf16>
    %c0_12 = arith.constant 0 : index
    %c0_13 = arith.constant 0 : index
    %c0_14 = arith.constant 0 : index
    %27 = vector.load %arg5[%c0_12, %c0_13, %c0_14] : memref<1x8x128xbf16, #tpu.memory_space<vmem>>, vector<1x8x32xbf16>
    %28 = vector.shape_cast %27 : vector<1x8x32xbf16> to vector<8x32xbf16>
    %29 = vector.shape_cast %26 : vector<8x32xbf16> to vector<1x8x32xbf16>
    tpu.vector_store %arg5[%c0_12, %c0_13, %c0_14], %29 {strides = array<i32>} : memref<1x8x128xbf16, #tpu.memory_space<vmem>>, vector<1x8x32xbf16>,
    %30 = vector.extract_strided_slice %1 {offsets = [0, 32], sizes = [8, 32], strides = [1, 1]} : vector<8x128xbf16> to vector<8x32xbf16>
    %31 = arith.extf %30 : vector<8x32xbf16> to vector<8x32xf32>
    %cst_15 = arith.constant 0.176776692 : f32
    %32 = vector.broadcast %cst_15 : f32 to vector<8x32xf32>
    %33 = arith.mulf %31, %32 : vector<8x32xf32>
    %34 = arith.truncf %33 : vector<8x32xf32> to vector<8x32xbf16>
    %35 = vector.extract_strided_slice %3 {offsets = [0, 32], sizes = [8, 32], strides = [1, 1]} : vector<8x128xbf16> to vector<8x32xbf16>
    %36 = vector.extract_strided_slice %5 {offsets = [0, 32], sizes = [8, 32], strides = [1, 1]} : vector<8x128xbf16> to vector<8x32xbf16>
    %cst_16 = arith.constant dense<0.000000e+00> : vector<8x8xf32>
    %37 = tpu.matmul %34, %35, %cst_16 {dimension_numbers = #tpu.dot_dimension_numbers<[1], [1], [0], [0], [0, 0, 1, 0], [], []>} : vector<8x32xbf16>, vector<8x32xbf16>, vector<8x8xf32> -> vector<8x8xf32>
    %cst_17 = arith.constant dense<0xFF800000> : vector<8xf32>
    %38 = vector.multi_reduction <maximumf>, %37, %cst_17 [1] : vector<8x8xf32> to vector<8xf32>
    %39 = vector.shape_cast %38 : vector<8xf32> to vector<8x1xf32>
    %40 = vector.broadcast %39 : vector<8x1xf32> to vector<8x8xf32>
    %41 = arith.subf %37, %40 : vector<8x8xf32>
    %42 = math.exp %41 : vector<8x8xf32>
    %cst_18 = arith.constant dense<0.000000e+00> : vector<8xf32>
    %43 = vector.multi_reduction <add>, %42, %cst_18 [1] : vector<8x8xf32> to vector<8xf32>
    %44 = vector.shape_cast %43 : vector<8xf32> to vector<8x1xf32>
    %45 = tpu.reciprocal %44 {approx = true} : vector<8x1xf32> -> vector<8x1xf32>
    %46 = vector.broadcast %45 : vector<8x1xf32> to vector<8x8xf32>
    %47 = arith.mulf %42, %46 : vector<8x8xf32>
    %48 = arith.truncf %47 : vector<8x8xf32> to vector<8x8xbf16>
    %cst_19 = arith.constant dense<0.000000e+00> : vector<8x32xf32>
    %49 = tpu.matmul %48, %36, %cst_19 {dimension_numbers = #tpu.dot_dimension_numbers<[1], [0], [0], [1], [0, 0, 1, 1], [], []>} : vector<8x8xbf16>, vector<8x32xbf16>, vector<8x32xf32> -> vector<8x32xf32>
    %50 = arith.truncf %49 : vector<8x32xf32> to vector<8x32xbf16>
    %c0_20 = arith.constant 0 : index
    %c0_21 = arith.constant 0 : index
    %c32 = arith.constant 32 : index
    %51 = vector.load %arg5[%c0_20, %c0_21, %c32] : memref<1x8x128xbf16, #tpu.memory_space<vmem>>, vector<1x8x32xbf16>
    %52 = vector.shape_cast %51 : vector<1x8x32xbf16> to vector<8x32xbf16>
    %53 = vector.shape_cast %50 : vector<8x32xbf16> to vector<1x8x32xbf16>
    tpu.vector_store %arg5[%c0_20, %c0_21, %c32], %53 {strides = array<i32>} : memref<1x8x128xbf16, #tpu.memory_space<vmem>>, vector<1x8x32xbf16>,
    %54 = vector.extract_strided_slice %1 {offsets = [0, 64], sizes = [8, 32], strides = [1, 1]} : vector<8x128xbf16> to vector<8x32xbf16>
    %55 = arith.extf %54 : vector<8x32xbf16> to vector<8x32xf32>
    %cst_22 = arith.constant 0.176776692 : f32
    %56 = vector.broadcast %cst_22 : f32 to vector<8x32xf32>
    %57 = arith.mulf %55, %56 : vector<8x32xf32>
    %58 = arith.truncf %57 : vector<8x32xf32> to vector<8x32xbf16>
    %59 = vector.extract_strided_slice %3 {offsets = [0, 64], sizes = [8, 32], strides = [1, 1]} : vector<8x128xbf16> to vector<8x32xbf16>
    %60 = vector.extract_strided_slice %5 {offsets = [0, 64], sizes = [8, 32], strides = [1, 1]} : vector<8x128xbf16> to vector<8x32xbf16>
    %cst_23 = arith.constant dense<0.000000e+00> : vector<8x8xf32>
    %61 = tpu.matmul %58, %59, %cst_23 {dimension_numbers = #tpu.dot_dimension_numbers<[1], [1], [0], [0], [0, 0, 1, 0], [], []>} : vector<8x32xbf16>, vector<8x32xbf16>, vector<8x8xf32> -> vector<8x8xf32>
    %cst_24 = arith.constant dense<0xFF800000> : vector<8xf32>
    %62 = vector.multi_reduction <maximumf>, %61, %cst_24 [1] : vector<8x8xf32> to vector<8xf32>
    %63 = vector.shape_cast %62 : vector<8xf32> to vector<8x1xf32>
    %64 = vector.broadcast %63 : vector<8x1xf32> to vector<8x8xf32>
    %65 = arith.subf %61, %64 : vector<8x8xf32>
    %66 = math.exp %65 : vector<8x8xf32>
    %cst_25 = arith.constant dense<0.000000e+00> : vector<8xf32>
    %67 = vector.multi_reduction <add>, %66, %cst_25 [1] : vector<8x8xf32> to vector<8xf32>
    %68 = vector.shape_cast %67 : vector<8xf32> to vector<8x1xf32>
    %69 = tpu.reciprocal %68 {approx = true} : vector<8x1xf32> -> vector<8x1xf32>
    %70 = vector.broadcast %69 : vector<8x1xf32> to vector<8x8xf32>
    %71 = arith.mulf %66, %70 : vector<8x8xf32>
    %72 = arith.truncf %71 : vector<8x8xf32> to vector<8x8xbf16>
    %cst_26 = arith.constant dense<0.000000e+00> : vector<8x32xf32>
    %73 = tpu.matmul %72, %60, %cst_26 {dimension_numbers = #tpu.dot_dimension_numbers<[1], [0], [0], [1], [0, 0, 1, 1], [], []>} : vector<8x8xbf16>, vector<8x32xbf16>, vector<8x32xf32> -> vector<8x32xf32>
    %74 = arith.truncf %73 : vector<8x32xf32> to vector<8x32xbf16>
    %c0_27 = arith.constant 0 : index
    %c0_28 = arith.constant 0 : index
    %c64 = arith.constant 64 : index
    %75 = vector.load %arg5[%c0_27, %c0_28, %c64] : memref<1x8x128xbf16, #tpu.memory_space<vmem>>, vector<1x8x32xbf16>
    %76 = vector.shape_cast %75 : vector<1x8x32xbf16> to vector<8x32xbf16>
    %77 = vector.shape_cast %74 : vector<8x32xbf16> to vector<1x8x32xbf16>
    tpu.vector_store %arg5[%c0_27, %c0_28, %c64], %77 {strides = array<i32>} : memref<1x8x128xbf16, #tpu.memory_space<vmem>>, vector<1x8x32xbf16>,
    %78 = vector.extract_strided_slice %1 {offsets = [0, 96], sizes = [8, 32], strides = [1, 1]} : vector<8x128xbf16> to vector<8x32xbf16>
    %79 = arith.extf %78 : vector<8x32xbf16> to vector<8x32xf32>
    %cst_29 = arith.constant 0.176776692 : f32
    %80 = vector.broadcast %cst_29 : f32 to vector<8x32xf32>
    %81 = arith.mulf %79, %80 : vector<8x32xf32>
    %82 = arith.truncf %81 : vector<8x32xf32> to vector<8x32xbf16>
    %83 = vector.extract_strided_slice %3 {offsets = [0, 96], sizes = [8, 32], strides = [1, 1]} : vector<8x128xbf16> to vector<8x32xbf16>
    %84 = vector.extract_strided_slice %5 {offsets = [0, 96], sizes = [8, 32], strides = [1, 1]} : vector<8x128xbf16> to vector<8x32xbf16>
    %cst_30 = arith.constant dense<0.000000e+00> : vector<8x8xf32>
    %85 = tpu.matmul %82, %83, %cst_30 {dimension_numbers = #tpu.dot_dimension_numbers<[1], [1], [0], [0], [0, 0, 1, 0], [], []>} : vector<8x32xbf16>, vector<8x32xbf16>, vector<8x8xf32> -> vector<8x8xf32>
    %cst_31 = arith.constant dense<0xFF800000> : vector<8xf32>
    %86 = vector.multi_reduction <maximumf>, %85, %cst_31 [1] : vector<8x8xf32> to vector<8xf32>
    %87 = vector.shape_cast %86 : vector<8xf32> to vector<8x1xf32>
    %88 = vector.broadcast %87 : vector<8x1xf32> to vector<8x8xf32>
    %89 = arith.subf %85, %88 : vector<8x8xf32>
    %90 = math.exp %89 : vector<8x8xf32>
    %cst_32 = arith.constant dense<0.000000e+00> : vector<8xf32>
    %91 = vector.multi_reduction <add>, %90, %cst_32 [1] : vector<8x8xf32> to vector<8xf32>
    %92 = vector.shape_cast %91 : vector<8xf32> to vector<8x1xf32>
    %93 = tpu.reciprocal %92 {approx = true} : vector<8x1xf32> -> vector<8x1xf32>
    %94 = vector.broadcast %93 : vector<8x1xf32> to vector<8x8xf32>
    %95 = arith.mulf %90, %94 : vector<8x8xf32>
    %96 = arith.truncf %95 : vector<8x8xf32> to vector<8x8xbf16>
    %cst_33 = arith.constant dense<0.000000e+00> : vector<8x32xf32>
    %97 = tpu.matmul %96, %84, %cst_33 {dimension_numbers = #tpu.dot_dimension_numbers<[1], [0], [0], [1], [0, 0, 1, 1], [], []>} : vector<8x8xbf16>, vector<8x32xbf16>, vector<8x32xf32> -> vector<8x32xf32>
    %98 = arith.truncf %97 : vector<8x32xf32> to vector<8x32xbf16>
    %c0_34 = arith.constant 0 : index
    %c0_35 = arith.constant 0 : index
    %c96 = arith.constant 96 : index
    %99 = vector.load %arg5[%c0_34, %c0_35, %c96] : memref<1x8x128xbf16, #tpu.memory_space<vmem>>, vector<1x8x32xbf16>
    %100 = vector.shape_cast %99 : vector<1x8x32xbf16> to vector<8x32xbf16>
    %101 = vector.shape_cast %98 : vector<8x32xbf16> to vector<1x8x32xbf16>
    tpu.vector_store %arg5[%c0_34, %c0_35, %c96], %101 {strides = array<i32>} : memref<1x8x128xbf16, #tpu.memory_space<vmem>>, vector<1x8x32xbf16>,
    return
  }
  func.func @transform_0(%arg0: i32, %arg1: i32) -> (i32, i32, i32) {
    %c0_i32 = arith.constant 0 : i32
    %c0_i32_0 = arith.constant 0 : i32
    return %arg0, %arg1, %c0_i32 : i32, i32, i32
  }
  func.func @transform_1(%arg0: i32, %arg1: i32) -> (i32, i32, i32) {
    %c0_i32 = arith.constant 0 : i32
    %c1_i32 = arith.constant 1 : i32
    %c0_i32_0 = arith.constant 0 : i32
    return %arg0, %c0_i32, %c1_i32 : i32, i32, i32
  }
  func.func @transform_2(%arg0: i32, %arg1: i32) -> (i32, i32, i32) {
    %c0_i32 = arith.constant 0 : i32
    %c2_i32 = arith.constant 2 : i32
    %c0_i32_0 = arith.constant 0 : i32
    return %arg0, %c0_i32, %c2_i32 : i32, i32, i32
  }
  func.func @transform_3(%arg0: i32, %arg1: i32) -> (i32, i32, i32) {
    %c0_i32 = arith.constant 0 : i32
    %c0_i32_0 = arith.constant 0 : i32
    return %arg0, %arg1, %c0_i32 : i32, i32, i32
  }
}

module attributes {stable_mosaic.version = 11 : i64} {
  func.func @_mlp_add_ln_kernel(%arg0: i32, %arg1: i32, %arg2: memref<16x128xbf16, #tpu.memory_space<vmem>>, %arg3: memref<128x512xbf16, #tpu.memory_space<vmem>>, %arg4: memref<512x128xbf16, #tpu.memory_space<vmem>>, %arg5: memref<16x128xbf16, #tpu.memory_space<vmem>>, %arg6: memref<1x128xf32, #tpu.memory_space<vmem>>, %arg7: memref<16x128xbf16, #tpu.memory_space<vmem>>, %arg8: memref<16x128xf32, #tpu.memory_space<vmem>>) attributes {dimension_semantics = [#tpu.dimension_semantics<parallel>, #tpu.dimension_semantics<arbitrary>], iteration_bounds = array<i64: 1, 1>, scalar_prefetch = 0 : i64, scratch_operands = 1 : i64, tpu.core_type = #tpu.core_type<tc>, window_params = [{transform_indices = @transform_0, window_bounds = array<i64: 16, 128>}, {transform_indices = @transform_1, window_bounds = array<i64: 128, 512>}, {transform_indices = @transform_2, window_bounds = array<i64: 512, 128>}, {transform_indices = @transform_3, window_bounds = array<i64: 16, 128>}, {pipeline_mode = #tpu.pipeline_mode<synchronous>, transform_indices = @transform_4, window_bounds = array<i64: 1, 128>}, {transform_indices = @transform_5, window_bounds = array<i64: 16, 128>}]} {
    %c0_i32 = arith.constant 0 : i32
    %0 = arith.cmpi eq, %arg1, %c0_i32 : i32
    %1 = arith.extui %0 : i1 to i32
    %c0_i32_0 = arith.constant 0 : i32
    %2 = arith.cmpi ne, %1, %c0_i32_0 : i32
    scf.if %2 {
      %cst_14 = arith.constant 0.000000e+00 : f32
      %17 = vector.broadcast %cst_14 : f32 to vector<16x128xf32>
      %c0_15 = arith.constant 0 : index
      %c0_16 = arith.constant 0 : index
      %18 = vector.load %arg8[%c0_15, %c0_16] : memref<16x128xf32, #tpu.memory_space<vmem>>, vector<16x128xf32>
      tpu.vector_store %arg8[%c0_15, %c0_16], %17 {strides = array<i32>} : memref<16x128xf32, #tpu.memory_space<vmem>>, vector<16x128xf32>,
    } else {
    }
    %c0 = arith.constant 0 : index
    %c0_1 = arith.constant 0 : index
    %3 = vector.load %arg2[%c0, %c0_1] : memref<16x128xbf16, #tpu.memory_space<vmem>>, vector<16x128xbf16>
    %c0_2 = arith.constant 0 : index
    %c0_3 = arith.constant 0 : index
    %4 = vector.load %arg3[%c0_2, %c0_3] : memref<128x512xbf16, #tpu.memory_space<vmem>>, vector<128x512xbf16>
    %cst = arith.constant dense<0.000000e+00> : vector<16x512xf32>
    %5 = tpu.matmul %3, %4, %cst {dimension_numbers = #tpu.dot_dimension_numbers<[1], [0], [0], [1], [0, 0, 1, 1], [], []>} : vector<16x128xbf16>, vector<128x512xbf16>, vector<16x512xf32> -> vector<16x512xf32>
    %cst_4 = arith.constant 0.000000e+00 : f32
    %6 = vector.broadcast %cst_4 : f32 to vector<16x512xf32>
    %7 = arith.maximumf %5, %6 : vector<16x512xf32>
    %8 = arith.truncf %7 : vector<16x512xf32> to vector<16x512xbf16>
    %c0_5 = arith.constant 0 : index
    %c0_6 = arith.constant 0 : index
    %9 = vector.load %arg8[%c0_5, %c0_6] : memref<16x128xf32, #tpu.memory_space<vmem>>, vector<16x128xf32>
    %c0_7 = arith.constant 0 : index
    %c0_8 = arith.constant 0 : index
    %10 = vector.load %arg4[%c0_7, %c0_8] : memref<512x128xbf16, #tpu.memory_space<vmem>>, vector<512x128xbf16>
    %cst_9 = arith.constant dense<0.000000e+00> : vector<16x128xf32>
    %11 = tpu.matmul %8, %10, %cst_9 {dimension_numbers = #tpu.dot_dimension_numbers<[1], [0], [0], [1], [0, 0, 1, 1], [], []>} : vector<16x512xbf16>, vector<512x128xbf16>, vector<16x128xf32> -> vector<16x128xf32>
    %12 = arith.addf %9, %11 : vector<16x128xf32>
    %c0_10 = arith.constant 0 : index
    %c0_11 = arith.constant 0 : index
    %13 = vector.load %arg8[%c0_10, %c0_11] : memref<16x128xf32, #tpu.memory_space<vmem>>, vector<16x128xf32>
    tpu.vector_store %arg8[%c0_10, %c0_11], %12 {strides = array<i32>} : memref<16x128xf32, #tpu.memory_space<vmem>>, vector<16x128xf32>,
    %c0_i32_12 = arith.constant 0 : i32
    %14 = arith.cmpi eq, %arg1, %c0_i32_12 : i32
    %15 = arith.extui %14 : i1 to i32
    %c0_i32_13 = arith.constant 0 : i32
    %16 = arith.cmpi ne, %15, %c0_i32_13 : i32
    scf.if %16 {
      %c0_14 = arith.constant 0 : index
      %c0_15 = arith.constant 0 : index
      %17 = vector.load %arg8[%c0_14, %c0_15] : memref<16x128xf32, #tpu.memory_space<vmem>>, vector<16x128xf32>
      %c0_16 = arith.constant 0 : index
      %c0_17 = arith.constant 0 : index
      %18 = vector.load %arg5[%c0_16, %c0_17] : memref<16x128xbf16, #tpu.memory_space<vmem>>, vector<16x128xbf16>
      %19 = arith.extf %18 : vector<16x128xbf16> to vector<16x128xf32>
      %20 = arith.addf %17, %19 : vector<16x128xf32>
      %cst_18 = arith.constant dense<0.000000e+00> : vector<16xf32>
      %21 = vector.multi_reduction <add>, %20, %cst_18 [1] : vector<16x128xf32> to vector<16xf32>
      %22 = vector.shape_cast %21 : vector<16xf32> to vector<16x1xf32>
      %cst_19 = arith.constant 1.280000e+02 : f32
      %23 = vector.broadcast %cst_19 : f32 to vector<16x1xf32>
      %24 = arith.divf %22, %23 : vector<16x1xf32>
      %25 = vector.broadcast %24 : vector<16x1xf32> to vector<16x128xf32>
      %26 = arith.subf %20, %25 : vector<16x128xf32>
      %27 = arith.mulf %26, %26 : vector<16x128xf32>
      %cst_20 = arith.constant dense<0.000000e+00> : vector<16xf32>
      %28 = vector.multi_reduction <add>, %27, %cst_20 [1] : vector<16x128xf32> to vector<16xf32>
      %29 = vector.shape_cast %28 : vector<16xf32> to vector<16x1xf32>
      %cst_21 = arith.constant 1.280000e+02 : f32
      %30 = vector.broadcast %cst_21 : f32 to vector<16x1xf32>
      %31 = arith.divf %29, %30 : vector<16x1xf32>
      %cst_22 = arith.constant 9.99999974E-6 : f32
      %32 = vector.broadcast %cst_22 : f32 to vector<16x1xf32>
      %33 = arith.addf %31, %32 : vector<16x1xf32>
      %34 = math.rsqrt %33 : vector<16x1xf32>
      %35 = vector.broadcast %34 : vector<16x1xf32> to vector<16x128xf32>
      %36 = arith.mulf %26, %35 : vector<16x128xf32>
      %c0_23 = arith.constant 0 : index
      %c0_24 = arith.constant 0 : index
      %37 = vector.load %arg6[%c0_23, %c0_24] : memref<1x128xf32, #tpu.memory_space<vmem>>, vector<1x128xf32>
      %38 = vector.broadcast %37 : vector<1x128xf32> to vector<16x128xf32>
      %39 = arith.mulf %36, %38 : vector<16x128xf32>
      %40 = arith.truncf %39 : vector<16x128xf32> to vector<16x128xbf16>
      %c0_25 = arith.constant 0 : index
      %c0_26 = arith.constant 0 : index
      %41 = vector.load %arg7[%c0_25, %c0_26] : memref<16x128xbf16, #tpu.memory_space<vmem>>, vector<16x128xbf16>
      tpu.vector_store %arg7[%c0_25, %c0_26], %40 {strides = array<i32>} : memref<16x128xbf16, #tpu.memory_space<vmem>>, vector<16x128xbf16>,
    } else {
    }
    return
  }
  func.func @transform_0(%arg0: i32, %arg1: i32) -> (i32, i32) {
    %c0_i32 = arith.constant 0 : i32
    %c0_i32_0 = arith.constant 0 : i32
    return %arg0, %c0_i32 : i32, i32
  }
  func.func @transform_1(%arg0: i32, %arg1: i32) -> (i32, i32) {
    %c0_i32 = arith.constant 0 : i32
    %c0_i32_0 = arith.constant 0 : i32
    return %c0_i32, %arg1 : i32, i32
  }
  func.func @transform_2(%arg0: i32, %arg1: i32) -> (i32, i32) {
    %c0_i32 = arith.constant 0 : i32
    %c0_i32_0 = arith.constant 0 : i32
    return %arg1, %c0_i32 : i32, i32
  }
  func.func @transform_3(%arg0: i32, %arg1: i32) -> (i32, i32) {
    %c0_i32 = arith.constant 0 : i32
    %c0_i32_0 = arith.constant 0 : i32
    return %arg0, %c0_i32 : i32, i32
  }
  func.func @transform_4(%arg0: i32, %arg1: i32) -> (i32, i32) {
    %c0_i32 = arith.constant 0 : i32
    %c0_i32_0 = arith.constant 0 : i32
    %c0_i32_1 = arith.constant 0 : i32
    return %c0_i32, %c0_i32_0 : i32, i32
  }
  func.func @transform_5(%arg0: i32, %arg1: i32) -> (i32, i32) {
    %c0_i32 = arith.constant 0 : i32
    %c0_i32_0 = arith.constant 0 : i32
    return %arg0, %c0_i32 : i32, i32
  }
}

module attributes {stable_mosaic.version = 11 : i64} {
  func.func @_linear_add_ln_kernel(%arg0: i32, %arg1: i32, %arg2: memref<16x128xbf16, #tpu.memory_space<vmem>>, %arg3: memref<128x128xbf16, #tpu.memory_space<vmem>>, %arg4: memref<16x128xbf16, #tpu.memory_space<vmem>>, %arg5: memref<1x128xf32, #tpu.memory_space<vmem>>, %arg6: memref<16x128xbf16, #tpu.memory_space<vmem>>, %arg7: memref<16x128xf32, #tpu.memory_space<vmem>>) attributes {dimension_semantics = [#tpu.dimension_semantics<parallel>, #tpu.dimension_semantics<arbitrary>], iteration_bounds = array<i64: 1, 1>, scalar_prefetch = 0 : i64, scratch_operands = 1 : i64, tpu.core_type = #tpu.core_type<tc>, window_params = [{transform_indices = @transform_0, window_bounds = array<i64: 16, 128>}, {transform_indices = @transform_1, window_bounds = array<i64: 128, 128>}, {transform_indices = @transform_2, window_bounds = array<i64: 16, 128>}, {pipeline_mode = #tpu.pipeline_mode<synchronous>, transform_indices = @transform_3, window_bounds = array<i64: 1, 128>}, {transform_indices = @transform_4, window_bounds = array<i64: 16, 128>}]} {
    %c0_i32 = arith.constant 0 : i32
    %0 = arith.cmpi eq, %arg1, %c0_i32 : i32
    %1 = arith.extui %0 : i1 to i32
    %c0_i32_0 = arith.constant 0 : i32
    %2 = arith.cmpi ne, %1, %c0_i32_0 : i32
    scf.if %2 {
      %cst_10 = arith.constant 0.000000e+00 : f32
      %12 = vector.broadcast %cst_10 : f32 to vector<16x128xf32>
      %c0_11 = arith.constant 0 : index
      %c0_12 = arith.constant 0 : index
      %13 = vector.load %arg7[%c0_11, %c0_12] : memref<16x128xf32, #tpu.memory_space<vmem>>, vector<16x128xf32>
      tpu.vector_store %arg7[%c0_11, %c0_12], %12 {strides = array<i32>} : memref<16x128xf32, #tpu.memory_space<vmem>>, vector<16x128xf32>,
    } else {
    }
    %c0 = arith.constant 0 : index
    %c0_1 = arith.constant 0 : index
    %3 = vector.load %arg7[%c0, %c0_1] : memref<16x128xf32, #tpu.memory_space<vmem>>, vector<16x128xf32>
    %c0_2 = arith.constant 0 : index
    %c0_3 = arith.constant 0 : index
    %4 = vector.load %arg2[%c0_2, %c0_3] : memref<16x128xbf16, #tpu.memory_space<vmem>>, vector<16x128xbf16>
    %c0_4 = arith.constant 0 : index
    %c0_5 = arith.constant 0 : index
    %5 = vector.load %arg3[%c0_4, %c0_5] : memref<128x128xbf16, #tpu.memory_space<vmem>>, vector<128x128xbf16>
    %cst = arith.constant dense<0.000000e+00> : vector<16x128xf32>
    %6 = tpu.matmul %4, %5, %cst {dimension_numbers = #tpu.dot_dimension_numbers<[1], [0], [0], [1], [0, 0, 1, 1], [], []>} : vector<16x128xbf16>, vector<128x128xbf16>, vector<16x128xf32> -> vector<16x128xf32>
    %7 = arith.addf %3, %6 : vector<16x128xf32>
    %c0_6 = arith.constant 0 : index
    %c0_7 = arith.constant 0 : index
    %8 = vector.load %arg7[%c0_6, %c0_7] : memref<16x128xf32, #tpu.memory_space<vmem>>, vector<16x128xf32>
    tpu.vector_store %arg7[%c0_6, %c0_7], %7 {strides = array<i32>} : memref<16x128xf32, #tpu.memory_space<vmem>>, vector<16x128xf32>,
    %c0_i32_8 = arith.constant 0 : i32
    %9 = arith.cmpi eq, %arg1, %c0_i32_8 : i32
    %10 = arith.extui %9 : i1 to i32
    %c0_i32_9 = arith.constant 0 : i32
    %11 = arith.cmpi ne, %10, %c0_i32_9 : i32
    scf.if %11 {
      %c0_10 = arith.constant 0 : index
      %c0_11 = arith.constant 0 : index
      %12 = vector.load %arg7[%c0_10, %c0_11] : memref<16x128xf32, #tpu.memory_space<vmem>>, vector<16x128xf32>
      %c0_12 = arith.constant 0 : index
      %c0_13 = arith.constant 0 : index
      %13 = vector.load %arg4[%c0_12, %c0_13] : memref<16x128xbf16, #tpu.memory_space<vmem>>, vector<16x128xbf16>
      %14 = arith.extf %13 : vector<16x128xbf16> to vector<16x128xf32>
      %15 = arith.addf %12, %14 : vector<16x128xf32>
      %cst_14 = arith.constant dense<0.000000e+00> : vector<16xf32>
      %16 = vector.multi_reduction <add>, %15, %cst_14 [1] : vector<16x128xf32> to vector<16xf32>
      %17 = vector.shape_cast %16 : vector<16xf32> to vector<16x1xf32>
      %cst_15 = arith.constant 1.280000e+02 : f32
      %18 = vector.broadcast %cst_15 : f32 to vector<16x1xf32>
      %19 = arith.divf %17, %18 : vector<16x1xf32>
      %20 = vector.broadcast %19 : vector<16x1xf32> to vector<16x128xf32>
      %21 = arith.subf %15, %20 : vector<16x128xf32>
      %22 = arith.mulf %21, %21 : vector<16x128xf32>
      %cst_16 = arith.constant dense<0.000000e+00> : vector<16xf32>
      %23 = vector.multi_reduction <add>, %22, %cst_16 [1] : vector<16x128xf32> to vector<16xf32>
      %24 = vector.shape_cast %23 : vector<16xf32> to vector<16x1xf32>
      %cst_17 = arith.constant 1.280000e+02 : f32
      %25 = vector.broadcast %cst_17 : f32 to vector<16x1xf32>
      %26 = arith.divf %24, %25 : vector<16x1xf32>
      %cst_18 = arith.constant 9.99999974E-6 : f32
      %27 = vector.broadcast %cst_18 : f32 to vector<16x1xf32>
      %28 = arith.addf %26, %27 : vector<16x1xf32>
      %29 = math.rsqrt %28 : vector<16x1xf32>
      %30 = vector.broadcast %29 : vector<16x1xf32> to vector<16x128xf32>
      %31 = arith.mulf %21, %30 : vector<16x128xf32>
      %c0_19 = arith.constant 0 : index
      %c0_20 = arith.constant 0 : index
      %32 = vector.load %arg5[%c0_19, %c0_20] : memref<1x128xf32, #tpu.memory_space<vmem>>, vector<1x128xf32>
      %33 = vector.broadcast %32 : vector<1x128xf32> to vector<16x128xf32>
      %34 = arith.mulf %31, %33 : vector<16x128xf32>
      %35 = arith.truncf %34 : vector<16x128xf32> to vector<16x128xbf16>
      %c0_21 = arith.constant 0 : index
      %c0_22 = arith.constant 0 : index
      %36 = vector.load %arg6[%c0_21, %c0_22] : memref<16x128xbf16, #tpu.memory_space<vmem>>, vector<16x128xbf16>
      tpu.vector_store %arg6[%c0_21, %c0_22], %35 {strides = array<i32>} : memref<16x128xbf16, #tpu.memory_space<vmem>>, vector<16x128xbf16>,
    } else {
    }
    return
  }
  func.func @transform_0(%arg0: i32, %arg1: i32) -> (i32, i32) {
    %c0_i32 = arith.constant 0 : i32
    return %arg0, %arg1 : i32, i32
  }
  func.func @transform_1(%arg0: i32, %arg1: i32) -> (i32, i32) {
    %c0_i32 = arith.constant 0 : i32
    %c0_i32_0 = arith.constant 0 : i32
    return %arg1, %c0_i32 : i32, i32
  }
  func.func @transform_2(%arg0: i32, %arg1: i32) -> (i32, i32) {
    %c0_i32 = arith.constant 0 : i32
    %c0_i32_0 = arith.constant 0 : i32
    return %arg0, %c0_i32 : i32, i32
  }
  func.func @transform_3(%arg0: i32, %arg1: i32) -> (i32, i32) {
    %c0_i32 = arith.constant 0 : i32
    %c0_i32_0 = arith.constant 0 : i32
    %c0_i32_1 = arith.constant 0 : i32
    return %c0_i32, %c0_i32_0 : i32, i32
  }
  func.func @transform_4(%arg0: i32, %arg1: i32) -> (i32, i32) {
    %c0_i32 = arith.constant 0 : i32
    %c0_i32_0 = arith.constant 0 : i32
    return %arg0, %c0_i32 : i32, i32
  }
}

module attributes {stable_mosaic.version = 11 : i64} {
  func.func @_linear_kernel(%arg0: i32, %arg1: i32, %arg2: i32, %arg3: memref<16x128xbf16, #tpu.memory_space<vmem>>, %arg4: memref<128x256xbf16, #tpu.memory_space<vmem>>, %arg5: memref<16x256xbf16, #tpu.memory_space<vmem>>, %arg6: memref<16x256xf32, #tpu.memory_space<vmem>>) attributes {dimension_semantics = [#tpu.dimension_semantics<parallel>, #tpu.dimension_semantics<parallel>, #tpu.dimension_semantics<arbitrary>], iteration_bounds = array<i64: 1, 1, 1>, scalar_prefetch = 0 : i64, scratch_operands = 1 : i64, tpu.core_type = #tpu.core_type<tc>, window_params = [{transform_indices = @transform_0, window_bounds = array<i64: 16, 128>}, {transform_indices = @transform_1, window_bounds = array<i64: 128, 256>}, {transform_indices = @transform_2, window_bounds = array<i64: 16, 256>}]} {
    %c0_i32 = arith.constant 0 : i32
    %0 = arith.cmpi eq, %arg2, %c0_i32 : i32
    %1 = arith.extui %0 : i1 to i32
    %c0_i32_0 = arith.constant 0 : i32
    %2 = arith.cmpi ne, %1, %c0_i32_0 : i32
    scf.if %2 {
      %cst_10 = arith.constant 0.000000e+00 : f32
      %12 = vector.broadcast %cst_10 : f32 to vector<16x256xf32>
      %c0_11 = arith.constant 0 : index
      %c0_12 = arith.constant 0 : index
      %13 = vector.load %arg6[%c0_11, %c0_12] : memref<16x256xf32, #tpu.memory_space<vmem>>, vector<16x256xf32>
      tpu.vector_store %arg6[%c0_11, %c0_12], %12 {strides = array<i32>} : memref<16x256xf32, #tpu.memory_space<vmem>>, vector<16x256xf32>,
    } else {
    }
    %c0 = arith.constant 0 : index
    %c0_1 = arith.constant 0 : index
    %3 = vector.load %arg6[%c0, %c0_1] : memref<16x256xf32, #tpu.memory_space<vmem>>, vector<16x256xf32>
    %c0_2 = arith.constant 0 : index
    %c0_3 = arith.constant 0 : index
    %4 = vector.load %arg3[%c0_2, %c0_3] : memref<16x128xbf16, #tpu.memory_space<vmem>>, vector<16x128xbf16>
    %c0_4 = arith.constant 0 : index
    %c0_5 = arith.constant 0 : index
    %5 = vector.load %arg4[%c0_4, %c0_5] : memref<128x256xbf16, #tpu.memory_space<vmem>>, vector<128x256xbf16>
    %cst = arith.constant dense<0.000000e+00> : vector<16x256xf32>
    %6 = tpu.matmul %4, %5, %cst {dimension_numbers = #tpu.dot_dimension_numbers<[1], [0], [0], [1], [0, 0, 1, 1], [], []>} : vector<16x128xbf16>, vector<128x256xbf16>, vector<16x256xf32> -> vector<16x256xf32>
    %7 = arith.addf %3, %6 : vector<16x256xf32>
    %c0_6 = arith.constant 0 : index
    %c0_7 = arith.constant 0 : index
    %8 = vector.load %arg6[%c0_6, %c0_7] : memref<16x256xf32, #tpu.memory_space<vmem>>, vector<16x256xf32>
    tpu.vector_store %arg6[%c0_6, %c0_7], %7 {strides = array<i32>} : memref<16x256xf32, #tpu.memory_space<vmem>>, vector<16x256xf32>,
    %c0_i32_8 = arith.constant 0 : i32
    %9 = arith.cmpi eq, %arg2, %c0_i32_8 : i32
    %10 = arith.extui %9 : i1 to i32
    %c0_i32_9 = arith.constant 0 : i32
    %11 = arith.cmpi ne, %10, %c0_i32_9 : i32
    scf.if %11 {
      %c0_10 = arith.constant 0 : index
      %c0_11 = arith.constant 0 : index
      %12 = vector.load %arg6[%c0_10, %c0_11] : memref<16x256xf32, #tpu.memory_space<vmem>>, vector<16x256xf32>
      %13 = arith.truncf %12 : vector<16x256xf32> to vector<16x256xbf16>
      %c0_12 = arith.constant 0 : index
      %c0_13 = arith.constant 0 : index
      %14 = vector.load %arg5[%c0_12, %c0_13] : memref<16x256xbf16, #tpu.memory_space<vmem>>, vector<16x256xbf16>
      tpu.vector_store %arg5[%c0_12, %c0_13], %13 {strides = array<i32>} : memref<16x256xbf16, #tpu.memory_space<vmem>>, vector<16x256xbf16>,
    } else {
    }
    return
  }
  func.func @transform_0(%arg0: i32, %arg1: i32, %arg2: i32) -> (i32, i32) {
    %c0_i32 = arith.constant 0 : i32
    return %arg0, %arg2 : i32, i32
  }
  func.func @transform_1(%arg0: i32, %arg1: i32, %arg2: i32) -> (i32, i32) {
    %c0_i32 = arith.constant 0 : i32
    return %arg2, %arg1 : i32, i32
  }
  func.func @transform_2(%arg0: i32, %arg1: i32, %arg2: i32) -> (i32, i32) {
    %c0_i32 = arith.constant 0 : i32
    return %arg0, %arg1 : i32, i32
  }
}

module attributes {stable_mosaic.version = 11 : i64} {
  func.func @_linear_kernel(%arg0: i32, %arg1: i32, %arg2: i32, %arg3: memref<16x128xbf16, #tpu.memory_space<vmem>>, %arg4: memref<128x128xbf16, #tpu.memory_space<vmem>>, %arg5: memref<16x128xbf16, #tpu.memory_space<vmem>>, %arg6: memref<16x128xf32, #tpu.memory_space<vmem>>) attributes {dimension_semantics = [#tpu.dimension_semantics<parallel>, #tpu.dimension_semantics<parallel>, #tpu.dimension_semantics<arbitrary>], iteration_bounds = array<i64: 1, 1, 1>, scalar_prefetch = 0 : i64, scratch_operands = 1 : i64, tpu.core_type = #tpu.core_type<tc>, window_params = [{transform_indices = @transform_0, window_bounds = array<i64: 16, 128>}, {transform_indices = @transform_1, window_bounds = array<i64: 128, 128>}, {transform_indices = @transform_2, window_bounds = array<i64: 16, 128>}]} {
    %c0_i32 = arith.constant 0 : i32
    %0 = arith.cmpi eq, %arg2, %c0_i32 : i32
    %1 = arith.extui %0 : i1 to i32
    %c0_i32_0 = arith.constant 0 : i32
    %2 = arith.cmpi ne, %1, %c0_i32_0 : i32
    scf.if %2 {
      %cst_10 = arith.constant 0.000000e+00 : f32
      %12 = vector.broadcast %cst_10 : f32 to vector<16x128xf32>
      %c0_11 = arith.constant 0 : index
      %c0_12 = arith.constant 0 : index
      %13 = vector.load %arg6[%c0_11, %c0_12] : memref<16x128xf32, #tpu.memory_space<vmem>>, vector<16x128xf32>
      tpu.vector_store %arg6[%c0_11, %c0_12], %12 {strides = array<i32>} : memref<16x128xf32, #tpu.memory_space<vmem>>, vector<16x128xf32>,
    } else {
    }
    %c0 = arith.constant 0 : index
    %c0_1 = arith.constant 0 : index
    %3 = vector.load %arg6[%c0, %c0_1] : memref<16x128xf32, #tpu.memory_space<vmem>>, vector<16x128xf32>
    %c0_2 = arith.constant 0 : index
    %c0_3 = arith.constant 0 : index
    %4 = vector.load %arg3[%c0_2, %c0_3] : memref<16x128xbf16, #tpu.memory_space<vmem>>, vector<16x128xbf16>
    %c0_4 = arith.constant 0 : index
    %c0_5 = arith.constant 0 : index
    %5 = vector.load %arg4[%c0_4, %c0_5] : memref<128x128xbf16, #tpu.memory_space<vmem>>, vector<128x128xbf16>
    %cst = arith.constant dense<0.000000e+00> : vector<16x128xf32>
    %6 = tpu.matmul %4, %5, %cst {dimension_numbers = #tpu.dot_dimension_numbers<[1], [0], [0], [1], [0, 0, 1, 1], [], []>} : vector<16x128xbf16>, vector<128x128xbf16>, vector<16x128xf32> -> vector<16x128xf32>
    %7 = arith.addf %3, %6 : vector<16x128xf32>
    %c0_6 = arith.constant 0 : index
    %c0_7 = arith.constant 0 : index
    %8 = vector.load %arg6[%c0_6, %c0_7] : memref<16x128xf32, #tpu.memory_space<vmem>>, vector<16x128xf32>
    tpu.vector_store %arg6[%c0_6, %c0_7], %7 {strides = array<i32>} : memref<16x128xf32, #tpu.memory_space<vmem>>, vector<16x128xf32>,
    %c0_i32_8 = arith.constant 0 : i32
    %9 = arith.cmpi eq, %arg2, %c0_i32_8 : i32
    %10 = arith.extui %9 : i1 to i32
    %c0_i32_9 = arith.constant 0 : i32
    %11 = arith.cmpi ne, %10, %c0_i32_9 : i32
    scf.if %11 {
      %c0_10 = arith.constant 0 : index
      %c0_11 = arith.constant 0 : index
      %12 = vector.load %arg6[%c0_10, %c0_11] : memref<16x128xf32, #tpu.memory_space<vmem>>, vector<16x128xf32>
      %13 = arith.truncf %12 : vector<16x128xf32> to vector<16x128xbf16>
      %c0_12 = arith.constant 0 : index
      %c0_13 = arith.constant 0 : index
      %14 = vector.load %arg5[%c0_12, %c0_13] : memref<16x128xbf16, #tpu.memory_space<vmem>>, vector<16x128xbf16>
      tpu.vector_store %arg5[%c0_12, %c0_13], %13 {strides = array<i32>} : memref<16x128xbf16, #tpu.memory_space<vmem>>, vector<16x128xbf16>,
    } else {
    }
    return
  }
  func.func @transform_0(%arg0: i32, %arg1: i32, %arg2: i32) -> (i32, i32) {
    %c0_i32 = arith.constant 0 : i32
    return %arg0, %arg2 : i32, i32
  }
  func.func @transform_1(%arg0: i32, %arg1: i32, %arg2: i32) -> (i32, i32) {
    %c0_i32 = arith.constant 0 : i32
    return %arg2, %arg1 : i32, i32
  }
  func.func @transform_2(%arg0: i32, %arg1: i32, %arg2: i32) -> (i32, i32) {
    %c0_i32 = arith.constant 0 : i32
    return %arg0, %arg1 : i32, i32
  }
}

module attributes {stable_mosaic.version = 11 : i64} {
  func.func @_mha_kernel(%arg0: i32, %arg1: i32, %arg2: memref<1x8x128xbf16, #tpu.memory_space<vmem>>, %arg3: memref<1x8x128xbf16, #tpu.memory_space<vmem>>, %arg4: memref<1x8x128xbf16, #tpu.memory_space<vmem>>, %arg5: memref<1x8x128xbf16, #tpu.memory_space<vmem>>) attributes {dimension_semantics = [#tpu.dimension_semantics<parallel>, #tpu.dimension_semantics<parallel>], iteration_bounds = array<i64: 2, 1>, scalar_prefetch = 0 : i64, scratch_operands = 0 : i64, tpu.core_type = #tpu.core_type<tc>, window_params = [{transform_indices = @transform_0, window_bounds = array<i64: 1, 8, 128>}, {transform_indices = @transform_1, window_bounds = array<i64: 1, 8, 128>}, {transform_indices = @transform_2, window_bounds = array<i64: 1, 8, 128>}, {transform_indices = @transform_3, window_bounds = array<i64: 1, 8, 128>}]} {
    %c0 = arith.constant 0 : index
    %c0_0 = arith.constant 0 : index
    %c0_1 = arith.constant 0 : index
    %0 = vector.load %arg2[%c0, %c0_0, %c0_1] : memref<1x8x128xbf16, #tpu.memory_space<vmem>>, vector<1x8x128xbf16>
    %1 = vector.shape_cast %0 : vector<1x8x128xbf16> to vector<8x128xbf16>
    %c0_2 = arith.constant 0 : index
    %c0_3 = arith.constant 0 : index
    %c0_4 = arith.constant 0 : index
    %2 = vector.load %arg3[%c0_2, %c0_3, %c0_4] : memref<1x8x128xbf16, #tpu.memory_space<vmem>>, vector<1x8x128xbf16>
    %3 = vector.shape_cast %2 : vector<1x8x128xbf16> to vector<8x128xbf16>
    %c0_5 = arith.constant 0 : index
    %c0_6 = arith.constant 0 : index
    %c0_7 = arith.constant 0 : index
    %4 = vector.load %arg4[%c0_5, %c0_6, %c0_7] : memref<1x8x128xbf16, #tpu.memory_space<vmem>>, vector<1x8x128xbf16>
    %5 = vector.shape_cast %4 : vector<1x8x128xbf16> to vector<8x128xbf16>
    %c8_i32 = arith.constant 8 : i32
    %6 = arith.muli %arg1, %c8_i32 : i32
    %7 = tpu.iota {dimensions = array<i32: 0>} : vector<8x8xi32>
    %8 = vector.broadcast %6 : i32 to vector<8x8xi32>
    %9 = arith.addi %8, %7 : vector<8x8xi32>
    %10 = tpu.iota {dimensions = array<i32: 1>} : vector<8x8xi32>
    %11 = arith.cmpi sle, %10, %9 : vector<8x8xi32>
    %12 = vector.extract_strided_slice %1 {offsets = [0, 0], sizes = [8, 32], strides = [1, 1]} : vector<8x128xbf16> to vector<8x32xbf16>
    %13 = arith.extf %12 : vector<8x32xbf16> to vector<8x32xf32>
    %cst = arith.constant 0.176776692 : f32
    %14 = vector.broadcast %cst : f32 to vector<8x32xf32>
    %15 = arith.mulf %13, %14 : vector<8x32xf32>
    %16 = arith.truncf %15 : vector<8x32xf32> to vector<8x32xbf16>
    %17 = vector.extract_strided_slice %3 {offsets = [0, 0], sizes = [8, 32], strides = [1, 1]} : vector<8x128xbf16> to vector<8x32xbf16>
    %18 = vector.extract_strided_slice %5 {offsets = [0, 0], sizes = [8, 32], strides = [1, 1]} : vector<8x128xbf16> to vector<8x32xbf16>
    %cst_8 = arith.constant dense<0.000000e+00> : vector<8x8xf32>
    %19 = tpu.matmul %16, %17, %cst_8 {dimension_numbers = #tpu.dot_dimension_numbers<[1], [1], [0], [0], [0, 0, 1, 0], [], []>} : vector<8x32xbf16>, vector<8x32xbf16>, vector<8x8xf32> -> vector<8x8xf32>
    %cst_9 = arith.constant -1.000000e+30 : f32
    %20 = vector.broadcast %cst_9 : f32 to vector<8x8xf32>
    %21 = arith.select %11, %19, %20 : vector<8x8xi1>, vector<8x8xf32>
    %cst_10 = arith.constant dense<0xFF800000> : vector<8xf32>
    %22 = vector.multi_reduction <maximumf>, %21, %cst_10 [1] : vector<8x8xf32> to vector<8xf32>
    %23 = vector.shape_cast %22 : vector<8xf32> to vector<8x1xf32>
    %24 = vector.broadcast %23 : vector<8x1xf32> to vector<8x8xf32>
    %25 = arith.subf %21, %24 : vector<8x8xf32>
    %26 = math.exp %25 : vector<8x8xf32>
    %cst_11 = arith.constant dense<0.000000e+00> : vector<8xf32>
    %27 = vector.multi_reduction <add>, %26, %cst_11 [1] : vector<8x8xf32> to vector<8xf32>
    %28 = vector.shape_cast %27 : vector<8xf32> to vector<8x1xf32>
    %29 = tpu.reciprocal %28 {approx = true} : vector<8x1xf32> -> vector<8x1xf32>
    %30 = vector.broadcast %29 : vector<8x1xf32> to vector<8x8xf32>
    %31 = arith.mulf %26, %30 : vector<8x8xf32>
    %32 = arith.truncf %31 : vector<8x8xf32> to vector<8x8xbf16>
    %cst_12 = arith.constant dense<0.000000e+00> : vector<8x32xf32>
    %33 = tpu.matmul %32, %18, %cst_12 {dimension_numbers = #tpu.dot_dimension_numbers<[1], [0], [0], [1], [0, 0, 1, 1], [], []>} : vector<8x8xbf16>, vector<8x32xbf16>, vector<8x32xf32> -> vector<8x32xf32>
    %34 = arith.truncf %33 : vector<8x32xf32> to vector<8x32xbf16>
    %c0_13 = arith.constant 0 : index
    %c0_14 = arith.constant 0 : index
    %c0_15 = arith.constant 0 : index
    %35 = vector.load %arg5[%c0_13, %c0_14, %c0_15] : memref<1x8x128xbf16, #tpu.memory_space<vmem>>, vector<1x8x32xbf16>
    %36 = vector.shape_cast %35 : vector<1x8x32xbf16> to vector<8x32xbf16>
    %37 = vector.shape_cast %34 : vector<8x32xbf16> to vector<1x8x32xbf16>
    tpu.vector_store %arg5[%c0_13, %c0_14, %c0_15], %37 {strides = array<i32>} : memref<1x8x128xbf16, #tpu.memory_space<vmem>>, vector<1x8x32xbf16>,
    %38 = vector.extract_strided_slice %1 {offsets = [0, 32], sizes = [8, 32], strides = [1, 1]} : vector<8x128xbf16> to vector<8x32xbf16>
    %39 = arith.extf %38 : vector<8x32xbf16> to vector<8x32xf32>
    %cst_16 = arith.constant 0.176776692 : f32
    %40 = vector.broadcast %cst_16 : f32 to vector<8x32xf32>
    %41 = arith.mulf %39, %40 : vector<8x32xf32>
    %42 = arith.truncf %41 : vector<8x32xf32> to vector<8x32xbf16>
    %43 = vector.extract_strided_slice %3 {offsets = [0, 32], sizes = [8, 32], strides = [1, 1]} : vector<8x128xbf16> to vector<8x32xbf16>
    %44 = vector.extract_strided_slice %5 {offsets = [0, 32], sizes = [8, 32], strides = [1, 1]} : vector<8x128xbf16> to vector<8x32xbf16>
    %cst_17 = arith.constant dense<0.000000e+00> : vector<8x8xf32>
    %45 = tpu.matmul %42, %43, %cst_17 {dimension_numbers = #tpu.dot_dimension_numbers<[1], [1], [0], [0], [0, 0, 1, 0], [], []>} : vector<8x32xbf16>, vector<8x32xbf16>, vector<8x8xf32> -> vector<8x8xf32>
    %cst_18 = arith.constant -1.000000e+30 : f32
    %46 = vector.broadcast %cst_18 : f32 to vector<8x8xf32>
    %47 = arith.select %11, %45, %46 : vector<8x8xi1>, vector<8x8xf32>
    %cst_19 = arith.constant dense<0xFF800000> : vector<8xf32>
    %48 = vector.multi_reduction <maximumf>, %47, %cst_19 [1] : vector<8x8xf32> to vector<8xf32>
    %49 = vector.shape_cast %48 : vector<8xf32> to vector<8x1xf32>
    %50 = vector.broadcast %49 : vector<8x1xf32> to vector<8x8xf32>
    %51 = arith.subf %47, %50 : vector<8x8xf32>
    %52 = math.exp %51 : vector<8x8xf32>
    %cst_20 = arith.constant dense<0.000000e+00> : vector<8xf32>
    %53 = vector.multi_reduction <add>, %52, %cst_20 [1] : vector<8x8xf32> to vector<8xf32>
    %54 = vector.shape_cast %53 : vector<8xf32> to vector<8x1xf32>
    %55 = tpu.reciprocal %54 {approx = true} : vector<8x1xf32> -> vector<8x1xf32>
    %56 = vector.broadcast %55 : vector<8x1xf32> to vector<8x8xf32>
    %57 = arith.mulf %52, %56 : vector<8x8xf32>
    %58 = arith.truncf %57 : vector<8x8xf32> to vector<8x8xbf16>
    %cst_21 = arith.constant dense<0.000000e+00> : vector<8x32xf32>
    %59 = tpu.matmul %58, %44, %cst_21 {dimension_numbers = #tpu.dot_dimension_numbers<[1], [0], [0], [1], [0, 0, 1, 1], [], []>} : vector<8x8xbf16>, vector<8x32xbf16>, vector<8x32xf32> -> vector<8x32xf32>
    %60 = arith.truncf %59 : vector<8x32xf32> to vector<8x32xbf16>
    %c0_22 = arith.constant 0 : index
    %c0_23 = arith.constant 0 : index
    %c32 = arith.constant 32 : index
    %61 = vector.load %arg5[%c0_22, %c0_23, %c32] : memref<1x8x128xbf16, #tpu.memory_space<vmem>>, vector<1x8x32xbf16>
    %62 = vector.shape_cast %61 : vector<1x8x32xbf16> to vector<8x32xbf16>
    %63 = vector.shape_cast %60 : vector<8x32xbf16> to vector<1x8x32xbf16>
    tpu.vector_store %arg5[%c0_22, %c0_23, %c32], %63 {strides = array<i32>} : memref<1x8x128xbf16, #tpu.memory_space<vmem>>, vector<1x8x32xbf16>,
    %64 = vector.extract_strided_slice %1 {offsets = [0, 64], sizes = [8, 32], strides = [1, 1]} : vector<8x128xbf16> to vector<8x32xbf16>
    %65 = arith.extf %64 : vector<8x32xbf16> to vector<8x32xf32>
    %cst_24 = arith.constant 0.176776692 : f32
    %66 = vector.broadcast %cst_24 : f32 to vector<8x32xf32>
    %67 = arith.mulf %65, %66 : vector<8x32xf32>
    %68 = arith.truncf %67 : vector<8x32xf32> to vector<8x32xbf16>
    %69 = vector.extract_strided_slice %3 {offsets = [0, 64], sizes = [8, 32], strides = [1, 1]} : vector<8x128xbf16> to vector<8x32xbf16>
    %70 = vector.extract_strided_slice %5 {offsets = [0, 64], sizes = [8, 32], strides = [1, 1]} : vector<8x128xbf16> to vector<8x32xbf16>
    %cst_25 = arith.constant dense<0.000000e+00> : vector<8x8xf32>
    %71 = tpu.matmul %68, %69, %cst_25 {dimension_numbers = #tpu.dot_dimension_numbers<[1], [1], [0], [0], [0, 0, 1, 0], [], []>} : vector<8x32xbf16>, vector<8x32xbf16>, vector<8x8xf32> -> vector<8x8xf32>
    %cst_26 = arith.constant -1.000000e+30 : f32
    %72 = vector.broadcast %cst_26 : f32 to vector<8x8xf32>
    %73 = arith.select %11, %71, %72 : vector<8x8xi1>, vector<8x8xf32>
    %cst_27 = arith.constant dense<0xFF800000> : vector<8xf32>
    %74 = vector.multi_reduction <maximumf>, %73, %cst_27 [1] : vector<8x8xf32> to vector<8xf32>
    %75 = vector.shape_cast %74 : vector<8xf32> to vector<8x1xf32>
    %76 = vector.broadcast %75 : vector<8x1xf32> to vector<8x8xf32>
    %77 = arith.subf %73, %76 : vector<8x8xf32>
    %78 = math.exp %77 : vector<8x8xf32>
    %cst_28 = arith.constant dense<0.000000e+00> : vector<8xf32>
    %79 = vector.multi_reduction <add>, %78, %cst_28 [1] : vector<8x8xf32> to vector<8xf32>
    %80 = vector.shape_cast %79 : vector<8xf32> to vector<8x1xf32>
    %81 = tpu.reciprocal %80 {approx = true} : vector<8x1xf32> -> vector<8x1xf32>
    %82 = vector.broadcast %81 : vector<8x1xf32> to vector<8x8xf32>
    %83 = arith.mulf %78, %82 : vector<8x8xf32>
    %84 = arith.truncf %83 : vector<8x8xf32> to vector<8x8xbf16>
    %cst_29 = arith.constant dense<0.000000e+00> : vector<8x32xf32>
    %85 = tpu.matmul %84, %70, %cst_29 {dimension_numbers = #tpu.dot_dimension_numbers<[1], [0], [0], [1], [0, 0, 1, 1], [], []>} : vector<8x8xbf16>, vector<8x32xbf16>, vector<8x32xf32> -> vector<8x32xf32>
    %86 = arith.truncf %85 : vector<8x32xf32> to vector<8x32xbf16>
    %c0_30 = arith.constant 0 : index
    %c0_31 = arith.constant 0 : index
    %c64 = arith.constant 64 : index
    %87 = vector.load %arg5[%c0_30, %c0_31, %c64] : memref<1x8x128xbf16, #tpu.memory_space<vmem>>, vector<1x8x32xbf16>
    %88 = vector.shape_cast %87 : vector<1x8x32xbf16> to vector<8x32xbf16>
    %89 = vector.shape_cast %86 : vector<8x32xbf16> to vector<1x8x32xbf16>
    tpu.vector_store %arg5[%c0_30, %c0_31, %c64], %89 {strides = array<i32>} : memref<1x8x128xbf16, #tpu.memory_space<vmem>>, vector<1x8x32xbf16>,
    %90 = vector.extract_strided_slice %1 {offsets = [0, 96], sizes = [8, 32], strides = [1, 1]} : vector<8x128xbf16> to vector<8x32xbf16>
    %91 = arith.extf %90 : vector<8x32xbf16> to vector<8x32xf32>
    %cst_32 = arith.constant 0.176776692 : f32
    %92 = vector.broadcast %cst_32 : f32 to vector<8x32xf32>
    %93 = arith.mulf %91, %92 : vector<8x32xf32>
    %94 = arith.truncf %93 : vector<8x32xf32> to vector<8x32xbf16>
    %95 = vector.extract_strided_slice %3 {offsets = [0, 96], sizes = [8, 32], strides = [1, 1]} : vector<8x128xbf16> to vector<8x32xbf16>
    %96 = vector.extract_strided_slice %5 {offsets = [0, 96], sizes = [8, 32], strides = [1, 1]} : vector<8x128xbf16> to vector<8x32xbf16>
    %cst_33 = arith.constant dense<0.000000e+00> : vector<8x8xf32>
    %97 = tpu.matmul %94, %95, %cst_33 {dimension_numbers = #tpu.dot_dimension_numbers<[1], [1], [0], [0], [0, 0, 1, 0], [], []>} : vector<8x32xbf16>, vector<8x32xbf16>, vector<8x8xf32> -> vector<8x8xf32>
    %cst_34 = arith.constant -1.000000e+30 : f32
    %98 = vector.broadcast %cst_34 : f32 to vector<8x8xf32>
    %99 = arith.select %11, %97, %98 : vector<8x8xi1>, vector<8x8xf32>
    %cst_35 = arith.constant dense<0xFF800000> : vector<8xf32>
    %100 = vector.multi_reduction <maximumf>, %99, %cst_35 [1] : vector<8x8xf32> to vector<8xf32>
    %101 = vector.shape_cast %100 : vector<8xf32> to vector<8x1xf32>
    %102 = vector.broadcast %101 : vector<8x1xf32> to vector<8x8xf32>
    %103 = arith.subf %99, %102 : vector<8x8xf32>
    %104 = math.exp %103 : vector<8x8xf32>
    %cst_36 = arith.constant dense<0.000000e+00> : vector<8xf32>
    %105 = vector.multi_reduction <add>, %104, %cst_36 [1] : vector<8x8xf32> to vector<8xf32>
    %106 = vector.shape_cast %105 : vector<8xf32> to vector<8x1xf32>
    %107 = tpu.reciprocal %106 {approx = true} : vector<8x1xf32> -> vector<8x1xf32>
    %108 = vector.broadcast %107 : vector<8x1xf32> to vector<8x8xf32>
    %109 = arith.mulf %104, %108 : vector<8x8xf32>
    %110 = arith.truncf %109 : vector<8x8xf32> to vector<8x8xbf16>
    %cst_37 = arith.constant dense<0.000000e+00> : vector<8x32xf32>
    %111 = tpu.matmul %110, %96, %cst_37 {dimension_numbers = #tpu.dot_dimension_numbers<[1], [0], [0], [1], [0, 0, 1, 1], [], []>} : vector<8x8xbf16>, vector<8x32xbf16>, vector<8x32xf32> -> vector<8x32xf32>
    %112 = arith.truncf %111 : vector<8x32xf32> to vector<8x32xbf16>
    %c0_38 = arith.constant 0 : index
    %c0_39 = arith.constant 0 : index
    %c96 = arith.constant 96 : index
    %113 = vector.load %arg5[%c0_38, %c0_39, %c96] : memref<1x8x128xbf16, #tpu.memory_space<vmem>>, vector<1x8x32xbf16>
    %114 = vector.shape_cast %113 : vector<1x8x32xbf16> to vector<8x32xbf16>
    %115 = vector.shape_cast %112 : vector<8x32xbf16> to vector<1x8x32xbf16>
    tpu.vector_store %arg5[%c0_38, %c0_39, %c96], %115 {strides = array<i32>} : memref<1x8x128xbf16, #tpu.memory_space<vmem>>, vector<1x8x32xbf16>,
    return
  }
  func.func @transform_0(%arg0: i32, %arg1: i32) -> (i32, i32, i32) {
    %c0_i32 = arith.constant 0 : i32
    %c0_i32_0 = arith.constant 0 : i32
    return %arg0, %arg1, %c0_i32 : i32, i32, i32
  }
  func.func @transform_1(%arg0: i32, %arg1: i32) -> (i32, i32, i32) {
    %c0_i32 = arith.constant 0 : i32
    %c1_i32 = arith.constant 1 : i32
    %c0_i32_0 = arith.constant 0 : i32
    return %arg0, %c0_i32, %c1_i32 : i32, i32, i32
  }
  func.func @transform_2(%arg0: i32, %arg1: i32) -> (i32, i32, i32) {
    %c0_i32 = arith.constant 0 : i32
    %c2_i32 = arith.constant 2 : i32
    %c0_i32_0 = arith.constant 0 : i32
    return %arg0, %c0_i32, %c2_i32 : i32, i32, i32
  }
  func.func @transform_3(%arg0: i32, %arg1: i32) -> (i32, i32, i32) {
    %c0_i32 = arith.constant 0 : i32
    %c0_i32_0 = arith.constant 0 : i32
    return %arg0, %arg1, %c0_i32 : i32, i32, i32
  }
}

module attributes {stable_mosaic.version = 11 : i64} {
  func.func @_mha_kernel(%arg0: i32, %arg1: i32, %arg2: memref<1x8x128xbf16, #tpu.memory_space<vmem>>, %arg3: memref<1x8x128xbf16, #tpu.memory_space<vmem>>, %arg4: memref<1x8x128xbf16, #tpu.memory_space<vmem>>, %arg5: memref<1x8x128xbf16, #tpu.memory_space<vmem>>) attributes {dimension_semantics = [#tpu.dimension_semantics<parallel>, #tpu.dimension_semantics<parallel>], iteration_bounds = array<i64: 2, 1>, scalar_prefetch = 0 : i64, scratch_operands = 0 : i64, tpu.core_type = #tpu.core_type<tc>, window_params = [{transform_indices = @transform_0, window_bounds = array<i64: 1, 8, 128>}, {transform_indices = @transform_1, window_bounds = array<i64: 1, 8, 128>}, {transform_indices = @transform_2, window_bounds = array<i64: 1, 8, 128>}, {transform_indices = @transform_3, window_bounds = array<i64: 1, 8, 128>}]} {
    %c0 = arith.constant 0 : index
    %c0_0 = arith.constant 0 : index
    %c0_1 = arith.constant 0 : index
    %0 = vector.load %arg2[%c0, %c0_0, %c0_1] : memref<1x8x128xbf16, #tpu.memory_space<vmem>>, vector<1x8x128xbf16>
    %1 = vector.shape_cast %0 : vector<1x8x128xbf16> to vector<8x128xbf16>
    %c0_2 = arith.constant 0 : index
    %c0_3 = arith.constant 0 : index
    %c0_4 = arith.constant 0 : index
    %2 = vector.load %arg3[%c0_2, %c0_3, %c0_4] : memref<1x8x128xbf16, #tpu.memory_space<vmem>>, vector<1x8x128xbf16>
    %3 = vector.shape_cast %2 : vector<1x8x128xbf16> to vector<8x128xbf16>
    %c0_5 = arith.constant 0 : index
    %c0_6 = arith.constant 0 : index
    %c0_7 = arith.constant 0 : index
    %4 = vector.load %arg4[%c0_5, %c0_6, %c0_7] : memref<1x8x128xbf16, #tpu.memory_space<vmem>>, vector<1x8x128xbf16>
    %5 = vector.shape_cast %4 : vector<1x8x128xbf16> to vector<8x128xbf16>
    %6 = vector.extract_strided_slice %1 {offsets = [0, 0], sizes = [8, 32], strides = [1, 1]} : vector<8x128xbf16> to vector<8x32xbf16>
    %7 = arith.extf %6 : vector<8x32xbf16> to vector<8x32xf32>
    %cst = arith.constant 0.176776692 : f32
    %8 = vector.broadcast %cst : f32 to vector<8x32xf32>
    %9 = arith.mulf %7, %8 : vector<8x32xf32>
    %10 = arith.truncf %9 : vector<8x32xf32> to vector<8x32xbf16>
    %11 = vector.extract_strided_slice %3 {offsets = [0, 0], sizes = [8, 32], strides = [1, 1]} : vector<8x128xbf16> to vector<8x32xbf16>
    %12 = vector.extract_strided_slice %5 {offsets = [0, 0], sizes = [8, 32], strides = [1, 1]} : vector<8x128xbf16> to vector<8x32xbf16>
    %cst_8 = arith.constant dense<0.000000e+00> : vector<8x8xf32>
    %13 = tpu.matmul %10, %11, %cst_8 {dimension_numbers = #tpu.dot_dimension_numbers<[1], [1], [0], [0], [0, 0, 1, 0], [], []>} : vector<8x32xbf16>, vector<8x32xbf16>, vector<8x8xf32> -> vector<8x8xf32>
    %cst_9 = arith.constant dense<0xFF800000> : vector<8xf32>
    %14 = vector.multi_reduction <maximumf>, %13, %cst_9 [1] : vector<8x8xf32> to vector<8xf32>
    %15 = vector.shape_cast %14 : vector<8xf32> to vector<8x1xf32>
    %16 = vector.broadcast %15 : vector<8x1xf32> to vector<8x8xf32>
    %17 = arith.subf %13, %16 : vector<8x8xf32>
    %18 = math.exp %17 : vector<8x8xf32>
    %cst_10 = arith.constant dense<0.000000e+00> : vector<8xf32>
    %19 = vector.multi_reduction <add>, %18, %cst_10 [1] : vector<8x8xf32> to vector<8xf32>
    %20 = vector.shape_cast %19 : vector<8xf32> to vector<8x1xf32>
    %21 = tpu.reciprocal %20 {approx = true} : vector<8x1xf32> -> vector<8x1xf32>
    %22 = vector.broadcast %21 : vector<8x1xf32> to vector<8x8xf32>
    %23 = arith.mulf %18, %22 : vector<8x8xf32>
    %24 = arith.truncf %23 : vector<8x8xf32> to vector<8x8xbf16>
    %cst_11 = arith.constant dense<0.000000e+00> : vector<8x32xf32>
    %25 = tpu.matmul %24, %12, %cst_11 {dimension_numbers = #tpu.dot_dimension_numbers<[1], [0], [0], [1], [0, 0, 1, 1], [], []>} : vector<8x8xbf16>, vector<8x32xbf16>, vector<8x32xf32> -> vector<8x32xf32>
    %26 = arith.truncf %25 : vector<8x32xf32> to vector<8x32xbf16>
    %c0_12 = arith.constant 0 : index
    %c0_13 = arith.constant 0 : index
    %c0_14 = arith.constant 0 : index
    %27 = vector.load %arg5[%c0_12, %c0_13, %c0_14] : memref<1x8x128xbf16, #tpu.memory_space<vmem>>, vector<1x8x32xbf16>
    %28 = vector.shape_cast %27 : vector<1x8x32xbf16> to vector<8x32xbf16>
    %29 = vector.shape_cast %26 : vector<8x32xbf16> to vector<1x8x32xbf16>
    tpu.vector_store %arg5[%c0_12, %c0_13, %c0_14], %29 {strides = array<i32>} : memref<1x8x128xbf16, #tpu.memory_space<vmem>>, vector<1x8x32xbf16>,
    %30 = vector.extract_strided_slice %1 {offsets = [0, 32], sizes = [8, 32], strides = [1, 1]} : vector<8x128xbf16> to vector<8x32xbf16>
    %31 = arith.extf %30 : vector<8x32xbf16> to vector<8x32xf32>
    %cst_15 = arith.constant 0.176776692 : f32
    %32 = vector.broadcast %cst_15 : f32 to vector<8x32xf32>
    %33 = arith.mulf %31, %32 : vector<8x32xf32>
    %34 = arith.truncf %33 : vector<8x32xf32> to vector<8x32xbf16>
    %35 = vector.extract_strided_slice %3 {offsets = [0, 32], sizes = [8, 32], strides = [1, 1]} : vector<8x128xbf16> to vector<8x32xbf16>
    %36 = vector.extract_strided_slice %5 {offsets = [0, 32], sizes = [8, 32], strides = [1, 1]} : vector<8x128xbf16> to vector<8x32xbf16>
    %cst_16 = arith.constant dense<0.000000e+00> : vector<8x8xf32>
    %37 = tpu.matmul %34, %35, %cst_16 {dimension_numbers = #tpu.dot_dimension_numbers<[1], [1], [0], [0], [0, 0, 1, 0], [], []>} : vector<8x32xbf16>, vector<8x32xbf16>, vector<8x8xf32> -> vector<8x8xf32>
    %cst_17 = arith.constant dense<0xFF800000> : vector<8xf32>
    %38 = vector.multi_reduction <maximumf>, %37, %cst_17 [1] : vector<8x8xf32> to vector<8xf32>
    %39 = vector.shape_cast %38 : vector<8xf32> to vector<8x1xf32>
    %40 = vector.broadcast %39 : vector<8x1xf32> to vector<8x8xf32>
    %41 = arith.subf %37, %40 : vector<8x8xf32>
    %42 = math.exp %41 : vector<8x8xf32>
    %cst_18 = arith.constant dense<0.000000e+00> : vector<8xf32>
    %43 = vector.multi_reduction <add>, %42, %cst_18 [1] : vector<8x8xf32> to vector<8xf32>
    %44 = vector.shape_cast %43 : vector<8xf32> to vector<8x1xf32>
    %45 = tpu.reciprocal %44 {approx = true} : vector<8x1xf32> -> vector<8x1xf32>
    %46 = vector.broadcast %45 : vector<8x1xf32> to vector<8x8xf32>
    %47 = arith.mulf %42, %46 : vector<8x8xf32>
    %48 = arith.truncf %47 : vector<8x8xf32> to vector<8x8xbf16>
    %cst_19 = arith.constant dense<0.000000e+00> : vector<8x32xf32>
    %49 = tpu.matmul %48, %36, %cst_19 {dimension_numbers = #tpu.dot_dimension_numbers<[1], [0], [0], [1], [0, 0, 1, 1], [], []>} : vector<8x8xbf16>, vector<8x32xbf16>, vector<8x32xf32> -> vector<8x32xf32>
    %50 = arith.truncf %49 : vector<8x32xf32> to vector<8x32xbf16>
    %c0_20 = arith.constant 0 : index
    %c0_21 = arith.constant 0 : index
    %c32 = arith.constant 32 : index
    %51 = vector.load %arg5[%c0_20, %c0_21, %c32] : memref<1x8x128xbf16, #tpu.memory_space<vmem>>, vector<1x8x32xbf16>
    %52 = vector.shape_cast %51 : vector<1x8x32xbf16> to vector<8x32xbf16>
    %53 = vector.shape_cast %50 : vector<8x32xbf16> to vector<1x8x32xbf16>
    tpu.vector_store %arg5[%c0_20, %c0_21, %c32], %53 {strides = array<i32>} : memref<1x8x128xbf16, #tpu.memory_space<vmem>>, vector<1x8x32xbf16>,
    %54 = vector.extract_strided_slice %1 {offsets = [0, 64], sizes = [8, 32], strides = [1, 1]} : vector<8x128xbf16> to vector<8x32xbf16>
    %55 = arith.extf %54 : vector<8x32xbf16> to vector<8x32xf32>
    %cst_22 = arith.constant 0.176776692 : f32
    %56 = vector.broadcast %cst_22 : f32 to vector<8x32xf32>
    %57 = arith.mulf %55, %56 : vector<8x32xf32>
    %58 = arith.truncf %57 : vector<8x32xf32> to vector<8x32xbf16>
    %59 = vector.extract_strided_slice %3 {offsets = [0, 64], sizes = [8, 32], strides = [1, 1]} : vector<8x128xbf16> to vector<8x32xbf16>
    %60 = vector.extract_strided_slice %5 {offsets = [0, 64], sizes = [8, 32], strides = [1, 1]} : vector<8x128xbf16> to vector<8x32xbf16>
    %cst_23 = arith.constant dense<0.000000e+00> : vector<8x8xf32>
    %61 = tpu.matmul %58, %59, %cst_23 {dimension_numbers = #tpu.dot_dimension_numbers<[1], [1], [0], [0], [0, 0, 1, 0], [], []>} : vector<8x32xbf16>, vector<8x32xbf16>, vector<8x8xf32> -> vector<8x8xf32>
    %cst_24 = arith.constant dense<0xFF800000> : vector<8xf32>
    %62 = vector.multi_reduction <maximumf>, %61, %cst_24 [1] : vector<8x8xf32> to vector<8xf32>
    %63 = vector.shape_cast %62 : vector<8xf32> to vector<8x1xf32>
    %64 = vector.broadcast %63 : vector<8x1xf32> to vector<8x8xf32>
    %65 = arith.subf %61, %64 : vector<8x8xf32>
    %66 = math.exp %65 : vector<8x8xf32>
    %cst_25 = arith.constant dense<0.000000e+00> : vector<8xf32>
    %67 = vector.multi_reduction <add>, %66, %cst_25 [1] : vector<8x8xf32> to vector<8xf32>
    %68 = vector.shape_cast %67 : vector<8xf32> to vector<8x1xf32>
    %69 = tpu.reciprocal %68 {approx = true} : vector<8x1xf32> -> vector<8x1xf32>
    %70 = vector.broadcast %69 : vector<8x1xf32> to vector<8x8xf32>
    %71 = arith.mulf %66, %70 : vector<8x8xf32>
    %72 = arith.truncf %71 : vector<8x8xf32> to vector<8x8xbf16>
    %cst_26 = arith.constant dense<0.000000e+00> : vector<8x32xf32>
    %73 = tpu.matmul %72, %60, %cst_26 {dimension_numbers = #tpu.dot_dimension_numbers<[1], [0], [0], [1], [0, 0, 1, 1], [], []>} : vector<8x8xbf16>, vector<8x32xbf16>, vector<8x32xf32> -> vector<8x32xf32>
    %74 = arith.truncf %73 : vector<8x32xf32> to vector<8x32xbf16>
    %c0_27 = arith.constant 0 : index
    %c0_28 = arith.constant 0 : index
    %c64 = arith.constant 64 : index
    %75 = vector.load %arg5[%c0_27, %c0_28, %c64] : memref<1x8x128xbf16, #tpu.memory_space<vmem>>, vector<1x8x32xbf16>
    %76 = vector.shape_cast %75 : vector<1x8x32xbf16> to vector<8x32xbf16>
    %77 = vector.shape_cast %74 : vector<8x32xbf16> to vector<1x8x32xbf16>
    tpu.vector_store %arg5[%c0_27, %c0_28, %c64], %77 {strides = array<i32>} : memref<1x8x128xbf16, #tpu.memory_space<vmem>>, vector<1x8x32xbf16>,
    %78 = vector.extract_strided_slice %1 {offsets = [0, 96], sizes = [8, 32], strides = [1, 1]} : vector<8x128xbf16> to vector<8x32xbf16>
    %79 = arith.extf %78 : vector<8x32xbf16> to vector<8x32xf32>
    %cst_29 = arith.constant 0.176776692 : f32
    %80 = vector.broadcast %cst_29 : f32 to vector<8x32xf32>
    %81 = arith.mulf %79, %80 : vector<8x32xf32>
    %82 = arith.truncf %81 : vector<8x32xf32> to vector<8x32xbf16>
    %83 = vector.extract_strided_slice %3 {offsets = [0, 96], sizes = [8, 32], strides = [1, 1]} : vector<8x128xbf16> to vector<8x32xbf16>
    %84 = vector.extract_strided_slice %5 {offsets = [0, 96], sizes = [8, 32], strides = [1, 1]} : vector<8x128xbf16> to vector<8x32xbf16>
    %cst_30 = arith.constant dense<0.000000e+00> : vector<8x8xf32>
    %85 = tpu.matmul %82, %83, %cst_30 {dimension_numbers = #tpu.dot_dimension_numbers<[1], [1], [0], [0], [0, 0, 1, 0], [], []>} : vector<8x32xbf16>, vector<8x32xbf16>, vector<8x8xf32> -> vector<8x8xf32>
    %cst_31 = arith.constant dense<0xFF800000> : vector<8xf32>
    %86 = vector.multi_reduction <maximumf>, %85, %cst_31 [1] : vector<8x8xf32> to vector<8xf32>
    %87 = vector.shape_cast %86 : vector<8xf32> to vector<8x1xf32>
    %88 = vector.broadcast %87 : vector<8x1xf32> to vector<8x8xf32>
    %89 = arith.subf %85, %88 : vector<8x8xf32>
    %90 = math.exp %89 : vector<8x8xf32>
    %cst_32 = arith.constant dense<0.000000e+00> : vector<8xf32>
    %91 = vector.multi_reduction <add>, %90, %cst_32 [1] : vector<8x8xf32> to vector<8xf32>
    %92 = vector.shape_cast %91 : vector<8xf32> to vector<8x1xf32>
    %93 = tpu.reciprocal %92 {approx = true} : vector<8x1xf32> -> vector<8x1xf32>
    %94 = vector.broadcast %93 : vector<8x1xf32> to vector<8x8xf32>
    %95 = arith.mulf %90, %94 : vector<8x8xf32>
    %96 = arith.truncf %95 : vector<8x8xf32> to vector<8x8xbf16>
    %cst_33 = arith.constant dense<0.000000e+00> : vector<8x32xf32>
    %97 = tpu.matmul %96, %84, %cst_33 {dimension_numbers = #tpu.dot_dimension_numbers<[1], [0], [0], [1], [0, 0, 1, 1], [], []>} : vector<8x8xbf16>, vector<8x32xbf16>, vector<8x32xf32> -> vector<8x32xf32>
    %98 = arith.truncf %97 : vector<8x32xf32> to vector<8x32xbf16>
    %c0_34 = arith.constant 0 : index
    %c0_35 = arith.constant 0 : index
    %c96 = arith.constant 96 : index
    %99 = vector.load %arg5[%c0_34, %c0_35, %c96] : memref<1x8x128xbf16, #tpu.memory_space<vmem>>, vector<1x8x32xbf16>
    %100 = vector.shape_cast %99 : vector<1x8x32xbf16> to vector<8x32xbf16>
    %101 = vector.shape_cast %98 : vector<8x32xbf16> to vector<1x8x32xbf16>
    tpu.vector_store %arg5[%c0_34, %c0_35, %c96], %101 {strides = array<i32>} : memref<1x8x128xbf16, #tpu.memory_space<vmem>>, vector<1x8x32xbf16>,
    return
  }
  func.func @transform_0(%arg0: i32, %arg1: i32) -> (i32, i32, i32) {
    %c0_i32 = arith.constant 0 : i32
    %c0_i32_0 = arith.constant 0 : i32
    return %arg0, %arg1, %c0_i32 : i32, i32, i32
  }
  func.func @transform_1(%arg0: i32, %arg1: i32) -> (i32, i32, i32) {
    %c0_i32 = arith.constant 0 : i32
    %c0_i32_0 = arith.constant 0 : i32
    %c0_i32_1 = arith.constant 0 : i32
    return %arg0, %c0_i32, %c0_i32_0 : i32, i32, i32
  }
  func.func @transform_2(%arg0: i32, %arg1: i32) -> (i32, i32, i32) {
    %c0_i32 = arith.constant 0 : i32
    %c1_i32 = arith.constant 1 : i32
    %c0_i32_0 = arith.constant 0 : i32
    return %arg0, %c0_i32, %c1_i32 : i32, i32, i32
  }
  func.func @transform_3(%arg0: i32, %arg1: i32) -> (i32, i32, i32) {
    %c0_i32 = arith.constant 0 : i32
    %c0_i32_0 = arith.constant 0 : i32
    return %arg0, %arg1, %c0_i32 : i32, i32, i32
  }
}

module attributes {stable_mosaic.version = 11 : i64} {
  func.func @_linear_kernel(%arg0: i32, %arg1: i32, %arg2: i32, %arg3: memref<16x128xbf16, #tpu.memory_space<vmem>>, %arg4: memref<128x512xbf16, #tpu.memory_space<vmem>>, %arg5: memref<16x512xf32, #tpu.memory_space<vmem>>, %arg6: memref<16x512xf32, #tpu.memory_space<vmem>>) attributes {dimension_semantics = [#tpu.dimension_semantics<parallel>, #tpu.dimension_semantics<parallel>, #tpu.dimension_semantics<arbitrary>], iteration_bounds = array<i64: 1, 2, 1>, scalar_prefetch = 0 : i64, scratch_operands = 1 : i64, tpu.core_type = #tpu.core_type<tc>, window_params = [{transform_indices = @transform_0, window_bounds = array<i64: 16, 128>}, {transform_indices = @transform_1, window_bounds = array<i64: 128, 512>}, {transform_indices = @transform_2, window_bounds = array<i64: 16, 512>}]} {
    %c0_i32 = arith.constant 0 : i32
    %0 = arith.cmpi eq, %arg2, %c0_i32 : i32
    %1 = arith.extui %0 : i1 to i32
    %c0_i32_0 = arith.constant 0 : i32
    %2 = arith.cmpi ne, %1, %c0_i32_0 : i32
    scf.if %2 {
      %cst_10 = arith.constant 0.000000e+00 : f32
      %12 = vector.broadcast %cst_10 : f32 to vector<16x512xf32>
      %c0_11 = arith.constant 0 : index
      %c0_12 = arith.constant 0 : index
      %13 = vector.load %arg6[%c0_11, %c0_12] : memref<16x512xf32, #tpu.memory_space<vmem>>, vector<16x512xf32>
      tpu.vector_store %arg6[%c0_11, %c0_12], %12 {strides = array<i32>} : memref<16x512xf32, #tpu.memory_space<vmem>>, vector<16x512xf32>,
    } else {
    }
    %c0 = arith.constant 0 : index
    %c0_1 = arith.constant 0 : index
    %3 = vector.load %arg6[%c0, %c0_1] : memref<16x512xf32, #tpu.memory_space<vmem>>, vector<16x512xf32>
    %c0_2 = arith.constant 0 : index
    %c0_3 = arith.constant 0 : index
    %4 = vector.load %arg3[%c0_2, %c0_3] : memref<16x128xbf16, #tpu.memory_space<vmem>>, vector<16x128xbf16>
    %c0_4 = arith.constant 0 : index
    %c0_5 = arith.constant 0 : index
    %5 = vector.load %arg4[%c0_4, %c0_5] : memref<128x512xbf16, #tpu.memory_space<vmem>>, vector<128x512xbf16>
    %cst = arith.constant dense<0.000000e+00> : vector<16x512xf32>
    %6 = tpu.matmul %4, %5, %cst {dimension_numbers = #tpu.dot_dimension_numbers<[1], [0], [0], [1], [0, 0, 1, 1], [], []>} : vector<16x128xbf16>, vector<128x512xbf16>, vector<16x512xf32> -> vector<16x512xf32>
    %7 = arith.addf %3, %6 : vector<16x512xf32>
    %c0_6 = arith.constant 0 : index
    %c0_7 = arith.constant 0 : index
    %8 = vector.load %arg6[%c0_6, %c0_7] : memref<16x512xf32, #tpu.memory_space<vmem>>, vector<16x512xf32>
    tpu.vector_store %arg6[%c0_6, %c0_7], %7 {strides = array<i32>} : memref<16x512xf32, #tpu.memory_space<vmem>>, vector<16x512xf32>,
    %c0_i32_8 = arith.constant 0 : i32
    %9 = arith.cmpi eq, %arg2, %c0_i32_8 : i32
    %10 = arith.extui %9 : i1 to i32
    %c0_i32_9 = arith.constant 0 : i32
    %11 = arith.cmpi ne, %10, %c0_i32_9 : i32
    scf.if %11 {
      %c0_10 = arith.constant 0 : index
      %c0_11 = arith.constant 0 : index
      %12 = vector.load %arg6[%c0_10, %c0_11] : memref<16x512xf32, #tpu.memory_space<vmem>>, vector<16x512xf32>
      %c0_12 = arith.constant 0 : index
      %c0_13 = arith.constant 0 : index
      %13 = vector.load %arg5[%c0_12, %c0_13] : memref<16x512xf32, #tpu.memory_space<vmem>>, vector<16x512xf32>
      tpu.vector_store %arg5[%c0_12, %c0_13], %12 {strides = array<i32>} : memref<16x512xf32, #tpu.memory_space<vmem>>, vector<16x512xf32>,
    } else {
    }
    return
  }
  func.func @transform_0(%arg0: i32, %arg1: i32, %arg2: i32) -> (i32, i32) {
    %c0_i32 = arith.constant 0 : i32
    return %arg0, %arg2 : i32, i32
  }
  func.func @transform_1(%arg0: i32, %arg1: i32, %arg2: i32) -> (i32, i32) {
    %c0_i32 = arith.constant 0 : i32
    return %arg2, %arg1 : i32, i32
  }
  func.func @transform_2(%arg0: i32, %arg1: i32, %arg2: i32) -> (i32, i32) {
    %c0_i32 = arith.constant 0 : i32
    return %arg0, %arg1 : i32, i32
  }
}

</mosaic_0001>

<llo_original>
// kernel: transformer_forward.26
$region0: #{transformer_forward.26}
  #allocation0 [shape = 'u32[]', space=smem, size = 0x4, offset = 0x4, fixed_abs, tag = 'smem constant byte address 0x4 - core index']
  #allocation1 [shape = 'u32[144,128]{1,0:T(1,128)}', space=vmem, size = 0x12000, scoped, tag = 'internal scratch']
  %s0 = inlined_call_operand.vmem [shape: bf16[2,8,384], index: 0, kind: input, shape index: {}, may-alias: {0,1,2}]
  %s1 = inlined_call_operand.vmem [shape: bf16[2,8,384], index: 1, kind: input, shape index: {}, may-alias: {0,1,2}]
  %s2 = inlined_call_operand.vmem [shape: bf16[2,8,384], index: 2, kind: input, shape index: {}, may-alias: {0,1,2}]
  %s3 = inlined_call_operand.vmem [shape: bf16[2,8,128], index: 3, kind: output, shape index: {}]
  %s4 = sld [smem:[#allocation0]]
  $region45: #{transformer_forward.26} parent=0
    _
  %s6 = ssub.s32 1, %s4
  %s7 = scalar_select 0, %s6, %s4
  loop: start=0, step=1, limit=4
  $region2: #{transformer_forward.26} parent=0 // loop_pre_header
    _
  $region3: #{transformer_forward.26} parent=0 // loop_header
    %s9 = sphi 0, %s13
    %p10 = scmp.ge.s32.totalorder %s9, 4
    %s16 = sphi 0, %s28
    %s17 = sphi 0, %s24
    %s18 = sphi 0, %s16
    %s19 = sphi 0, %s17
    %s20 = sphi 0, %s18
    %s21 = sphi 0, %s19
    %s33 = sphi 0, %s35
    %s36 = sphi 0, %s33
    %s37 = sphi 0, %s36
    %s53 = sphi 0, %s37
    %s59 = sphi 0, %s61
    %s62 = sphi 0, %s59
    %s63 = sphi 0, %s62
    %s79 = sphi 0, %s63
    %s85 = sphi 0, %s87
    %s88 = sphi 0, %s85
    %s89 = sphi 0, %s88
    %s105 = sphi 0, %s89
    %s113 = sphi 0, %s115
    %s116 = sphi 0, %s113
    %s117 = sphi 0, %s116
    %s133 = sphi 0, %s117
  $region4: #{transformer_forward.26} parent=0 // loop_header_branch
    %12 = sbr.rel (%p10) target = $region8
  $region5: #{transformer_forward.26} parent=0 // loop_body
    %s14 = ssub.s32 %s9, 1
    %s15 = ssub.s32 %s9, 2
    %s22 = sadd.s32 1, %s17
    %p23 = scmp.ge.s32.totalorder %s22, 1
    %s24 = scalar_select %p23, 0, %s22
    %s25 = sadd.s32 1, %s16
    %s26 = scalar_select %p23, %s25, %s16
    %p27 = scmp.ge.s32.totalorder %s26, 2
    %s28 = scalar_select %p27, 0, %s26
    %s29 = ssub.s32 %s16, %s28
    %s30 = ssub.s32 %s17, %s24
    %s31 = sor.u32 %s29, %s30
    %p32 = scmp.eq.s32.totalorder %s31, 0
    %s34 = sadd.s32 %s33, 1
    %s35 = scalar_select %p32, %s33, %s34
    %p38 = pneg %p32
    %p39 = scmp.eq.s32.totalorder %s9, 1
    %p40 = por %p38, %p39
    %p41 = scmp.ne.s32.totalorder %s33, %s36
    %p42 = scmp.eq.s32.totalorder %s9, 0
    %p43 = por %p41, %p42
    %p44 = scmp.ne.s32.totalorder %s33, %s36
    %p45 = scmp.eq.s32.totalorder %s14, 1
    %p46 = por %p44, %p45
    %p47 = scmp.ne.s32.totalorder %s36, %s37
    %p48 = scmp.eq.s32.totalorder %s14, 0
    %p49 = por %p47, %p48
    %p50 = scmp.ne.s32.totalorder %s36, %s37
    %p51 = scmp.eq.s32.totalorder %s15, 1
    %p52 = por %p50, %p51
    %p54 = scmp.ne.s32.totalorder %s37, %s53
    %p55 = scmp.eq.s32.totalorder %s15, 0
    %p56 = por %p54, %p55
    %s57 = ssub.s32 %s16, %s28
    %p58 = scmp.eq.s32.totalorder %s57, 0
    %s60 = sadd.s32 %s59, 1
    %s61 = scalar_select %p58, %s59, %s60
    %p64 = pneg %p58
    %p65 = scmp.eq.s32.totalorder %s9, 1
    %p66 = por %p64, %p65
    %p67 = scmp.ne.s32.totalorder %s59, %s62
    %p68 = scmp.eq.s32.totalorder %s9, 0
    %p69 = por %p67, %p68
    %p70 = scmp.ne.s32.totalorder %s59, %s62
    %p71 = scmp.eq.s32.totalorder %s14, 1
    %p72 = por %p70, %p71
    %p73 = scmp.ne.s32.totalorder %s62, %s63
    %p74 = scmp.eq.s32.totalorder %s14, 0
    %p75 = por %p73, %p74
    %p76 = scmp.ne.s32.totalorder %s62, %s63
    %p77 = scmp.eq.s32.totalorder %s15, 1
    %p78 = por %p76, %p77
    %p80 = scmp.ne.s32.totalorder %s63, %s79
    %p81 = scmp.eq.s32.totalorder %s15, 0
    %p82 = por %p80, %p81
    %s83 = ssub.s32 %s16, %s28
    %p84 = scmp.eq.s32.totalorder %s83, 0
    %s86 = sadd.s32 %s85, 1
    %s87 = scalar_select %p84, %s85, %s86
    %p90 = pneg %p84
    %p91 = scmp.eq.s32.totalorder %s9, 1
    %p92 = por %p90, %p91
    %p93 = scmp.ne.s32.totalorder %s85, %s88
    %p94 = scmp.eq.s32.totalorder %s9, 0
    %p95 = por %p93, %p94
    %p96 = scmp.ne.s32.totalorder %s85, %s88
    %p97 = scmp.eq.s32.totalorder %s14, 1
    %p98 = por %p96, %p97
    %p99 = scmp.ne.s32.totalorder %s88, %s89
    %p100 = scmp.eq.s32.totalorder %s14, 0
    %p101 = por %p99, %p100
    %p102 = scmp.ne.s32.totalorder %s88, %s89
    %p103 = scmp.eq.s32.totalorder %s15, 1
    %p104 = por %p102, %p103
    %p106 = scmp.ne.s32.totalorder %s89, %s105
    %p107 = scmp.eq.s32.totalorder %s15, 0
    %p108 = por %p106, %p107
    %s109 = ssub.s32 %s16, %s28
    %s110 = ssub.s32 %s17, %s24
    %s111 = sor.u32 %s109, %s110
    %p112 = scmp.eq.s32.totalorder %s111, 0
    %s114 = sadd.s32 %s113, 1
    %s115 = scalar_select %p112, %s113, %s114
    %p118 = pneg %p112
    %p119 = scmp.eq.s32.totalorder %s9, 1
    %p120 = por %p118, %p119
    %p121 = scmp.ne.s32.totalorder %s113, %s116
    %p122 = scmp.eq.s32.totalorder %s9, 0
    %p123 = por %p121, %p122
    %p124 = scmp.ne.s32.totalorder %s113, %s116
    %p125 = scmp.eq.s32.totalorder %s14, 1
    %p126 = por %p124, %p125
    %p127 = scmp.ne.s32.totalorder %s116, %s117
    %p128 = scmp.eq.s32.totalorder %s14, 0
    %p129 = por %p127, %p128
    %p130 = scmp.ne.s32.totalorder %s116, %s117
    %p131 = scmp.eq.s32.totalorder %s15, 1
    %p132 = por %p130, %p131
    %p134 = scmp.ne.s32.totalorder %s117, %s133
    %p135 = scmp.eq.s32.totalorder %s15, 0
    %p136 = por %p134, %p135
    %p137 = scmp.le.s32.totalorder 1, %s9
    %p138 = scmp.lt.s32.totalorder %s9, 3
    %p139 = pnand %p137, %p138
    %p140 = pneg %p139
    // Predicated region
    $region9: #{transformer_forward.26} parent=5 // pred_check
      _
    $region10: #{transformer_forward.26} parent=5 // pred_check_branch
      %142 = sbr.rel (%p139) target = $region12
    $region11: #{transformer_forward.26} parent=5 // pred_region
      %s143 = ssub.s32 %s9, 1
    $region12: #{transformer_forward.26} parent=5 // pred_fallthru
      _
    %p144 = scmp.lt.s32.totalorder %s9, 2
    // Predicated region
    $region13: #{transformer_forward.26} parent=5 // pred_check
      %p145 = pneg %p144
    $region14: #{transformer_forward.26} parent=5 // pred_check_branch
      %147 = sbr.rel (%p145) target = $region16
    $region15: #{transformer_forward.26} parent=5 // pred_region
      // Predicated region
      $region17: #{transformer_forward.26} parent=15 // pred_check
        %p148 = pneg %p43
      $region18: #{transformer_forward.26} parent=15 // pred_check_branch
        %150 = sbr.rel (%p148) target = $region20
      $region19: #{transformer_forward.26} parent=15 // pred_region
        %p151 = scmp.lt.s32.totalorder %s16, 1
        %s152 = scalar_select %p151, %s16, 1
        %p153 = scmp.lt.s32.totalorder %s17, 0
        %s154 = scalar_select %p153, %s17, 0
        %s155 = smul.addr %s154, 3
        %s156 = smul.addr %s152, 3
        %s157 = sadd.s32 %s155, %s156
        %s158 = smul.addr %s157, 4
        %s159 = scalar_lea.vmem %s0, %s158
      $region20: #{transformer_forward.26} parent=15 // pred_fallthru
        _
      // Predicated region
      $region21: #{transformer_forward.26} parent=15 // pred_check
        %p160 = pneg %p69
      $region22: #{transformer_forward.26} parent=15 // pred_check_branch
        %162 = sbr.rel (%p160) target = $region24
      $region23: #{transformer_forward.26} parent=15 // pred_region
        %p163 = scmp.lt.s32.totalorder %s16, 1
        %s164 = scalar_select %p163, %s16, 1
        %s165 = smul.addr %s164, 3
        %s166 = sadd.s32 1, %s165
        %s167 = smul.addr %s166, 4
        %s168 = scalar_lea.vmem %s1, %s167
      $region24: #{transformer_forward.26} parent=15 // pred_fallthru
        _
      // Predicated region
      $region25: #{transformer_forward.26} parent=15 // pred_check
        %p169 = pneg %p95
      $region26: #{transformer_forward.26} parent=15 // pred_check_branch
        %171 = sbr.rel (%p169) target = $region28
      $region27: #{transformer_forward.26} parent=15 // pred_region
        %p172 = scmp.lt.s32.totalorder %s16, 1
        %s173 = scalar_select %p172, %s16, 1
        %s174 = smul.addr %s173, 3
        %s175 = sadd.s32 2, %s174
        %s176 = smul.addr %s175, 4
        %s177 = scalar_lea.vmem %s2, %s176
      $region28: #{transformer_forward.26} parent=15 // pred_fallthru
        _
    $region16: #{transformer_forward.26} parent=5 // pred_fallthru
      _
    %p178 = scmp.le.s32.totalorder 1, %s9
    %p179 = scmp.lt.s32.totalorder %s9, 3
    %p180 = pnand %p178, %p179
    %p181 = pneg %p180
    // Predicated region
    $region29: #{transformer_forward.26} parent=5 // pred_check
      _
    $region30: #{transformer_forward.26} parent=5 // pred_check_branch
      %183 = sbr.rel (%p180) target = $region32
    $region31: #{transformer_forward.26} parent=5 // pred_region
      %s184 = ssub.s32 %s9, 1
      %p185 = scmp.lt.s32.totalorder %s18, 1
      %s186 = scalar_select %p185, %s18, 1
      %p187 = scmp.lt.s32.totalorder %s19, 0
      %s188 = scalar_select %p187, %s19, 0
      %s189 = smul.addr %s188, 3
      %s190 = smul.addr %s186, 3
      %s191 = sadd.s32 %s189, %s190
      %s192 = smul.addr %s191, 4
      %s193 = scalar_lea.vmem %s0, %s192
      %p194 = pneg %p49
      %p195 = pneg %p46
      %p196 = scmp.lt.s32.totalorder %s18, 1
      %s197 = scalar_select %p196, %s18, 1
      %s198 = smul.addr %s197, 3
      %s199 = sadd.s32 1, %s198
      %s200 = smul.addr %s199, 4
      %s201 = scalar_lea.vmem %s1, %s200
      %p202 = pneg %p75
      %p203 = pneg %p72
      %p204 = scmp.lt.s32.totalorder %s18, 1
      %s205 = scalar_select %p204, %s18, 1
      %s206 = smul.addr %s205, 3
      %s207 = sadd.s32 2, %s206
      %s208 = smul.addr %s207, 4
      %s209 = scalar_lea.vmem %s2, %s208
      %p210 = pneg %p101
      %p211 = pneg %p98
      %p212 = pneg %p129
      %p213 = pneg %p126
      %p214 = scmp.lt.s32.totalorder %s18, 1
      %s215 = scalar_select %p214, %s18, 1
      %p216 = scmp.lt.s32.totalorder %s19, 0
      %s217 = scalar_select %p216, %s19, 0
      %s218 = sadd.s32 %s217, %s215
      %s219 = smul.addr %s218, 4
      %s220 = scalar_lea.vmem %s3, %s219
      %p221 = scmp.lt.s32.totalorder %s18, 1
      %s222 = scalar_select %p221, %s18, 1
      %p223 = scmp.lt.s32.totalorder %s19, 0
      %s224 = scalar_select %p223, %s19, 0
      %s225 = smul.addr %s224, 3
      %s226 = smul.addr %s222, 3
      %s227 = sadd.s32 %s225, %s226
      %s228 = smul.addr %s227, 4
      %s229 = scalar_lea.vmem %s0, %s228
      %p230 = scmp.lt.s32.totalorder %s18, 1
      %s231 = scalar_select %p230, %s18, 1
      %s232 = smul.addr %s231, 3
      %s233 = sadd.s32 1, %s232
      %s234 = smul.addr %s233, 4
      %s235 = scalar_lea.vmem %s1, %s234
      %p236 = scmp.lt.s32.totalorder %s18, 1
      %s237 = scalar_select %p236, %s18, 1
      %s238 = smul.addr %s237, 3
      %s239 = sadd.s32 2, %s238
      %s240 = smul.addr %s239, 4
      %s241 = scalar_lea.vmem %s2, %s240
      %p242 = scmp.lt.s32.totalorder %s18, 1
      %s243 = scalar_select %p242, %s18, 1
      %p244 = scmp.lt.s32.totalorder %s19, 0
      %s245 = scalar_select %p244, %s19, 0
      %s246 = sadd.s32 %s245, %s243
      %s247 = smul.addr %s246, 4
      %s248 = scalar_lea.vmem %s3, %s247
      %v250 = vld [vmem:[%s229] sm:$0xf]
      %v251 = vld [vmem:[%s235] sm:$0xf]
      %v252 = vld [vmem:[%s241] sm:$0xf]
      %v253 = vunpack.c.l.bf16 %v250
      %v254 = vmul.f32 %v253, 0.17677669
      %v255 = vpack.c.bf16 %v254, %v254
      %vm256 = vcmask 261120
      %v258 = vsel %vm256, %v255, 0
      %v261 = vsel %vm256, %v251, 0
      %263 = vmatprep.subr.bf16.mxu0 0
      %264 = vmatpush1.bf16.xpose.msra.mxu0 %v261
      %265 = vmatprep.subr.bf16.mxu0 0
      %266 = vmatpush1.bf16.xpose.msra.mxu0 0
      %267 = vmatprep.subr.bf16.mxu0 0
      %268 = vmatpush1.bf16.xpose.msra.mxu0 0
      %269 = vmatprep.subr.bf16.mxu0 0
      %270 = vmatpush1.bf16.xpose.msra.mxu0 0
      %271 = vmatprep.subr.bf16.mxu0 0
      %272 = vmatpush1.bf16.xpose.msra.mxu0 0
      %273 = vmatprep.subr.bf16.mxu0 0
      %274 = vmatpush1.bf16.xpose.msra.mxu0 0
      %275 = vmatprep.subr.bf16.mxu0 0
      %276 = vmatpush1.bf16.xpose.msra.mxu0 0
      %277 = vmatprep.subr.bf16.mxu0 0
      %278 = vmatpush1.bf16.xpose.msra.mxu0 0
      %279 = vmatprep.subr.bf16.mxu0 0
      %280 = vmatpush1.bf16.xpose.msra.mxu0 0
      %281 = vmatprep.subr.bf16.mxu0 0
      %282 = vmatpush1.bf16.xpose.msra.mxu0 0
      %283 = vmatprep.subr.bf16.mxu0 0
      %284 = vmatpush1.bf16.xpose.msra.mxu0 0
      %285 = vmatprep.subr.bf16.mxu0 0
      %286 = vmatpush1.bf16.xpose.msra.mxu0 0
      %287 = vmatprep.subr.bf16.mxu0 0
      %288 = vmatpush1.bf16.xpose.msra.mxu0 0
      %289 = vmatprep.subr.bf16.mxu0 0
      %290 = vmatpush1.bf16.xpose.msra.mxu0 0
      %291 = vmatprep.subr.bf16.mxu0 0
      %292 = vmatpush1.bf16.xpose.msra.mxu0 0
      %293 = vmatprep.subr.bf16.mxu0 0
      %294 = vmatpush1.bf16.xpose.msra.mxu0 0
      %295 = vmatprep.mubr.bf16.mxu0 0
      %296 = vmatmul.mubr.bf16.gmra.mrb[0].mxu0 %v258
      %v297 = vpop.f32.mrb[0].mxu0
      %v298 = vadd.f32 0.0, %v297
      %v299 = vpop.f32.mrb[0].mxu0
      %v300 = vpop.f32.mrb[0].mxu0
      %v301 = vpop.f32.mrb[0].mxu0
      %302 = vdwg.mxu0
      %vm303 = vcmask 64512
      %v304 = vsel %vm303, %v298, -inf
      %305 = vmax.xlane.f32.xlu0 %v304
      %v306 = vpop.xlane.xlu0 %305
      %v307 = vsub.f32 %v298, %v306
      %v308 = vmul.f32 %v307, 1.442695
      %v309 = vpow.pop %v308
      %v310 = vsel %vm303, %v309, 0.0
      %311 = vadd.xlane.f32.xlu0 %v310
      %v312 = vpop.xlane.xlu0 %311
      %v313 = vrcp.pop %v312
      %v314 = vmul.f32 %v309, %v313
      %v315 = vpack.c.bf16 %v314, %v314
      %v317 = vsel %vm303, %v315, 0
      %vm319 = vcmask 1043456
      %v321 = vsel %vm319, %v252, 0
      %323 = vmatprep.subr.bf16.mxu0 0
      %324 = vmatpush1.bf16.msra.mxu0 %v321
      %325 = vmatprep.subr.bf16.mxu0 0
      %326 = vmatpush1.bf16.msra.mxu0 0
      %327 = vmatprep.subr.bf16.mxu0 0
      %328 = vmatpush1.bf16.msra.mxu0 0
      %329 = vmatprep.subr.bf16.mxu0 0
      %330 = vmatpush1.bf16.msra.mxu0 0
      %331 = vmatprep.subr.bf16.mxu0 0
      %332 = vmatpush1.bf16.msra.mxu0 0
      %333 = vmatprep.subr.bf16.mxu0 0
      %334 = vmatpush1.bf16.msra.mxu0 0
      %335 = vmatprep.subr.bf16.mxu0 0
      %336 = vmatpush1.bf16.msra.mxu0 0
      %337 = vmatprep.subr.bf16.mxu0 0
      %338 = vmatpush1.bf16.msra.mxu0 0
      %339 = vmatprep.subr.bf16.mxu0 0
      %340 = vmatpush1.bf16.msra.mxu0 0
      %341 = vmatprep.subr.bf16.mxu0 0
      %342 = vmatpush1.bf16.msra.mxu0 0
      %343 = vmatprep.subr.bf16.mxu0 0
      %344 = vmatpush1.bf16.msra.mxu0 0
      %345 = vmatprep.subr.bf16.mxu0 0
      %346 = vmatpush1.bf16.msra.mxu0 0
      %347 = vmatprep.subr.bf16.mxu0 0
      %348 = vmatpush1.bf16.msra.mxu0 0
      %349 = vmatprep.subr.bf16.mxu0 0
      %350 = vmatpush1.bf16.msra.mxu0 0
      %351 = vmatprep.subr.bf16.mxu0 0
      %352 = vmatpush1.bf16.msra.mxu0 0
      %353 = vmatprep.subr.bf16.mxu0 0
      %354 = vmatpush1.bf16.msra.mxu0 0
      %355 = vmatprep.mubr.bf16.mxu0 0
      %356 = vmatmul.mubr.bf16.gmra.mrb[0].mxu0 %v317
      %v357 = vpop.f32.mrb[0].mxu0
      %v358 = vadd.f32 0.0, %v357
      %v359 = vpop.f32.mrb[0].mxu0
      %v360 = vpop.f32.mrb[0].mxu0
      %v361 = vpop.f32.mrb[0].mxu0
      %362 = vdwg.mxu0
      %v363 = vpack.c.bf16 %v358, %v358
      %vm364 = vcmask 257024
      %365 = vst.msk [vmem:[%s248] sm:$0xf] %vm364, %v363
      %367 = vrot.lane.b32.xlu0 %v255, 96
      %v368 = vpop.permute.xlu0 %367
      %v370 = vunpack.c.l.b16 %v251
      %v371 = vpack.c.b16 %v370, %v370
      %372 = vrot.lane.b32.xlu0 %v371, 96
      %v373 = vpop.permute.xlu0 %372
      %v375 = vsel %vm256, %v368, 0
      %v378 = vsel %vm256, %v373, 0
      %380 = vmatprep.subr.bf16.mxu0 0
      %381 = vmatpush1.bf16.xpose.msra.mxu0 %v378
      %382 = vmatprep.subr.bf16.mxu0 0
      %383 = vmatpush1.bf16.xpose.msra.mxu0 0
      %384 = vmatprep.subr.bf16.mxu0 0
      %385 = vmatpush1.bf16.xpose.msra.mxu0 0
      %386 = vmatprep.subr.bf16.mxu0 0
      %387 = vmatpush1.bf16.xpose.msra.mxu0 0
      %388 = vmatprep.subr.bf16.mxu0 0
      %389 = vmatpush1.bf16.xpose.msra.mxu0 0
      %390 = vmatprep.subr.bf16.mxu0 0
      %391 = vmatpush1.bf16.xpose.msra.mxu0 0
      %392 = vmatprep.subr.bf16.mxu0 0
      %393 = vmatpush1.bf16.xpose.msra.mxu0 0
      %394 = vmatprep.subr.bf16.mxu0 0
      %395 = vmatpush1.bf16.xpose.msra.mxu0 0
      %396 = vmatprep.subr.bf16.mxu0 0
      %397 = vmatpush1.bf16.xpose.msra.mxu0 0
      %398 = vmatprep.subr.bf16.mxu0 0
      %399 = vmatpush1.bf16.xpose.msra.mxu0 0
      %400 = vmatprep.subr.bf16.mxu0 0
      %401 = vmatpush1.bf16.xpose.msra.mxu0 0
      %402 = vmatprep.subr.bf16.mxu0 0
      %403 = vmatpush1.bf16.xpose.msra.mxu0 0
      %404 = vmatprep.subr.bf16.mxu0 0
      %405 = vmatpush1.bf16.xpose.msra.mxu0 0
      %406 = vmatprep.subr.bf16.mxu0 0
      %407 = vmatpush1.bf16.xpose.msra.mxu0 0
      %408 = vmatprep.subr.bf16.mxu0 0
      %409 = vmatpush1.bf16.xpose.msra.mxu0 0
      %410 = vmatprep.subr.bf16.mxu0 0
      %411 = vmatpush1.bf16.xpose.msra.mxu0 0
      %412 = vmatprep.mubr.bf16.mxu0 0
      %413 = vmatmul.mubr.bf16.gmra.mrb[0].mxu0 %v375
      %v414 = vpop.f32.mrb[0].mxu0
      %v415 = vadd.f32 0.0, %v414
      %v416 = vpop.f32.mrb[0].mxu0
      %v417 = vpop.f32.mrb[0].mxu0
      %v418 = vpop.f32.mrb[0].mxu0
      %419 = vdwg.mxu0
      %v420 = vsel %vm303, %v415, -inf
      %421 = vmax.xlane.f32.xlu0 %v420
      %v422 = vpop.xlane.xlu0 %421
      %v423 = vsub.f32 %v415, %v422
      %v424 = vmul.f32 %v423, 1.442695
      %v425 = vpow.pop %v424
      %v426 = vsel %vm303, %v425, 0.0
      %427 = vadd.xlane.f32.xlu0 %v426
      %v428 = vpop.xlane.xlu0 %427
      %v429 = vrcp.pop %v428
      %v430 = vmul.f32 %v425, %v429
      %v431 = vpack.c.bf16 %v430, %v430
      %v433 = vunpack.c.l.b16 %v252
      %v434 = vpack.c.b16 %v433, %v433
      %435 = vrot.lane.b32.xlu0 %v434, 96
      %v436 = vpop.permute.xlu0 %435
      %v438 = vsel %vm303, %v431, 0
      %v441 = vsel %vm319, %v436, 0
      %443 = vmatprep.subr.bf16.mxu0 0
      %444 = vmatpush1.bf16.msra.mxu0 %v441
      %445 = vmatprep.subr.bf16.mxu0 0
      %446 = vmatpush1.bf16.msra.mxu0 0
      %447 = vmatprep.subr.bf16.mxu0 0
      %448 = vmatpush1.bf16.msra.mxu0 0
      %449 = vmatprep.subr.bf16.mxu0 0
      %450 = vmatpush1.bf16.msra.mxu0 0
      %451 = vmatprep.subr.bf16.mxu0 0
      %452 = vmatpush1.bf16.msra.mxu0 0
      %453 = vmatprep.subr.bf16.mxu0 0
      %454 = vmatpush1.bf16.msra.mxu0 0
      %455 = vmatprep.subr.bf16.mxu0 0
      %456 = vmatpush1.bf16.msra.mxu0 0
      %457 = vmatprep.subr.bf16.mxu0 0
      %458 = vmatpush1.bf16.msra.mxu0 0
      %459 = vmatprep.subr.bf16.mxu0 0
      %460 = vmatpush1.bf16.msra.mxu0 0
      %461 = vmatprep.subr.bf16.mxu0 0
      %462 = vmatpush1.bf16.msra.mxu0 0
      %463 = vmatprep.subr.bf16.mxu0 0
      %464 = vmatpush1.bf16.msra.mxu0 0
      %465 = vmatprep.subr.bf16.mxu0 0
      %466 = vmatpush1.bf16.msra.mxu0 0
      %467 = vmatprep.subr.bf16.mxu0 0
      %468 = vmatpush1.bf16.msra.mxu0 0
      %469 = vmatprep.subr.bf16.mxu0 0
      %470 = vmatpush1.bf16.msra.mxu0 0
      %471 = vmatprep.subr.bf16.mxu0 0
      %472 = vmatpush1.bf16.msra.mxu0 0
      %473 = vmatprep.subr.bf16.mxu0 0
      %474 = vmatpush1.bf16.msra.mxu0 0
      %475 = vmatprep.mubr.bf16.mxu0 0
      %476 = vmatmul.mubr.bf16.gmra.mrb[0].mxu0 %v438
      %v477 = vpop.f32.mrb[0].mxu0
      %v478 = vadd.f32 0.0, %v477
      %v479 = vpop.f32.mrb[0].mxu0
      %v480 = vpop.f32.mrb[0].mxu0
      %v481 = vpop.f32.mrb[0].mxu0
      %482 = vdwg.mxu0
      %v483 = vpack.c.bf16 %v478, %v478
      %v485 = vunpack.c.l.b16 %v483
      %v486 = vpack.c.b16 %v485, %v485
      %487 = vrot.lane.b32.xlu0 %v486, 32
      %v488 = vpop.permute.xlu0 %487
      %vm490 = vcmask 519424
      %491 = vst.msk [vmem:[%s248] sm:$0xf] %vm490, %v488
      %492 = vrot.lane.b32.xlu0 %v255, 64
      %v493 = vpop.permute.xlu0 %492
      %494 = vrot.lane.b32.xlu0 %v371, 64
      %v495 = vpop.permute.xlu0 %494
      %v497 = vsel %vm256, %v493, 0
      %v500 = vsel %vm256, %v495, 0
      %502 = vmatprep.subr.bf16.mxu0 0
      %503 = vmatpush1.bf16.xpose.msra.mxu0 %v500
      %504 = vmatprep.subr.bf16.mxu0 0
      %505 = vmatpush1.bf16.xpose.msra.mxu0 0
      %506 = vmatprep.subr.bf16.mxu0 0
      %507 = vmatpush1.bf16.xpose.msra.mxu0 0
      %508 = vmatprep.subr.bf16.mxu0 0
      %509 = vmatpush1.bf16.xpose.msra.mxu0 0
      %510 = vmatprep.subr.bf16.mxu0 0
      %511 = vmatpush1.bf16.xpose.msra.mxu0 0
      %512 = vmatprep.subr.bf16.mxu0 0
      %513 = vmatpush1.bf16.xpose.msra.mxu0 0
      %514 = vmatprep.subr.bf16.mxu0 0
      %515 = vmatpush1.bf16.xpose.msra.mxu0 0
      %516 = vmatprep.subr.bf16.mxu0 0
      %517 = vmatpush1.bf16.xpose.msra.mxu0 0
      %518 = vmatprep.subr.bf16.mxu0 0
      %519 = vmatpush1.bf16.xpose.msra.mxu0 0
      %520 = vmatprep.subr.bf16.mxu0 0
      %521 = vmatpush1.bf16.xpose.msra.mxu0 0
      %522 = vmatprep.subr.bf16.mxu0 0
      %523 = vmatpush1.bf16.xpose.msra.mxu0 0
      %524 = vmatprep.subr.bf16.mxu0 0
      %525 = vmatpush1.bf16.xpose.msra.mxu0 0
      %526 = vmatprep.subr.bf16.mxu0 0
      %527 = vmatpush1.bf16.xpose.msra.mxu0 0
      %528 = vmatprep.subr.bf16.mxu0 0
      %529 = vmatpush1.bf16.xpose.msra.mxu0 0
      %530 = vmatprep.subr.bf16.mxu0 0
      %531 = vmatpush1.bf16.xpose.msra.mxu0 0
      %532 = vmatprep.subr.bf16.mxu0 0
      %533 = vmatpush1.bf16.xpose.msra.mxu0 0
      %534 = vmatprep.mubr.bf16.mxu0 0
      %535 = vmatmul.mubr.bf16.gmra.mrb[0].mxu0 %v497
      %v536 = vpop.f32.mrb[0].mxu0
      %v537 = vadd.f32 0.0, %v536
      %v538 = vpop.f32.mrb[0].mxu0
      %v539 = vpop.f32.mrb[0].mxu0
      %v540 = vpop.f32.mrb[0].mxu0
      %541 = vdwg.mxu0
      %v542 = vsel %vm303, %v537, -inf
      %543 = vmax.xlane.f32.xlu0 %v542
      %v544 = vpop.xlane.xlu0 %543
      %v545 = vsub.f32 %v537, %v544
      %v546 = vmul.f32 %v545, 1.442695
      %v547 = vpow.pop %v546
      %v548 = vsel %vm303, %v547, 0.0
      %549 = vadd.xlane.f32.xlu0 %v548
      %v550 = vpop.xlane.xlu0 %549
      %v551 = vrcp.pop %v550
      %v552 = vmul.f32 %v547, %v551
      %v553 = vpack.c.bf16 %v552, %v552
      %554 = vrot.lane.b32.xlu0 %v434, 64
      %v555 = vpop.permute.xlu0 %554
      %v557 = vsel %vm303, %v553, 0
      %v560 = vsel %vm319, %v555, 0
      %562 = vmatprep.subr.bf16.mxu0 0
      %563 = vmatpush1.bf16.msra.mxu0 %v560
      %564 = vmatprep.subr.bf16.mxu0 0
      %565 = vmatpush1.bf16.msra.mxu0 0
      %566 = vmatprep.subr.bf16.mxu0 0
      %567 = vmatpush1.bf16.msra.mxu0 0
      %568 = vmatprep.subr.bf16.mxu0 0
      %569 = vmatpush1.bf16.msra.mxu0 0
      %570 = vmatprep.subr.bf16.mxu0 0
      %571 = vmatpush1.bf16.msra.mxu0 0
      %572 = vmatprep.subr.bf16.mxu0 0
      %573 = vmatpush1.bf16.msra.mxu0 0
      %574 = vmatprep.subr.bf16.mxu0 0
      %575 = vmatpush1.bf16.msra.mxu0 0
      %576 = vmatprep.subr.bf16.mxu0 0
      %577 = vmatpush1.bf16.msra.mxu0 0
      %578 = vmatprep.subr.bf16.mxu0 0
      %579 = vmatpush1.bf16.msra.mxu0 0
      %580 = vmatprep.subr.bf16.mxu0 0
      %581 = vmatpush1.bf16.msra.mxu0 0
      %582 = vmatprep.subr.bf16.mxu0 0
      %583 = vmatpush1.bf16.msra.mxu0 0
      %584 = vmatprep.subr.bf16.mxu0 0
      %585 = vmatpush1.bf16.msra.mxu0 0
      %586 = vmatprep.subr.bf16.mxu0 0
      %587 = vmatpush1.bf16.msra.mxu0 0
      %588 = vmatprep.subr.bf16.mxu0 0
      %589 = vmatpush1.bf16.msra.mxu0 0
      %590 = vmatprep.subr.bf16.mxu0 0
      %591 = vmatpush1.bf16.msra.mxu0 0
      %592 = vmatprep.subr.bf16.mxu0 0
      %593 = vmatpush1.bf16.msra.mxu0 0
      %594 = vmatprep.mubr.bf16.mxu0 0
      %595 = vmatmul.mubr.bf16.gmra.mrb[0].mxu0 %v557
      %v596 = vpop.f32.mrb[0].mxu0
      %v597 = vadd.f32 0.0, %v596
      %v598 = vpop.f32.mrb[0].mxu0
      %v599 = vpop.f32.mrb[0].mxu0
      %v600 = vpop.f32.mrb[0].mxu0
      %601 = vdwg.mxu0
      %v602 = vpack.c.bf16 %v597, %v597
      %v604 = vunpack.c.l.b16 %v602
      %v605 = vpack.c.b16 %v604, %v604
      %606 = vrot.lane.b32.xlu0 %v605, 64
      %v607 = vpop.permute.xlu0 %606
      %vm609 = vcmask 781824
      %610 = vst.msk [vmem:[%s248] sm:$0xf] %vm609, %v607
      %611 = vrot.lane.b32.xlu0 %v255, 32
      %v612 = vpop.permute.xlu0 %611
      %613 = vrot.lane.b32.xlu0 %v371, 32
      %v614 = vpop.permute.xlu0 %613
      %v616 = vsel %vm256, %v612, 0
      %v619 = vsel %vm256, %v614, 0
      %621 = vmatprep.subr.bf16.mxu0 0
      %622 = vmatpush1.bf16.xpose.msra.mxu0 %v619
      %623 = vmatprep.subr.bf16.mxu0 0
      %624 = vmatpush1.bf16.xpose.msra.mxu0 0
      %625 = vmatprep.subr.bf16.mxu0 0
      %626 = vmatpush1.bf16.xpose.msra.mxu0 0
      %627 = vmatprep.subr.bf16.mxu0 0
      %628 = vmatpush1.bf16.xpose.msra.mxu0 0
      %629 = vmatprep.subr.bf16.mxu0 0
      %630 = vmatpush1.bf16.xpose.msra.mxu0 0
      %631 = vmatprep.subr.bf16.mxu0 0
      %632 = vmatpush1.bf16.xpose.msra.mxu0 0
      %633 = vmatprep.subr.bf16.mxu0 0
      %634 = vmatpush1.bf16.xpose.msra.mxu0 0
      %635 = vmatprep.subr.bf16.mxu0 0
      %636 = vmatpush1.bf16.xpose.msra.mxu0 0
      %637 = vmatprep.subr.bf16.mxu0 0
      %638 = vmatpush1.bf16.xpose.msra.mxu0 0
      %639 = vmatprep.subr.bf16.mxu0 0
      %640 = vmatpush1.bf16.xpose.msra.mxu0 0
      %641 = vmatprep.subr.bf16.mxu0 0
      %642 = vmatpush1.bf16.xpose.msra.mxu0 0
      %643 = vmatprep.subr.bf16.mxu0 0
      %644 = vmatpush1.bf16.xpose.msra.mxu0 0
      %645 = vmatprep.subr.bf16.mxu0 0
      %646 = vmatpush1.bf16.xpose.msra.mxu0 0
      %647 = vmatprep.subr.bf16.mxu0 0
      %648 = vmatpush1.bf16.xpose.msra.mxu0 0
      %649 = vmatprep.subr.bf16.mxu0 0
      %650 = vmatpush1.bf16.xpose.msra.mxu0 0
      %651 = vmatprep.subr.bf16.mxu0 0
      %652 = vmatpush1.bf16.xpose.msra.mxu0 0
      %653 = vmatprep.mubr.bf16.mxu0 0
      %654 = vmatmul.mubr.bf16.gmra.mrb[0].mxu0 %v616
      %v655 = vpop.f32.mrb[0].mxu0
      %v656 = vadd.f32 0.0, %v655
      %v657 = vpop.f32.mrb[0].mxu0
      %v658 = vpop.f32.mrb[0].mxu0
      %v659 = vpop.f32.mrb[0].mxu0
      %660 = vdwg.mxu0
      %v661 = vsel %vm303, %v656, -inf
      %662 = vmax.xlane.f32.xlu0 %v661
      %v663 = vpop.xlane.xlu0 %662
      %v664 = vsub.f32 %v656, %v663
      %v665 = vmul.f32 %v664, 1.442695
      %v666 = vpow.pop %v665
      %v667 = vsel %vm303, %v666, 0.0
      %668 = vadd.xlane.f32.xlu0 %v667
      %v669 = vpop.xlane.xlu0 %668
      %v670 = vrcp.pop %v669
      %v671 = vmul.f32 %v666, %v670
      %v672 = vpack.c.bf16 %v671, %v671
      %673 = vrot.lane.b32.xlu0 %v434, 32
      %v674 = vpop.permute.xlu0 %673
      %v676 = vsel %vm303, %v672, 0
      %v679 = vsel %vm319, %v674, 0
      %681 = vmatprep.subr.bf16.mxu0 0
      %682 = vmatpush1.bf16.msra.mxu0 %v679
      %683 = vmatprep.subr.bf16.mxu0 0
      %684 = vmatpush1.bf16.msra.mxu0 0
      %685 = vmatprep.subr.bf16.mxu0 0
      %686 = vmatpush1.bf16.msra.mxu0 0
      %687 = vmatprep.subr.bf16.mxu0 0
      %688 = vmatpush1.bf16.msra.mxu0 0
      %689 = vmatprep.subr.bf16.mxu0 0
      %690 = vmatpush1.bf16.msra.mxu0 0
      %691 = vmatprep.subr.bf16.mxu0 0
      %692 = vmatpush1.bf16.msra.mxu0 0
      %693 = vmatprep.subr.bf16.mxu0 0
      %694 = vmatpush1.bf16.msra.mxu0 0
      %695 = vmatprep.subr.bf16.mxu0 0
      %696 = vmatpush1.bf16.msra.mxu0 0
      %697 = vmatprep.subr.bf16.mxu0 0
      %698 = vmatpush1.bf16.msra.mxu0 0
      %699 = vmatprep.subr.bf16.mxu0 0
      %700 = vmatpush1.bf16.msra.mxu0 0
      %701 = vmatprep.subr.bf16.mxu0 0
      %702 = vmatpush1.bf16.msra.mxu0 0
      %703 = vmatprep.subr.bf16.mxu0 0
      %704 = vmatpush1.bf16.msra.mxu0 0
      %705 = vmatprep.subr.bf16.mxu0 0
      %706 = vmatpush1.bf16.msra.mxu0 0
      %707 = vmatprep.subr.bf16.mxu0 0
      %708 = vmatpush1.bf16.msra.mxu0 0
      %709 = vmatprep.subr.bf16.mxu0 0
      %710 = vmatpush1.bf16.msra.mxu0 0
      %711 = vmatprep.subr.bf16.mxu0 0
      %712 = vmatpush1.bf16.msra.mxu0 0
      %713 = vmatprep.mubr.bf16.mxu0 0
      %714 = vmatmul.mubr.bf16.gmra.mrb[0].mxu0 %v676
      %v715 = vpop.f32.mrb[0].mxu0
      %v716 = vadd.f32 0.0, %v715
      %v717 = vpop.f32.mrb[0].mxu0
      %v718 = vpop.f32.mrb[0].mxu0
      %v719 = vpop.f32.mrb[0].mxu0
      %720 = vdwg.mxu0
      %v721 = vpack.c.bf16 %v716, %v716
      %v723 = vunpack.c.l.b16 %v721
      %v724 = vpack.c.b16 %v723, %v723
      %725 = vrot.lane.b32.xlu0 %v724, 96
      %v726 = vpop.permute.xlu0 %725
      %vm728 = vcmask 1044224
      %729 = vst.msk [vmem:[%s248] sm:$0xf] %vm728, %v726
      %p730 = scmp.lt.s32.totalorder %s18, 1
      %s731 = scalar_select %p730, %s18, 1
      %p732 = scmp.lt.s32.totalorder %s19, 0
      %s733 = scalar_select %p732, %s19, 0
      %s734 = sadd.s32 %s733, %s731
      %s735 = smul.addr %s734, 4
      %s736 = scalar_lea.vmem %s3, %s735
      // Predicated region
      $region33: #{transformer_forward.26} parent=31 // pred_check
        %p737 = pneg %p126
      $region34: #{transformer_forward.26} parent=31 // pred_check_branch
        %739 = sbr.rel (%p737) target = $region36
      $region35: #{transformer_forward.26} parent=31 // pred_region
        _
      $region36: #{transformer_forward.26} parent=31 // pred_fallthru
        _
    $region32: #{transformer_forward.26} parent=5 // pred_fallthru
      _
    %p740 = scmp.le.s32.totalorder 2, %s9
    // Predicated region
    $region37: #{transformer_forward.26} parent=5 // pred_check
      %p741 = pneg %p740
    $region38: #{transformer_forward.26} parent=5 // pred_check_branch
      %743 = sbr.rel (%p741) target = $region40
    $region39: #{transformer_forward.26} parent=5 // pred_region
      %s744 = ssub.s32 %s9, 2
      // Predicated region
      $region41: #{transformer_forward.26} parent=39 // pred_check
        %p745 = pneg %p132
      $region42: #{transformer_forward.26} parent=39 // pred_check_branch
        %747 = sbr.rel (%p745) target = $region44
      $region43: #{transformer_forward.26} parent=39 // pred_region
        %p748 = scmp.lt.s32.totalorder %s20, 1
        %s749 = scalar_select %p748, %s20, 1
        %p750 = scmp.lt.s32.totalorder %s21, 0
        %s751 = scalar_select %p750, %s21, 0
        %s752 = sadd.s32 %s751, %s749
        %s753 = smul.addr %s752, 4
        %s754 = scalar_lea.vmem %s3, %s753
      $region44: #{transformer_forward.26} parent=39 // pred_fallthru
        _
    $region40: #{transformer_forward.26} parent=5 // pred_fallthru
      _
  $region6: #{transformer_forward.26} parent=0 // loop_footer
    %s13 = sadd.s32 1, %s9
  $region7: #{transformer_forward.26} parent=0 // loop_footer_branch
    %8 = sbr.rel target = $region3
  $region8: #{transformer_forward.26} parent=0 // loop_exit
    _

// kernel: transformer_forward.27
$region0: #{transformer_forward.27}
  #allocation0 [shape = 'u32[]', space=smem, size = 0x4, offset = 0x4, fixed_abs, tag = 'smem constant byte address 0x4 - core index']
  #allocation1 [shape = 'u32[144,128]{1,0:T(1,128)}', space=vmem, size = 0x12000, scoped, tag = 'internal scratch']
  #allocation2 [shape = 'f32[16,128]{1,0:T(8,128)}', space=vmem, size = 0x2000, scoped, tag = 'scratch operand']
  %s0 = inlined_call_operand.vmem [shape: bf16[16,128], index: 0, kind: input, shape index: {}]
  %s1 = inlined_call_operand.vmem [shape: bf16[128,128], index: 1, kind: input, shape index: {}]
  %s2 = inlined_call_operand.vmem [shape: bf16[16,128], index: 2, kind: input, shape index: {}]
  %s3 = inlined_call_operand.vmem [shape: f32[1,128], index: 3, kind: input, shape index: {}]
  %s4 = inlined_call_operand.vmem [shape: bf16[16,128], index: 4, kind: output, shape index: {}]
  %s5 = sld [smem:[#allocation0]]
  $region34: #{transformer_forward.27} parent=0
    _
  %s7 = ssub.s32 1, %s5
  %s8 = scalar_select 0, %s7, %s5
  // Predicated region
  $region2: #{transformer_forward.27} parent=0 // pred_check
    _
  $region3: #{transformer_forward.27} parent=0 // pred_check_branch
    %10 = sbr.rel (0) target = $region5
  $region4: #{transformer_forward.27} parent=0 // pred_region
    _
  $region5: #{transformer_forward.27} parent=0 // pred_fallthru
    _
  // Predicated region
  $region6: #{transformer_forward.27} parent=0 // pred_check
    _
  $region7: #{transformer_forward.27} parent=0 // pred_check_branch
    %12 = sbr.rel (0) target = $region9
  $region8: #{transformer_forward.27} parent=0 // pred_region
    _
  $region9: #{transformer_forward.27} parent=0 // pred_fallthru
    _
  // Predicated region
  $region10: #{transformer_forward.27} parent=0 // pred_check
    _
  $region11: #{transformer_forward.27} parent=0 // pred_check_branch
    %14 = sbr.rel (0) target = $region13
  $region12: #{transformer_forward.27} parent=0 // pred_region
    _
  $region13: #{transformer_forward.27} parent=0 // pred_fallthru
    _
  // Predicated region
  $region14: #{transformer_forward.27} parent=0 // pred_check
    _
  $region15: #{transformer_forward.27} parent=0 // pred_check_branch
    %16 = sbr.rel (0) target = $region17
  $region16: #{transformer_forward.27} parent=0 // pred_region
    _
  $region17: #{transformer_forward.27} parent=0 // pred_fallthru
    _
  %p18 = scmp.eq.s32.totalorder 0, 0
  // Predicated region
  $region18: #{transformer_forward.27} parent=0 // pred_check
    %p19 = pneg %p18
  $region19: #{transformer_forward.27} parent=0 // pred_check_branch
    %21 = sbr.rel (%p19) target = $region21
  $region20: #{transformer_forward.27} parent=0 // pred_region
    %22 = vst [vmem:[#allocation2] sm:$0xff] 0.0
    %23 = vst [vmem:[#allocation2 + $0x8] sm:$0xff] 0.0
  $region21: #{transformer_forward.27} parent=0 // pred_fallthru
    _
  %v24 = vld [vmem:[#allocation2] sm:$0xff]
  %v25 = vld [vmem:[#allocation2 + $0x8] sm:$0xff]
  %v26 = vld [vmem:[%s0] sm:$0xf]
  %v27 = vld [vmem:[%s0 + $0x4] sm:$0xf]
  %v28 = vld [vmem:[%s1] sm:$0xf]
  %v29 = vld [vmem:[%s1 + $0x4] sm:$0xf]
  %v30 = vld [vmem:[%s1 + $0x8] sm:$0xf]
  %v31 = vld [vmem:[%s1 + $0xc] sm:$0xf]
  %v32 = vld [vmem:[%s1 + $0x10] sm:$0xf]
  %v33 = vld [vmem:[%s1 + $0x14] sm:$0xf]
  %v34 = vld [vmem:[%s1 + $0x18] sm:$0xf]
  %v35 = vld [vmem:[%s1 + $0x1c] sm:$0xf]
  %v36 = vld [vmem:[%s1 + $0x20] sm:$0xf]
  %v37 = vld [vmem:[%s1 + $0x24] sm:$0xf]
  %v38 = vld [vmem:[%s1 + $0x28] sm:$0xf]
  %v39 = vld [vmem:[%s1 + $0x2c] sm:$0xf]
  %v40 = vld [vmem:[%s1 + $0x30] sm:$0xf]
  %v41 = vld [vmem:[%s1 + $0x34] sm:$0xf]
  %v42 = vld [vmem:[%s1 + $0x38] sm:$0xf]
  %v43 = vld [vmem:[%s1 + $0x3c] sm:$0xf]
  %v46 = vunpack.c.l.b16 %v26
  %v47 = vunpack.c.l.b16 %v27
  %v48 = vpack.c.b16 %v47, %v46
  %v66 = vunpack.c.l.b16 %v28
  %v67 = vunpack.c.l.b16 %v29
  %v68 = vunpack.c.l.b16 %v30
  %v69 = vunpack.c.l.b16 %v31
  %v70 = vunpack.c.l.b16 %v32
  %v71 = vunpack.c.l.b16 %v33
  %v72 = vunpack.c.l.b16 %v34
  %v73 = vunpack.c.l.b16 %v35
  %v74 = vunpack.c.l.b16 %v36
  %v75 = vunpack.c.l.b16 %v37
  %v76 = vunpack.c.l.b16 %v38
  %v77 = vunpack.c.l.b16 %v39
  %v78 = vunpack.c.l.b16 %v40
  %v79 = vunpack.c.l.b16 %v41
  %v80 = vunpack.c.l.b16 %v42
  %v81 = vunpack.c.l.b16 %v43
  %v82 = vpack.c.b16 %v67, %v66
  %v83 = vpack.c.b16 %v69, %v68
  %v84 = vpack.c.b16 %v71, %v70
  %v85 = vpack.c.b16 %v73, %v72
  %v86 = vpack.c.b16 %v75, %v74
  %v87 = vpack.c.b16 %v77, %v76
  %v88 = vpack.c.b16 %v79, %v78
  %v89 = vpack.c.b16 %v81, %v80
  %98 = vmatprep.subr.bf16.mxu0 0
  %99 = vmatpush1.bf16.msra.mxu0 %v82
  %100 = vmatprep.subr.bf16.mxu0 0
  %101 = vmatpush1.bf16.msra.mxu0 %v83
  %102 = vmatprep.subr.bf16.mxu0 0
  %103 = vmatpush1.bf16.msra.mxu0 %v84
  %104 = vmatprep.subr.bf16.mxu0 0
  %105 = vmatpush1.bf16.msra.mxu0 %v85
  %106 = vmatprep.subr.bf16.mxu0 0
  %107 = vmatpush1.bf16.msra.mxu0 %v86
  %108 = vmatprep.subr.bf16.mxu0 0
  %109 = vmatpush1.bf16.msra.mxu0 %v87
  %110 = vmatprep.subr.bf16.mxu0 0
  %111 = vmatpush1.bf16.msra.mxu0 %v88
  %112 = vmatprep.subr.bf16.mxu0 0
  %113 = vmatpush1.bf16.msra.mxu0 %v89
  %114 = vmatprep.subr.bf16.mxu0 0
  %115 = vmatpush1.bf16.msra.mxu0 0
  %116 = vmatprep.subr.bf16.mxu0 0
  %117 = vmatpush1.bf16.msra.mxu0 0
  %118 = vmatprep.subr.bf16.mxu0 0
  %119 = vmatpush1.bf16.msra.mxu0 0
  %120 = vmatprep.subr.bf16.mxu0 0
  %121 = vmatpush1.bf16.msra.mxu0 0
  %122 = vmatprep.subr.bf16.mxu0 0
  %123 = vmatpush1.bf16.msra.mxu0 0
  %124 = vmatprep.subr.bf16.mxu0 0
  %125 = vmatpush1.bf16.msra.mxu0 0
  %126 = vmatprep.subr.bf16.mxu0 0
  %127 = vmatpush1.bf16.msra.mxu0 0
  %128 = vmatprep.subr.bf16.mxu0 0
  %129 = vmatpush1.bf16.msra.mxu0 0
  %130 = vmatprep.mubr.bf16.mxu0 0
  %131 = vmatmul.mubr.bf16.gmra.mrb[0].mxu0 %v48
  %v132 = vpop.f32.mrb[0].mxu0
  %v133 = vadd.f32 0.0, %v132
  %v134 = vpop.f32.mrb[0].mxu0
  %v135 = vpop.f32.mrb[0].mxu0
  %v136 = vadd.f32 0.0, %v135
  %v137 = vpop.f32.mrb[0].mxu0
  %138 = vdwg.mxu0
  %v139 = vadd.f32 %v24, %v133
  %v140 = vadd.f32 %v25, %v136
  %141 = vst [vmem:[#allocation2] sm:$0xff] %v139
  %142 = vst [vmem:[#allocation2 + $0x8] sm:$0xff] %v140
  // Predicated region
  $region22: #{transformer_forward.27} parent=0 // pred_check
    %p143 = pneg %p18
  $region23: #{transformer_forward.27} parent=0 // pred_check_branch
    %145 = sbr.rel (%p143) target = $region25
  $region24: #{transformer_forward.27} parent=0 // pred_region
    %v146 = vld [vmem:[#allocation2] sm:$0xff]
    %v147 = vld [vmem:[#allocation2 + $0x8] sm:$0xff]
    %v148 = vld [vmem:[%s2] sm:$0xf]
    %v149 = vld [vmem:[%s2 + $0x4] sm:$0xf]
    %v150 = vunpack.c.l.bf16 %v148
    %v151 = vunpack.c.l.bf16 %v149
    %v152 = vadd.f32 %v146, %v150
    %v153 = vadd.f32 %v147, %v151
    %154 = vadd.xlane.f32.xlu0 %v152
    %v155 = vpop.xlane.xlu0 %154
    %156 = vadd.xlane.f32.xlu0 %v153
    %v157 = vpop.xlane.xlu0 %156
    %v158 = vrcp.pop 128.0
    %v159 = vmul.f32 %v155, %v158
    %v160 = vmul.f32 %v157, %v158
    %v161 = vsub.f32 %v152, %v159
    %v162 = vsub.f32 %v153, %v160
    %v163 = vmul.f32 %v161, %v161
    %v164 = vmul.f32 %v162, %v162
    %165 = vadd.xlane.f32.xlu0 %v163
    %v166 = vpop.xlane.xlu0 %165
    %167 = vadd.xlane.f32.xlu0 %v164
    %v168 = vpop.xlane.xlu0 %167
    %v169 = vmul.f32 %v166, %v158
    %v170 = vmul.f32 %v168, %v158
    %v171 = vadd.f32 %v169, 1e-05
    %v172 = vadd.f32 %v170, 1e-05
    %v173 = vrsqrt.pop %v171
    %v174 = vrsqrt.pop %v172
    %v175 = vmul.f32 %v161, %v173
    %v176 = vmul.f32 %v162, %v174
    %v177 = vld [vmem:[%s3] sm:$0x1]
    %v179 = vlaneseq
    %v180 = vshrl.u32 %v179, 7
    %v181 = vsub.s32 0, %v180
    %v182 = vrot.slane %v177, %v181
    %v184 = vmul.f32 %v175, %v182
    %v185 = vmul.f32 %v176, %v182
    %v186 = vpack.c.bf16 %v185, %v184
    %v188 = vunpack.c.l.b16 %v186
    %v189 = vunpack.c.h.b16 %v186
    %v190 = vpack.c.b16 %v188, %v188
    %v191 = vpack.c.b16 %v189, %v189
    %194 = vst [vmem:[%s4] sm:$0xf] %v190
    %195 = vst [vmem:[%s4 + $0x4] sm:$0xf] %v191
  $region25: #{transformer_forward.27} parent=0 // pred_fallthru
    _
  // Predicated region
  $region26: #{transformer_forward.27} parent=0 // pred_check
    _
  $region27: #{transformer_forward.27} parent=0 // pred_check_branch
    %197 = sbr.rel (0) target = $region29
  $region28: #{transformer_forward.27} parent=0 // pred_region
    _
  $region29: #{transformer_forward.27} parent=0 // pred_fallthru
    _
  // Predicated region
  $region30: #{transformer_forward.27} parent=0 // pred_check
    _
  $region31: #{transformer_forward.27} parent=0 // pred_check_branch
    %199 = sbr.rel (0) target = $region33
  $region32: #{transformer_forward.27} parent=0 // pred_region
    _
  $region33: #{transformer_forward.27} parent=0 // pred_fallthru
    _

// kernel: transformer_forward.25
$region0: #{transformer_forward.25}
  #allocation0 [shape = 'u32[]', space=smem, size = 0x4, offset = 0x4, fixed_abs, tag = 'smem constant byte address 0x4 - core index']
  #allocation1 [shape = 'u32[144,128]{1,0:T(1,128)}', space=vmem, size = 0x12000, scoped, tag = 'internal scratch']
  #allocation2 [shape = 'f32[16,384]{1,0:T(8,128)}', space=vmem, size = 0x6000, scoped, tag = 'scratch operand']
  %s0 = inlined_call_operand.vmem [shape: bf16[16,128], index: 0, kind: input, shape index: {}]
  %s1 = inlined_call_operand.vmem [shape: bf16[128,384], index: 1, kind: input, shape index: {}]
  %s2 = inlined_call_operand.vmem [shape: bf16[16,384], index: 2, kind: output, shape index: {}]
  %s3 = sld [smem:[#allocation0]]
  $region26: #{transformer_forward.25} parent=0
    _
  %s5 = ssub.s32 1, %s3
  %s6 = scalar_select 0, %s5, %s3
  // Predicated region
  $region2: #{transformer_forward.25} parent=0 // pred_check
    _
  $region3: #{transformer_forward.25} parent=0 // pred_check_branch
    %8 = sbr.rel (0) target = $region5
  $region4: #{transformer_forward.25} parent=0 // pred_region
    _
  $region5: #{transformer_forward.25} parent=0 // pred_fallthru
    _
  // Predicated region
  $region6: #{transformer_forward.25} parent=0 // pred_check
    _
  $region7: #{transformer_forward.25} parent=0 // pred_check_branch
    %10 = sbr.rel (0) target = $region9
  $region8: #{transformer_forward.25} parent=0 // pred_region
    _
  $region9: #{transformer_forward.25} parent=0 // pred_fallthru
    _
  %p12 = scmp.eq.s32.totalorder 0, 0
  // Predicated region
  $region10: #{transformer_forward.25} parent=0 // pred_check
    %p13 = pneg %p12
  $region11: #{transformer_forward.25} parent=0 // pred_check_branch
    %15 = sbr.rel (%p13) target = $region13
  $region12: #{transformer_forward.25} parent=0 // pred_region
    %16 = vst [vmem:[#allocation2] sm:$0xff] 0.0
    %17 = vst [vmem:[#allocation2 + $0x8] sm:$0xff] 0.0
    %18 = vst [vmem:[#allocation2 + $0x10] sm:$0xff] 0.0
    %19 = vst [vmem:[#allocation2 + $0x18] sm:$0xff] 0.0
    %20 = vst [vmem:[#allocation2 + $0x20] sm:$0xff] 0.0
    %21 = vst [vmem:[#allocation2 + $0x28] sm:$0xff] 0.0
  $region13: #{transformer_forward.25} parent=0 // pred_fallthru
    _
  %v22 = vld [vmem:[#allocation2] sm:$0xff]
  %v23 = vld [vmem:[#allocation2 + $0x8] sm:$0xff]
  %v24 = vld [vmem:[#allocation2 + $0x10] sm:$0xff]
  %v25 = vld [vmem:[#allocation2 + $0x18] sm:$0xff]
  %v26 = vld [vmem:[#allocation2 + $0x20] sm:$0xff]
  %v27 = vld [vmem:[#allocation2 + $0x28] sm:$0xff]
  %v28 = vld [vmem:[%s0] sm:$0xf]
  %v29 = vld [vmem:[%s0 + $0x4] sm:$0xf]
  %v30 = vld [vmem:[%s1] sm:$0xff]
  %v31 = vld [vmem:[%s1 + $0x8] sm:$0xf]
  %v32 = vld [vmem:[%s1 + $0xc] sm:$0xff]
  %v33 = vld [vmem:[%s1 + $0x14] sm:$0xf]
  %v34 = vld [vmem:[%s1 + $0x18] sm:$0xff]
  %v35 = vld [vmem:[%s1 + $0x20] sm:$0xf]
  %v36 = vld [vmem:[%s1 + $0x24] sm:$0xff]
  %v37 = vld [vmem:[%s1 + $0x2c] sm:$0xf]
  %v38 = vld [vmem:[%s1 + $0x30] sm:$0xff]
  %v39 = vld [vmem:[%s1 + $0x38] sm:$0xf]
  %v40 = vld [vmem:[%s1 + $0x3c] sm:$0xff]
  %v41 = vld [vmem:[%s1 + $0x44] sm:$0xf]
  %v42 = vld [vmem:[%s1 + $0x48] sm:$0xff]
  %v43 = vld [vmem:[%s1 + $0x50] sm:$0xf]
  %v44 = vld [vmem:[%s1 + $0x54] sm:$0xff]
  %v45 = vld [vmem:[%s1 + $0x5c] sm:$0xf]
  %v46 = vld [vmem:[%s1 + $0x60] sm:$0xff]
  %v47 = vld [vmem:[%s1 + $0x68] sm:$0xf]
  %v48 = vld [vmem:[%s1 + $0x6c] sm:$0xff]
  %v49 = vld [vmem:[%s1 + $0x74] sm:$0xf]
  %v50 = vld [vmem:[%s1 + $0x78] sm:$0xff]
  %v51 = vld [vmem:[%s1 + $0x80] sm:$0xf]
  %v52 = vld [vmem:[%s1 + $0x84] sm:$0xff]
  %v53 = vld [vmem:[%s1 + $0x8c] sm:$0xf]
  %v54 = vld [vmem:[%s1 + $0x90] sm:$0xff]
  %v55 = vld [vmem:[%s1 + $0x98] sm:$0xf]
  %v56 = vld [vmem:[%s1 + $0x9c] sm:$0xff]
  %v57 = vld [vmem:[%s1 + $0xa4] sm:$0xf]
  %v58 = vld [vmem:[%s1 + $0xa8] sm:$0xff]
  %v59 = vld [vmem:[%s1 + $0xb0] sm:$0xf]
  %v60 = vld [vmem:[%s1 + $0xb4] sm:$0xff]
  %v61 = vld [vmem:[%s1 + $0xbc] sm:$0xf]
  %v64 = vunpack.c.l.b16 %v28
  %v65 = vunpack.c.l.b16 %v29
  %v66 = vpack.c.b16 %v65, %v64
  %v100 = vunpack.c.l.b16 %v30
  %v101 = vunpack.c.h.b16 %v30
  %v102 = vunpack.c.l.b16 %v31
  %v103 = vunpack.c.l.b16 %v32
  %v104 = vunpack.c.h.b16 %v32
  %v105 = vunpack.c.l.b16 %v33
  %v106 = vunpack.c.l.b16 %v34
  %v107 = vunpack.c.h.b16 %v34
  %v108 = vunpack.c.l.b16 %v35
  %v109 = vunpack.c.l.b16 %v36
  %v110 = vunpack.c.h.b16 %v36
  %v111 = vunpack.c.l.b16 %v37
  %v112 = vunpack.c.l.b16 %v38
  %v113 = vunpack.c.h.b16 %v38
  %v114 = vunpack.c.l.b16 %v39
  %v115 = vunpack.c.l.b16 %v40
  %v116 = vunpack.c.h.b16 %v40
  %v117 = vunpack.c.l.b16 %v41
  %v118 = vunpack.c.l.b16 %v42
  %v119 = vunpack.c.h.b16 %v42
  %v120 = vunpack.c.l.b16 %v43
  %v121 = vunpack.c.l.b16 %v44
  %v122 = vunpack.c.h.b16 %v44
  %v123 = vunpack.c.l.b16 %v45
  %v124 = vunpack.c.l.b16 %v46
  %v125 = vunpack.c.h.b16 %v46
  %v126 = vunpack.c.l.b16 %v47
  %v127 = vunpack.c.l.b16 %v48
  %v128 = vunpack.c.h.b16 %v48
  %v129 = vunpack.c.l.b16 %v49
  %v130 = vunpack.c.l.b16 %v50
  %v131 = vunpack.c.h.b16 %v50
  %v132 = vunpack.c.l.b16 %v51
  %v133 = vunpack.c.l.b16 %v52
  %v134 = vunpack.c.h.b16 %v52
  %v135 = vunpack.c.l.b16 %v53
  %v136 = vunpack.c.l.b16 %v54
  %v137 = vunpack.c.h.b16 %v54
  %v138 = vunpack.c.l.b16 %v55
  %v139 = vunpack.c.l.b16 %v56
  %v140 = vunpack.c.h.b16 %v56
  %v141 = vunpack.c.l.b16 %v57
  %v142 = vunpack.c.l.b16 %v58
  %v143 = vunpack.c.h.b16 %v58
  %v144 = vunpack.c.l.b16 %v59
  %v145 = vunpack.c.l.b16 %v60
  %v146 = vunpack.c.h.b16 %v60
  %v147 = vunpack.c.l.b16 %v61
  %v148 = vpack.c.b16 %v103, %v100
  %v149 = vpack.c.b16 %v104, %v101
  %v150 = vpack.c.b16 %v105, %v102
  %v151 = vpack.c.b16 %v109, %v106
  %v152 = vpack.c.b16 %v110, %v107
  %v153 = vpack.c.b16 %v111, %v108
  %v154 = vpack.c.b16 %v115, %v112
  %v155 = vpack.c.b16 %v116, %v113
  %v156 = vpack.c.b16 %v117, %v114
  %v157 = vpack.c.b16 %v121, %v118
  %v158 = vpack.c.b16 %v122, %v119
  %v159 = vpack.c.b16 %v123, %v120
  %v160 = vpack.c.b16 %v127, %v124
  %v161 = vpack.c.b16 %v128, %v125
  %v162 = vpack.c.b16 %v129, %v126
  %v163 = vpack.c.b16 %v133, %v130
  %v164 = vpack.c.b16 %v134, %v131
  %v165 = vpack.c.b16 %v135, %v132
  %v166 = vpack.c.b16 %v139, %v136
  %v167 = vpack.c.b16 %v140, %v137
  %v168 = vpack.c.b16 %v141, %v138
  %v169 = vpack.c.b16 %v145, %v142
  %v170 = vpack.c.b16 %v146, %v143
  %v171 = vpack.c.b16 %v147, %v144
  %196 = vmatprep.subr.bf16.mxu0 %v149
  %197 = vmatpush1.bf16.msra.mxu0 %v148
  %198 = vmatprep.subr.bf16.mxu0 %v152
  %199 = vmatpush1.bf16.msra.mxu0 %v151
  %200 = vmatprep.subr.bf16.mxu0 %v155
  %201 = vmatpush1.bf16.msra.mxu0 %v154
  %202 = vmatprep.subr.bf16.mxu0 %v158
  %203 = vmatpush1.bf16.msra.mxu0 %v157
  %204 = vmatprep.subr.bf16.mxu0 %v161
  %205 = vmatpush1.bf16.msra.mxu0 %v160
  %206 = vmatprep.subr.bf16.mxu0 %v164
  %207 = vmatpush1.bf16.msra.mxu0 %v163
  %208 = vmatprep.subr.bf16.mxu0 %v167
  %209 = vmatpush1.bf16.msra.mxu0 %v166
  %210 = vmatprep.subr.bf16.mxu0 %v170
  %211 = vmatpush1.bf16.msra.mxu0 %v169
  %212 = vmatprep.subr.bf16.mxu0 0
  %213 = vmatpush1.bf16.msra.mxu0 0
  %214 = vmatprep.subr.bf16.mxu0 0
  %215 = vmatpush1.bf16.msra.mxu0 0
  %216 = vmatprep.subr.bf16.mxu0 0
  %217 = vmatpush1.bf16.msra.mxu0 0
  %218 = vmatprep.subr.bf16.mxu0 0
  %219 = vmatpush1.bf16.msra.mxu0 0
  %220 = vmatprep.subr.bf16.mxu0 0
  %221 = vmatpush1.bf16.msra.mxu0 0
  %222 = vmatprep.subr.bf16.mxu0 0
  %223 = vmatpush1.bf16.msra.mxu0 0
  %224 = vmatprep.subr.bf16.mxu0 0
  %225 = vmatpush1.bf16.msra.mxu0 0
  %226 = vmatprep.subr.bf16.mxu0 0
  %227 = vmatpush1.bf16.msra.mxu0 0
  %228 = vmatprep.mubr.bf16.mxu0 0
  %229 = vmatmul.mubr.bf16.gmra.mrb[0].mxu0 %v66
  %v230 = vpop.f32.mrb[0].mxu0
  %v231 = vadd.f32 0.0, %v230
  %v232 = vpop.f32.mrb[0].mxu0
  %v233 = vadd.f32 0.0, %v232
  %v234 = vpop.f32.mrb[0].mxu0
  %v235 = vadd.f32 0.0, %v234
  %v236 = vpop.f32.mrb[0].mxu0
  %v237 = vadd.f32 0.0, %v236
  %238 = vdwg.mxu0
  %239 = vmatprep.subr.bf16.mxu0 0
  %240 = vmatpush1.bf16.msra.mxu0 %v150
  %241 = vmatprep.subr.bf16.mxu0 0
  %242 = vmatpush1.bf16.msra.mxu0 %v153
  %243 = vmatprep.subr.bf16.mxu0 0
  %244 = vmatpush1.bf16.msra.mxu0 %v156
  %245 = vmatprep.subr.bf16.mxu0 0
  %246 = vmatpush1.bf16.msra.mxu0 %v159
  %247 = vmatprep.subr.bf16.mxu0 0
  %248 = vmatpush1.bf16.msra.mxu0 %v162
  %249 = vmatprep.subr.bf16.mxu0 0
  %250 = vmatpush1.bf16.msra.mxu0 %v165
  %251 = vmatprep.subr.bf16.mxu0 0
  %252 = vmatpush1.bf16.msra.mxu0 %v168
  %253 = vmatprep.subr.bf16.mxu0 0
  %254 = vmatpush1.bf16.msra.mxu0 %v171
  %255 = vmatprep.subr.bf16.mxu0 0
  %256 = vmatpush1.bf16.msra.mxu0 0
  %257 = vmatprep.subr.bf16.mxu0 0
  %258 = vmatpush1.bf16.msra.mxu0 0
  %259 = vmatprep.subr.bf16.mxu0 0
  %260 = vmatpush1.bf16.msra.mxu0 0
  %261 = vmatprep.subr.bf16.mxu0 0
  %262 = vmatpush1.bf16.msra.mxu0 0
  %263 = vmatprep.subr.bf16.mxu0 0
  %264 = vmatpush1.bf16.msra.mxu0 0
  %265 = vmatprep.subr.bf16.mxu0 0
  %266 = vmatpush1.bf16.msra.mxu0 0
  %267 = vmatprep.subr.bf16.mxu0 0
  %268 = vmatpush1.bf16.msra.mxu0 0
  %269 = vmatprep.subr.bf16.mxu0 0
  %270 = vmatpush1.bf16.msra.mxu0 0
  %271 = vmatprep.mubr.bf16.mxu0 0
  %272 = vmatmul.mubr.bf16.gmra.mrb[0].mxu0 %v66
  %v273 = vpop.f32.mrb[0].mxu0
  %v274 = vadd.f32 0.0, %v273
  %v275 = vpop.f32.mrb[0].mxu0
  %v276 = vpop.f32.mrb[0].mxu0
  %v277 = vadd.f32 0.0, %v276
  %v278 = vpop.f32.mrb[0].mxu0
  %279 = vdwg.mxu0
  %v280 = vadd.f32 %v22, %v231
  %v281 = vadd.f32 %v23, %v233
  %v282 = vadd.f32 %v24, %v274
  %v283 = vadd.f32 %v25, %v235
  %v284 = vadd.f32 %v26, %v237
  %v285 = vadd.f32 %v27, %v277
  %286 = vst [vmem:[#allocation2] sm:$0xff] %v280
  %287 = vst [vmem:[#allocation2 + $0x8] sm:$0xff] %v281
  %288 = vst [vmem:[#allocation2 + $0x10] sm:$0xff] %v282
  %289 = vst [vmem:[#allocation2 + $0x18] sm:$0xff] %v283
  %290 = vst [vmem:[#allocation2 + $0x20] sm:$0xff] %v284
  %291 = vst [vmem:[#allocation2 + $0x28] sm:$0xff] %v285
  // Predicated region
  $region14: #{transformer_forward.25} parent=0 // pred_check
    %p292 = pneg %p12
  $region15: #{transformer_forward.25} parent=0 // pred_check_branch
    %294 = sbr.rel (%p292) target = $region17
  $region16: #{transformer_forward.25} parent=0 // pred_region
    %v295 = vld [vmem:[#allocation2] sm:$0xff]
    %v296 = vld [vmem:[#allocation2 + $0x8] sm:$0xff]
    %v297 = vld [vmem:[#allocation2 + $0x10] sm:$0xff]
    %v298 = vld [vmem:[#allocation2 + $0x18] sm:$0xff]
    %v299 = vld [vmem:[#allocation2 + $0x20] sm:$0xff]
    %v300 = vld [vmem:[#allocation2 + $0x28] sm:$0xff]
    %v301 = vpack.c.bf16 %v298, %v295
    %v302 = vpack.c.bf16 %v299, %v296
    %v303 = vpack.c.bf16 %v300, %v297
    %v307 = vunpack.c.l.b16 %v301
    %v308 = vunpack.c.l.b16 %v302
    %v309 = vunpack.c.l.b16 %v303
    %v310 = vunpack.c.h.b16 %v301
    %v311 = vunpack.c.h.b16 %v302
    %v312 = vunpack.c.h.b16 %v303
    %v313 = vpack.c.b16 %v308, %v307
    %v314 = vpack.c.b16 %v309, %v309
    %v315 = vpack.c.b16 %v311, %v310
    %v316 = vpack.c.b16 %v312, %v312
    %321 = vst [vmem:[%s2] sm:$0xff] %v313
    %322 = vst [vmem:[%s2 + $0x8] sm:$0xf] %v314
    %323 = vst [vmem:[%s2 + $0xc] sm:$0xff] %v315
    %324 = vst [vmem:[%s2 + $0x14] sm:$0xf] %v316
  $region17: #{transformer_forward.25} parent=0 // pred_fallthru
    _
  // Predicated region
  $region18: #{transformer_forward.25} parent=0 // pred_check
    _
  $region19: #{transformer_forward.25} parent=0 // pred_check_branch
    %326 = sbr.rel (0) target = $region21
  $region20: #{transformer_forward.25} parent=0 // pred_region
    _
  $region21: #{transformer_forward.25} parent=0 // pred_fallthru
    _
  // Predicated region
  $region22: #{transformer_forward.25} parent=0 // pred_check
    _
  $region23: #{transformer_forward.25} parent=0 // pred_check_branch
    %328 = sbr.rel (0) target = $region25
  $region24: #{transformer_forward.25} parent=0 // pred_region
    _
  $region25: #{transformer_forward.25} parent=0 // pred_fallthru
    _

// kernel: transformer_forward.28
$region0: #{transformer_forward.28}
  #allocation0 [shape = 'u32[]', space=smem, size = 0x4, offset = 0x4, fixed_abs, tag = 'smem constant byte address 0x4 - core index']
  #allocation1 [shape = 'u32[144,128]{1,0:T(1,128)}', space=vmem, size = 0x12000, scoped, tag = 'internal scratch']
  #allocation2 [shape = 'f32[16,128]{1,0:T(8,128)}', space=vmem, size = 0x2000, scoped, tag = 'scratch operand']
  %s0 = inlined_call_operand.vmem [shape: bf16[16,128], index: 0, kind: input, shape index: {}, may-alias: {0,3}]
  %s1 = inlined_call_operand.vmem [shape: bf16[128,512], index: 1, kind: input, shape index: {}]
  %s2 = inlined_call_operand.vmem [shape: bf16[512,128], index: 2, kind: input, shape index: {}]
  %s3 = inlined_call_operand.vmem [shape: bf16[16,128], index: 3, kind: input, shape index: {}, may-alias: {0,3}]
  %s4 = inlined_call_operand.vmem [shape: f32[1,128], index: 4, kind: input, shape index: {}]
  %s5 = inlined_call_operand.vmem [shape: bf16[16,128], index: 5, kind: output, shape index: {}]
  %s6 = sld [smem:[#allocation0]]
  $region38: #{transformer_forward.28} parent=0
    _
  %s8 = ssub.s32 1, %s6
  %s9 = scalar_select 0, %s8, %s6
  // Predicated region
  $region2: #{transformer_forward.28} parent=0 // pred_check
    _
  $region3: #{transformer_forward.28} parent=0 // pred_check_branch
    %11 = sbr.rel (0) target = $region5
  $region4: #{transformer_forward.28} parent=0 // pred_region
    _
  $region5: #{transformer_forward.28} parent=0 // pred_fallthru
    _
  // Predicated region
  $region6: #{transformer_forward.28} parent=0 // pred_check
    _
  $region7: #{transformer_forward.28} parent=0 // pred_check_branch
    %13 = sbr.rel (0) target = $region9
  $region8: #{transformer_forward.28} parent=0 // pred_region
    _
  $region9: #{transformer_forward.28} parent=0 // pred_fallthru
    _
  // Predicated region
  $region10: #{transformer_forward.28} parent=0 // pred_check
    _
  $region11: #{transformer_forward.28} parent=0 // pred_check_branch
    %15 = sbr.rel (0) target = $region13
  $region12: #{transformer_forward.28} parent=0 // pred_region
    _
  $region13: #{transformer_forward.28} parent=0 // pred_fallthru
    _
  // Predicated region
  $region14: #{transformer_forward.28} parent=0 // pred_check
    _
  $region15: #{transformer_forward.28} parent=0 // pred_check_branch
    %17 = sbr.rel (0) target = $region17
  $region16: #{transformer_forward.28} parent=0 // pred_region
    _
  $region17: #{transformer_forward.28} parent=0 // pred_fallthru
    _
  // Predicated region
  $region18: #{transformer_forward.28} parent=0 // pred_check
    _
  $region19: #{transformer_forward.28} parent=0 // pred_check_branch
    %19 = sbr.rel (0) target = $region21
  $region20: #{transformer_forward.28} parent=0 // pred_region
    _
  $region21: #{transformer_forward.28} parent=0 // pred_fallthru
    _
  %p21 = scmp.eq.s32.totalorder 0, 0
  // Predicated region
  $region22: #{transformer_forward.28} parent=0 // pred_check
    %p22 = pneg %p21
  $region23: #{transformer_forward.28} parent=0 // pred_check_branch
    %24 = sbr.rel (%p22) target = $region25
  $region24: #{transformer_forward.28} parent=0 // pred_region
    %25 = vst [vmem:[#allocation2] sm:$0xff] 0.0
    %26 = vst [vmem:[#allocation2 + $0x8] sm:$0xff] 0.0
  $region25: #{transformer_forward.28} parent=0 // pred_fallthru
    _
  %v27 = vld [vmem:[%s0] sm:$0xf]
  %v28 = vld [vmem:[%s0 + $0x4] sm:$0xf]
  %v29 = vld [vmem:[%s1] sm:$0xff]
  %v30 = vld [vmem:[%s1 + $0x8] sm:$0xff]
  %v31 = vld [vmem:[%s1 + $0x10] sm:$0xff]
  %v32 = vld [vmem:[%s1 + $0x18] sm:$0xff]
  %v33 = vld [vmem:[%s1 + $0x20] sm:$0xff]
  %v34 = vld [vmem:[%s1 + $0x28] sm:$0xff]
  %v35 = vld [vmem:[%s1 + $0x30] sm:$0xff]
  %v36 = vld [vmem:[%s1 + $0x38] sm:$0xff]
  %v37 = vld [vmem:[%s1 + $0x40] sm:$0xff]
  %v38 = vld [vmem:[%s1 + $0x48] sm:$0xff]
  %v39 = vld [vmem:[%s1 + $0x50] sm:$0xff]
  %v40 = vld [vmem:[%s1 + $0x58] sm:$0xff]
  %v41 = vld [vmem:[%s1 + $0x60] sm:$0xff]
  %v42 = vld [vmem:[%s1 + $0x68] sm:$0xff]
  %v43 = vld [vmem:[%s1 + $0x70] sm:$0xff]
  %v44 = vld [vmem:[%s1 + $0x78] sm:$0xff]
  %v45 = vld [vmem:[%s1 + $0x80] sm:$0xff]
  %v46 = vld [vmem:[%s1 + $0x88] sm:$0xff]
  %v47 = vld [vmem:[%s1 + $0x90] sm:$0xff]
  %v48 = vld [vmem:[%s1 + $0x98] sm:$0xff]
  %v49 = vld [vmem:[%s1 + $0xa0] sm:$0xff]
  %v50 = vld [vmem:[%s1 + $0xa8] sm:$0xff]
  %v51 = vld [vmem:[%s1 + $0xb0] sm:$0xff]
  %v52 = vld [vmem:[%s1 + $0xb8] sm:$0xff]
  %v53 = vld [vmem:[%s1 + $0xc0] sm:$0xff]
  %v54 = vld [vmem:[%s1 + $0xc8] sm:$0xff]
  %v55 = vld [vmem:[%s1 + $0xd0] sm:$0xff]
  %v56 = vld [vmem:[%s1 + $0xd8] sm:$0xff]
  %v57 = vld [vmem:[%s1 + $0xe0] sm:$0xff]
  %v58 = vld [vmem:[%s1 + $0xe8] sm:$0xff]
  %v59 = vld [vmem:[%s1 + $0xf0] sm:$0xff]
  %v60 = vld [vmem:[%s1 + $0xf8] sm:$0xff]
  %v63 = vunpack.c.l.b16 %v27
  %v64 = vunpack.c.l.b16 %v28
  %v65 = vpack.c.b16 %v64, %v63
  %v99 = vunpack.c.l.b16 %v29
  %v100 = vunpack.c.h.b16 %v29
  %v101 = vunpack.c.l.b16 %v30
  %v102 = vunpack.c.h.b16 %v30
  %v103 = vunpack.c.l.b16 %v31
  %v104 = vunpack.c.h.b16 %v31
  %v105 = vunpack.c.l.b16 %v32
  %v106 = vunpack.c.h.b16 %v32
  %v107 = vunpack.c.l.b16 %v33
  %v108 = vunpack.c.h.b16 %v33
  %v109 = vunpack.c.l.b16 %v34
  %v110 = vunpack.c.h.b16 %v34
  %v111 = vunpack.c.l.b16 %v35
  %v112 = vunpack.c.h.b16 %v35
  %v113 = vunpack.c.l.b16 %v36
  %v114 = vunpack.c.h.b16 %v36
  %v115 = vunpack.c.l.b16 %v37
  %v116 = vunpack.c.h.b16 %v37
  %v117 = vunpack.c.l.b16 %v38
  %v118 = vunpack.c.h.b16 %v38
  %v119 = vunpack.c.l.b16 %v39
  %v120 = vunpack.c.h.b16 %v39
  %v121 = vunpack.c.l.b16 %v40
  %v122 = vunpack.c.h.b16 %v40
  %v123 = vunpack.c.l.b16 %v41
  %v124 = vunpack.c.h.b16 %v41
  %v125 = vunpack.c.l.b16 %v42
  %v126 = vunpack.c.h.b16 %v42
  %v127 = vunpack.c.l.b16 %v43
  %v128 = vunpack.c.h.b16 %v43
  %v129 = vunpack.c.l.b16 %v44
  %v130 = vunpack.c.h.b16 %v44
  %v131 = vunpack.c.l.b16 %v45
  %v132 = vunpack.c.h.b16 %v45
  %v133 = vunpack.c.l.b16 %v46
  %v134 = vunpack.c.h.b16 %v46
  %v135 = vunpack.c.l.b16 %v47
  %v136 = vunpack.c.h.b16 %v47
  %v137 = vunpack.c.l.b16 %v48
  %v138 = vunpack.c.h.b16 %v48
  %v139 = vunpack.c.l.b16 %v49
  %v140 = vunpack.c.h.b16 %v49
  %v141 = vunpack.c.l.b16 %v50
  %v142 = vunpack.c.h.b16 %v50
  %v143 = vunpack.c.l.b16 %v51
  %v144 = vunpack.c.h.b16 %v51
  %v145 = vunpack.c.l.b16 %v52
  %v146 = vunpack.c.h.b16 %v52
  %v147 = vunpack.c.l.b16 %v53
  %v148 = vunpack.c.h.b16 %v53
  %v149 = vunpack.c.l.b16 %v54
  %v150 = vunpack.c.h.b16 %v54
  %v151 = vunpack.c.l.b16 %v55
  %v152 = vunpack.c.h.b16 %v55
  %v153 = vunpack.c.l.b16 %v56
  %v154 = vunpack.c.h.b16 %v56
  %v155 = vunpack.c.l.b16 %v57
  %v156 = vunpack.c.h.b16 %v57
  %v157 = vunpack.c.l.b16 %v58
  %v158 = vunpack.c.h.b16 %v58
  %v159 = vunpack.c.l.b16 %v59
  %v160 = vunpack.c.h.b16 %v59
  %v161 = vunpack.c.l.b16 %v60
  %v162 = vunpack.c.h.b16 %v60
  %v163 = vpack.c.b16 %v103, %v99
  %v164 = vpack.c.b16 %v104, %v100
  %v165 = vpack.c.b16 %v105, %v101
  %v166 = vpack.c.b16 %v106, %v102
  %v167 = vpack.c.b16 %v111, %v107
  %v168 = vpack.c.b16 %v112, %v108
  %v169 = vpack.c.b16 %v113, %v109
  %v170 = vpack.c.b16 %v114, %v110
  %v171 = vpack.c.b16 %v119, %v115
  %v172 = vpack.c.b16 %v120, %v116
  %v173 = vpack.c.b16 %v121, %v117
  %v174 = vpack.c.b16 %v122, %v118
  %v175 = vpack.c.b16 %v127, %v123
  %v176 = vpack.c.b16 %v128, %v124
  %v177 = vpack.c.b16 %v129, %v125
  %v178 = vpack.c.b16 %v130, %v126
  %v179 = vpack.c.b16 %v135, %v131
  %v180 = vpack.c.b16 %v136, %v132
  %v181 = vpack.c.b16 %v137, %v133
  %v182 = vpack.c.b16 %v138, %v134
  %v183 = vpack.c.b16 %v143, %v139
  %v184 = vpack.c.b16 %v144, %v140
  %v185 = vpack.c.b16 %v145, %v141
  %v186 = vpack.c.b16 %v146, %v142
  %v187 = vpack.c.b16 %v151, %v147
  %v188 = vpack.c.b16 %v152, %v148
  %v189 = vpack.c.b16 %v153, %v149
  %v190 = vpack.c.b16 %v154, %v150
  %v191 = vpack.c.b16 %v159, %v155
  %v192 = vpack.c.b16 %v160, %v156
  %v193 = vpack.c.b16 %v161, %v157
  %v194 = vpack.c.b16 %v162, %v158
  %227 = vmatprep.subr.bf16.mxu0 %v164
  %228 = vmatpush1.bf16.msra.mxu0 %v163
  %229 = vmatprep.subr.bf16.mxu0 %v168
  %230 = vmatpush1.bf16.msra.mxu0 %v167
  %231 = vmatprep.subr.bf16.mxu0 %v172
  %232 = vmatpush1.bf16.msra.mxu0 %v171
  %233 = vmatprep.subr.bf16.mxu0 %v176
  %234 = vmatpush1.bf16.msra.mxu0 %v175
  %235 = vmatprep.subr.bf16.mxu0 %v180
  %236 = vmatpush1.bf16.msra.mxu0 %v179
  %237 = vmatprep.subr.bf16.mxu0 %v184
  %238 = vmatpush1.bf16.msra.mxu0 %v183
  %239 = vmatprep.subr.bf16.mxu0 %v188
  %240 = vmatpush1.bf16.msra.mxu0 %v187
  %241 = vmatprep.subr.bf16.mxu0 %v192
  %242 = vmatpush1.bf16.msra.mxu0 %v191
  %243 = vmatprep.subr.bf16.mxu0 0
  %244 = vmatpush1.bf16.msra.mxu0 0
  %245 = vmatprep.subr.bf16.mxu0 0
  %246 = vmatpush1.bf16.msra.mxu0 0
  %247 = vmatprep.subr.bf16.mxu0 0
  %248 = vmatpush1.bf16.msra.mxu0 0
  %249 = vmatprep.subr.bf16.mxu0 0
  %250 = vmatpush1.bf16.msra.mxu0 0
  %251 = vmatprep.subr.bf16.mxu0 0
  %252 = vmatpush1.bf16.msra.mxu0 0
  %253 = vmatprep.subr.bf16.mxu0 0
  %254 = vmatpush1.bf16.msra.mxu0 0
  %255 = vmatprep.subr.bf16.mxu0 0
  %256 = vmatpush1.bf16.msra.mxu0 0
  %257 = vmatprep.subr.bf16.mxu0 0
  %258 = vmatpush1.bf16.msra.mxu0 0
  %259 = vmatprep.mubr.bf16.mxu0 0
  %260 = vmatmul.mubr.bf16.gmra.mrb[0].mxu0 %v65
  %v261 = vpop.f32.mrb[0].mxu0
  %v262 = vadd.f32 0.0, %v261
  %v263 = vpop.f32.mrb[0].mxu0
  %v264 = vadd.f32 0.0, %v263
  %v265 = vpop.f32.mrb[0].mxu0
  %v266 = vadd.f32 0.0, %v265
  %v267 = vpop.f32.mrb[0].mxu0
  %v268 = vadd.f32 0.0, %v267
  %269 = vdwg.mxu0
  %270 = vmatprep.subr.bf16.mxu0 %v166
  %271 = vmatpush1.bf16.msra.mxu0 %v165
  %272 = vmatprep.subr.bf16.mxu0 %v170
  %273 = vmatpush1.bf16.msra.mxu0 %v169
  %274 = vmatprep.subr.bf16.mxu0 %v174
  %275 = vmatpush1.bf16.msra.mxu0 %v173
  %276 = vmatprep.subr.bf16.mxu0 %v178
  %277 = vmatpush1.bf16.msra.mxu0 %v177
  %278 = vmatprep.subr.bf16.mxu0 %v182
  %279 = vmatpush1.bf16.msra.mxu0 %v181
  %280 = vmatprep.subr.bf16.mxu0 %v186
  %281 = vmatpush1.bf16.msra.mxu0 %v185
  %282 = vmatprep.subr.bf16.mxu0 %v190
  %283 = vmatpush1.bf16.msra.mxu0 %v189
  %284 = vmatprep.subr.bf16.mxu0 %v194
  %285 = vmatpush1.bf16.msra.mxu0 %v193
  %286 = vmatprep.subr.bf16.mxu0 0
  %287 = vmatpush1.bf16.msra.mxu0 0
  %288 = vmatprep.subr.bf16.mxu0 0
  %289 = vmatpush1.bf16.msra.mxu0 0
  %290 = vmatprep.subr.bf16.mxu0 0
  %291 = vmatpush1.bf16.msra.mxu0 0
  %292 = vmatprep.subr.bf16.mxu0 0
  %293 = vmatpush1.bf16.msra.mxu0 0
  %294 = vmatprep.subr.bf16.mxu0 0
  %295 = vmatpush1.bf16.msra.mxu0 0
  %296 = vmatprep.subr.bf16.mxu0 0
  %297 = vmatpush1.bf16.msra.mxu0 0
  %298 = vmatprep.subr.bf16.mxu0 0
  %299 = vmatpush1.bf16.msra.mxu0 0
  %300 = vmatprep.subr.bf16.mxu0 0
  %301 = vmatpush1.bf16.msra.mxu0 0
  %302 = vmatprep.mubr.bf16.mxu0 0
  %303 = vmatmul.mubr.bf16.gmra.mrb[0].mxu0 %v65
  %v304 = vpop.f32.mrb[0].mxu0
  %v305 = vadd.f32 0.0, %v304
  %v306 = vpop.f32.mrb[0].mxu0
  %v307 = vadd.f32 0.0, %v306
  %v308 = vpop.f32.mrb[0].mxu0
  %v309 = vadd.f32 0.0, %v308
  %v310 = vpop.f32.mrb[0].mxu0
  %v311 = vadd.f32 0.0, %v310
  %312 = vdwg.mxu0
  %v313 = vmax.f32 %v262, 0.0
  %v314 = vmax.f32 %v264, 0.0
  %v315 = vmax.f32 %v305, 0.0
  %v316 = vmax.f32 %v307, 0.0
  %v317 = vmax.f32 %v266, 0.0
  %v318 = vmax.f32 %v268, 0.0
  %v319 = vmax.f32 %v309, 0.0
  %v320 = vmax.f32 %v311, 0.0
  %v321 = vpack.c.bf16 %v317, %v313
  %v322 = vpack.c.bf16 %v318, %v314
  %v323 = vpack.c.bf16 %v319, %v315
  %v324 = vpack.c.bf16 %v320, %v316
  %v325 = vld [vmem:[#allocation2] sm:$0xff]
  %v326 = vld [vmem:[#allocation2 + $0x8] sm:$0xff]
  %v327 = vld [vmem:[%s2] sm:$0xf]
  %v328 = vld [vmem:[%s2 + $0x4] sm:$0xf]
  %v329 = vld [vmem:[%s2 + $0x8] sm:$0xf]
  %v330 = vld [vmem:[%s2 + $0xc] sm:$0xf]
  %v331 = vld [vmem:[%s2 + $0x10] sm:$0xf]
  %v332 = vld [vmem:[%s2 + $0x14] sm:$0xf]
  %v333 = vld [vmem:[%s2 + $0x18] sm:$0xf]
  %v334 = vld [vmem:[%s2 + $0x1c] sm:$0xf]
  %v335 = vld [vmem:[%s2 + $0x20] sm:$0xf]
  %v336 = vld [vmem:[%s2 + $0x24] sm:$0xf]
  %v337 = vld [vmem:[%s2 + $0x28] sm:$0xf]
  %v338 = vld [vmem:[%s2 + $0x2c] sm:$0xf]
  %v339 = vld [vmem:[%s2 + $0x30] sm:$0xf]
  %v340 = vld [vmem:[%s2 + $0x34] sm:$0xf]
  %v341 = vld [vmem:[%s2 + $0x38] sm:$0xf]
  %v342 = vld [vmem:[%s2 + $0x3c] sm:$0xf]
  %v343 = vld [vmem:[%s2 + $0x40] sm:$0xf]
  %v344 = vld [vmem:[%s2 + $0x44] sm:$0xf]
  %v345 = vld [vmem:[%s2 + $0x48] sm:$0xf]
  %v346 = vld [vmem:[%s2 + $0x4c] sm:$0xf]
  %v347 = vld [vmem:[%s2 + $0x50] sm:$0xf]
  %v348 = vld [vmem:[%s2 + $0x54] sm:$0xf]
  %v349 = vld [vmem:[%s2 + $0x58] sm:$0xf]
  %v350 = vld [vmem:[%s2 + $0x5c] sm:$0xf]
  %v351 = vld [vmem:[%s2 + $0x60] sm:$0xf]
  %v352 = vld [vmem:[%s2 + $0x64] sm:$0xf]
  %v353 = vld [vmem:[%s2 + $0x68] sm:$0xf]
  %v354 = vld [vmem:[%s2 + $0x6c] sm:$0xf]
  %v355 = vld [vmem:[%s2 + $0x70] sm:$0xf]
  %v356 = vld [vmem:[%s2 + $0x74] sm:$0xf]
  %v357 = vld [vmem:[%s2 + $0x78] sm:$0xf]
  %v358 = vld [vmem:[%s2 + $0x7c] sm:$0xf]
  %v359 = vld [vmem:[%s2 + $0x80] sm:$0xf]
  %v360 = vld [vmem:[%s2 + $0x84] sm:$0xf]
  %v361 = vld [vmem:[%s2 + $0x88] sm:$0xf]
  %v362 = vld [vmem:[%s2 + $0x8c] sm:$0xf]
  %v363 = vld [vmem:[%s2 + $0x90] sm:$0xf]
  %v364 = vld [vmem:[%s2 + $0x94] sm:$0xf]
  %v365 = vld [vmem:[%s2 + $0x98] sm:$0xf]
  %v366 = vld [vmem:[%s2 + $0x9c] sm:$0xf]
  %v367 = vld [vmem:[%s2 + $0xa0] sm:$0xf]
  %v368 = vld [vmem:[%s2 + $0xa4] sm:$0xf]
  %v369 = vld [vmem:[%s2 + $0xa8] sm:$0xf]
  %v370 = vld [vmem:[%s2 + $0xac] sm:$0xf]
  %v371 = vld [vmem:[%s2 + $0xb0] sm:$0xf]
  %v372 = vld [vmem:[%s2 + $0xb4] sm:$0xf]
  %v373 = vld [vmem:[%s2 + $0xb8] sm:$0xf]
  %v374 = vld [vmem:[%s2 + $0xbc] sm:$0xf]
  %v375 = vld [vmem:[%s2 + $0xc0] sm:$0xf]
  %v376 = vld [vmem:[%s2 + $0xc4] sm:$0xf]
  %v377 = vld [vmem:[%s2 + $0xc8] sm:$0xf]
  %v378 = vld [vmem:[%s2 + $0xcc] sm:$0xf]
  %v379 = vld [vmem:[%s2 + $0xd0] sm:$0xf]
  %v380 = vld [vmem:[%s2 + $0xd4] sm:$0xf]
  %v381 = vld [vmem:[%s2 + $0xd8] sm:$0xf]
  %v382 = vld [vmem:[%s2 + $0xdc] sm:$0xf]
  %v383 = vld [vmem:[%s2 + $0xe0] sm:$0xf]
  %v384 = vld [vmem:[%s2 + $0xe4] sm:$0xf]
  %v385 = vld [vmem:[%s2 + $0xe8] sm:$0xf]
  %v386 = vld [vmem:[%s2 + $0xec] sm:$0xf]
  %v387 = vld [vmem:[%s2 + $0xf0] sm:$0xf]
  %v388 = vld [vmem:[%s2 + $0xf4] sm:$0xf]
  %v389 = vld [vmem:[%s2 + $0xf8] sm:$0xf]
  %v390 = vld [vmem:[%s2 + $0xfc] sm:$0xf]
  %v455 = vunpack.c.l.b16 %v327
  %v456 = vunpack.c.l.b16 %v328
  %v457 = vunpack.c.l.b16 %v329
  %v458 = vunpack.c.l.b16 %v330
  %v459 = vunpack.c.l.b16 %v331
  %v460 = vunpack.c.l.b16 %v332
  %v461 = vunpack.c.l.b16 %v333
  %v462 = vunpack.c.l.b16 %v334
  %v463 = vunpack.c.l.b16 %v335
  %v464 = vunpack.c.l.b16 %v336
  %v465 = vunpack.c.l.b16 %v337
  %v466 = vunpack.c.l.b16 %v338
  %v467 = vunpack.c.l.b16 %v339
  %v468 = vunpack.c.l.b16 %v340
  %v469 = vunpack.c.l.b16 %v341
  %v470 = vunpack.c.l.b16 %v342
  %v471 = vunpack.c.l.b16 %v343
  %v472 = vunpack.c.l.b16 %v344
  %v473 = vunpack.c.l.b16 %v345
  %v474 = vunpack.c.l.b16 %v346
  %v475 = vunpack.c.l.b16 %v347
  %v476 = vunpack.c.l.b16 %v348
  %v477 = vunpack.c.l.b16 %v349
  %v478 = vunpack.c.l.b16 %v350
  %v479 = vunpack.c.l.b16 %v351
  %v480 = vunpack.c.l.b16 %v352
  %v481 = vunpack.c.l.b16 %v353
  %v482 = vunpack.c.l.b16 %v354
  %v483 = vunpack.c.l.b16 %v355
  %v484 = vunpack.c.l.b16 %v356
  %v485 = vunpack.c.l.b16 %v357
  %v486 = vunpack.c.l.b16 %v358
  %v487 = vunpack.c.l.b16 %v359
  %v488 = vunpack.c.l.b16 %v360
  %v489 = vunpack.c.l.b16 %v361
  %v490 = vunpack.c.l.b16 %v362
  %v491 = vunpack.c.l.b16 %v363
  %v492 = vunpack.c.l.b16 %v364
  %v493 = vunpack.c.l.b16 %v365
  %v494 = vunpack.c.l.b16 %v366
  %v495 = vunpack.c.l.b16 %v367
  %v496 = vunpack.c.l.b16 %v368
  %v497 = vunpack.c.l.b16 %v369
  %v498 = vunpack.c.l.b16 %v370
  %v499 = vunpack.c.l.b16 %v371
  %v500 = vunpack.c.l.b16 %v372
  %v501 = vunpack.c.l.b16 %v373
  %v502 = vunpack.c.l.b16 %v374
  %v503 = vunpack.c.l.b16 %v375
  %v504 = vunpack.c.l.b16 %v376
  %v505 = vunpack.c.l.b16 %v377
  %v506 = vunpack.c.l.b16 %v378
  %v507 = vunpack.c.l.b16 %v379
  %v508 = vunpack.c.l.b16 %v380
  %v509 = vunpack.c.l.b16 %v381
  %v510 = vunpack.c.l.b16 %v382
  %v511 = vunpack.c.l.b16 %v383
  %v512 = vunpack.c.l.b16 %v384
  %v513 = vunpack.c.l.b16 %v385
  %v514 = vunpack.c.l.b16 %v386
  %v515 = vunpack.c.l.b16 %v387
  %v516 = vunpack.c.l.b16 %v388
  %v517 = vunpack.c.l.b16 %v389
  %v518 = vunpack.c.l.b16 %v390
  %v519 = vpack.c.b16 %v456, %v455
  %v520 = vpack.c.b16 %v458, %v457
  %v521 = vpack.c.b16 %v460, %v459
  %v522 = vpack.c.b16 %v462, %v461
  %v523 = vpack.c.b16 %v464, %v463
  %v524 = vpack.c.b16 %v466, %v465
  %v525 = vpack.c.b16 %v468, %v467
  %v526 = vpack.c.b16 %v470, %v469
  %v527 = vpack.c.b16 %v472, %v471
  %v528 = vpack.c.b16 %v474, %v473
  %v529 = vpack.c.b16 %v476, %v475
  %v530 = vpack.c.b16 %v478, %v477
  %v531 = vpack.c.b16 %v480, %v479
  %v532 = vpack.c.b16 %v482, %v481
  %v533 = vpack.c.b16 %v484, %v483
  %v534 = vpack.c.b16 %v486, %v485
  %v535 = vpack.c.b16 %v488, %v487
  %v536 = vpack.c.b16 %v490, %v489
  %v537 = vpack.c.b16 %v492, %v491
  %v538 = vpack.c.b16 %v494, %v493
  %v539 = vpack.c.b16 %v496, %v495
  %v540 = vpack.c.b16 %v498, %v497
  %v541 = vpack.c.b16 %v500, %v499
  %v542 = vpack.c.b16 %v502, %v501
  %v543 = vpack.c.b16 %v504, %v503
  %v544 = vpack.c.b16 %v506, %v505
  %v545 = vpack.c.b16 %v508, %v507
  %v546 = vpack.c.b16 %v510, %v509
  %v547 = vpack.c.b16 %v512, %v511
  %v548 = vpack.c.b16 %v514, %v513
  %v549 = vpack.c.b16 %v516, %v515
  %v550 = vpack.c.b16 %v518, %v517
  %583 = vmatprep.subr.bf16.mxu0 0
  %584 = vmatpush1.bf16.msra.mxu0 %v519
  %585 = vmatprep.subr.bf16.mxu0 0
  %586 = vmatpush1.bf16.msra.mxu0 %v520
  %587 = vmatprep.subr.bf16.mxu0 0
  %588 = vmatpush1.bf16.msra.mxu0 %v521
  %589 = vmatprep.subr.bf16.mxu0 0
  %590 = vmatpush1.bf16.msra.mxu0 %v522
  %591 = vmatprep.subr.bf16.mxu0 0
  %592 = vmatpush1.bf16.msra.mxu0 %v523
  %593 = vmatprep.subr.bf16.mxu0 0
  %594 = vmatpush1.bf16.msra.mxu0 %v524
  %595 = vmatprep.subr.bf16.mxu0 0
  %596 = vmatpush1.bf16.msra.mxu0 %v525
  %597 = vmatprep.subr.bf16.mxu0 0
  %598 = vmatpush1.bf16.msra.mxu0 %v526
  %599 = vmatprep.subr.bf16.mxu0 0
  %600 = vmatpush1.bf16.msra.mxu0 %v527
  %601 = vmatprep.subr.bf16.mxu0 0
  %602 = vmatpush1.bf16.msra.mxu0 %v528
  %603 = vmatprep.subr.bf16.mxu0 0
  %604 = vmatpush1.bf16.msra.mxu0 %v529
  %605 = vmatprep.subr.bf16.mxu0 0
  %606 = vmatpush1.bf16.msra.mxu0 %v530
  %607 = vmatprep.subr.bf16.mxu0 0
  %608 = vmatpush1.bf16.msra.mxu0 %v531
  %609 = vmatprep.subr.bf16.mxu0 0
  %610 = vmatpush1.bf16.msra.mxu0 %v532
  %611 = vmatprep.subr.bf16.mxu0 0
  %612 = vmatpush1.bf16.msra.mxu0 %v533
  %613 = vmatprep.subr.bf16.mxu0 0
  %614 = vmatpush1.bf16.msra.mxu0 %v534
  %615 = vmatprep.mubr.bf16.mxu0 %v322
  %616 = vmatmul.mubr.bf16.gmra.mrb[0].mxu0 %v321
  %v617 = vpop.f32.mrb[0].mxu0
  %v618 = vadd.f32 0.0, %v617
  %v619 = vpop.f32.mrb[0].mxu0
  %v620 = vpop.f32.mrb[0].mxu0
  %v621 = vadd.f32 0.0, %v620
  %v622 = vpop.f32.mrb[0].mxu0
  %623 = vdwg.mxu0
  %624 = vmatprep.subr.bf16.mxu0 0
  %625 = vmatpush1.bf16.msra.mxu0 %v535
  %626 = vmatprep.subr.bf16.mxu0 0
  %627 = vmatpush1.bf16.msra.mxu0 %v536
  %628 = vmatprep.subr.bf16.mxu0 0
  %629 = vmatpush1.bf16.msra.mxu0 %v537
  %630 = vmatprep.subr.bf16.mxu0 0
  %631 = vmatpush1.bf16.msra.mxu0 %v538
  %632 = vmatprep.subr.bf16.mxu0 0
  %633 = vmatpush1.bf16.msra.mxu0 %v539
  %634 = vmatprep.subr.bf16.mxu0 0
  %635 = vmatpush1.bf16.msra.mxu0 %v540
  %636 = vmatprep.subr.bf16.mxu0 0
  %637 = vmatpush1.bf16.msra.mxu0 %v541
  %638 = vmatprep.subr.bf16.mxu0 0
  %639 = vmatpush1.bf16.msra.mxu0 %v542
  %640 = vmatprep.subr.bf16.mxu0 0
  %641 = vmatpush1.bf16.msra.mxu0 %v543
  %642 = vmatprep.subr.bf16.mxu0 0
  %643 = vmatpush1.bf16.msra.mxu0 %v544
  %644 = vmatprep.subr.bf16.mxu0 0
  %645 = vmatpush1.bf16.msra.mxu0 %v545
  %646 = vmatprep.subr.bf16.mxu0 0
  %647 = vmatpush1.bf16.msra.mxu0 %v546
  %648 = vmatprep.subr.bf16.mxu0 0
  %649 = vmatpush1.bf16.msra.mxu0 %v547
  %650 = vmatprep.subr.bf16.mxu0 0
  %651 = vmatpush1.bf16.msra.mxu0 %v548
  %652 = vmatprep.subr.bf16.mxu0 0
  %653 = vmatpush1.bf16.msra.mxu0 %v549
  %654 = vmatprep.subr.bf16.mxu0 0
  %655 = vmatpush1.bf16.msra.mxu0 %v550
  %656 = vmatprep.mubr.bf16.mxu0 %v324
  %657 = vmatmul.mubr.bf16.gmra.mrb[0].mxu0 %v323
  %v658 = vpop.f32.mrb[0].mxu0
  %v659 = vadd.f32 %v618, %v658
  %v660 = vpop.f32.mrb[0].mxu0
  %v661 = vpop.f32.mrb[0].mxu0
  %v662 = vadd.f32 %v621, %v661
  %v663 = vpop.f32.mrb[0].mxu0
  %664 = vdwg.mxu0
  %v665 = vadd.f32 %v325, %v659
  %v666 = vadd.f32 %v326, %v662
  %667 = vst [vmem:[#allocation2] sm:$0xff] %v665
  %668 = vst [vmem:[#allocation2 + $0x8] sm:$0xff] %v666
  // Predicated region
  $region26: #{transformer_forward.28} parent=0 // pred_check
    %p669 = pneg %p21
  $region27: #{transformer_forward.28} parent=0 // pred_check_branch
    %671 = sbr.rel (%p669) target = $region29
  $region28: #{transformer_forward.28} parent=0 // pred_region
    %v672 = vld [vmem:[#allocation2] sm:$0xff]
    %v673 = vld [vmem:[#allocation2 + $0x8] sm:$0xff]
    %v674 = vld [vmem:[%s3] sm:$0xf]
    %v675 = vld [vmem:[%s3 + $0x4] sm:$0xf]
    %v676 = vunpack.c.l.bf16 %v674
    %v677 = vunpack.c.l.bf16 %v675
    %v678 = vadd.f32 %v672, %v676
    %v679 = vadd.f32 %v673, %v677
    %680 = vadd.xlane.f32.xlu0 %v678
    %v681 = vpop.xlane.xlu0 %680
    %682 = vadd.xlane.f32.xlu0 %v679
    %v683 = vpop.xlane.xlu0 %682
    %v684 = vrcp.pop 128.0
    %v685 = vmul.f32 %v681, %v684
    %v686 = vmul.f32 %v683, %v684
    %v687 = vsub.f32 %v678, %v685
    %v688 = vsub.f32 %v679, %v686
    %v689 = vmul.f32 %v687, %v687
    %v690 = vmul.f32 %v688, %v688
    %691 = vadd.xlane.f32.xlu0 %v689
    %v692 = vpop.xlane.xlu0 %691
    %693 = vadd.xlane.f32.xlu0 %v690
    %v694 = vpop.xlane.xlu0 %693
    %v695 = vmul.f32 %v692, %v684
    %v696 = vmul.f32 %v694, %v684
    %v697 = vadd.f32 %v695, 1e-05
    %v698 = vadd.f32 %v696, 1e-05
    %v699 = vrsqrt.pop %v697
    %v700 = vrsqrt.pop %v698
    %v701 = vmul.f32 %v687, %v699
    %v702 = vmul.f32 %v688, %v700
    %v703 = vld [vmem:[%s4] sm:$0x1]
    %v705 = vlaneseq
    %v706 = vshrl.u32 %v705, 7
    %v707 = vsub.s32 0, %v706
    %v708 = vrot.slane %v703, %v707
    %v710 = vmul.f32 %v701, %v708
    %v711 = vmul.f32 %v702, %v708
    %v712 = vpack.c.bf16 %v711, %v710
    %v714 = vunpack.c.l.b16 %v712
    %v715 = vunpack.c.h.b16 %v712
    %v716 = vpack.c.b16 %v714, %v714
    %v717 = vpack.c.b16 %v715, %v715
    %720 = vst [vmem:[%s5] sm:$0xf] %v716
    %721 = vst [vmem:[%s5 + $0x4] sm:$0xf] %v717
  $region29: #{transformer_forward.28} parent=0 // pred_fallthru
    _
  // Predicated region
  $region30: #{transformer_forward.28} parent=0 // pred_check
    _
  $region31: #{transformer_forward.28} parent=0 // pred_check_branch
    %723 = sbr.rel (0) target = $region33
  $region32: #{transformer_forward.28} parent=0 // pred_region
    _
  $region33: #{transformer_forward.28} parent=0 // pred_fallthru
    _
  // Predicated region
  $region34: #{transformer_forward.28} parent=0 // pred_check
    _
  $region35: #{transformer_forward.28} parent=0 // pred_check_branch
    %725 = sbr.rel (0) target = $region37
  $region36: #{transformer_forward.28} parent=0 // pred_region
    _
  $region37: #{transformer_forward.28} parent=0 // pred_fallthru
    _

// kernel: transformer_forward.45
$region0: #{transformer_forward.45}
  #allocation0 [shape = 'u32[]', space=smem, size = 0x4, offset = 0x4, fixed_abs, tag = 'smem constant byte address 0x4 - core index']
  #allocation1 [shape = 'u32[144,128]{1,0:T(1,128)}', space=vmem, size = 0x12000, scoped, tag = 'internal scratch']
  #allocation2 [shape = 'f32[16,256]{1,0:T(8,128)}', space=vmem, size = 0x4000, scoped, tag = 'scratch operand']
  %s0 = inlined_call_operand.vmem [shape: bf16[16,128], index: 0, kind: input, shape index: {}]
  %s1 = inlined_call_operand.vmem [shape: bf16[128,256], index: 1, kind: input, shape index: {}]
  %s2 = inlined_call_operand.vmem [shape: bf16[16,256], index: 2, kind: output, shape index: {}]
  %s3 = sld [smem:[#allocation0]]
  $region26: #{transformer_forward.45} parent=0
    _
  %s5 = ssub.s32 1, %s3
  %s6 = scalar_select 0, %s5, %s3
  // Predicated region
  $region2: #{transformer_forward.45} parent=0 // pred_check
    _
  $region3: #{transformer_forward.45} parent=0 // pred_check_branch
    %8 = sbr.rel (0) target = $region5
  $region4: #{transformer_forward.45} parent=0 // pred_region
    _
  $region5: #{transformer_forward.45} parent=0 // pred_fallthru
    _
  // Predicated region
  $region6: #{transformer_forward.45} parent=0 // pred_check
    _
  $region7: #{transformer_forward.45} parent=0 // pred_check_branch
    %10 = sbr.rel (0) target = $region9
  $region8: #{transformer_forward.45} parent=0 // pred_region
    _
  $region9: #{transformer_forward.45} parent=0 // pred_fallthru
    _
  %p12 = scmp.eq.s32.totalorder 0, 0
  // Predicated region
  $region10: #{transformer_forward.45} parent=0 // pred_check
    %p13 = pneg %p12
  $region11: #{transformer_forward.45} parent=0 // pred_check_branch
    %15 = sbr.rel (%p13) target = $region13
  $region12: #{transformer_forward.45} parent=0 // pred_region
    %16 = vst [vmem:[#allocation2] sm:$0xff] 0.0
    %17 = vst [vmem:[#allocation2 + $0x8] sm:$0xff] 0.0
    %18 = vst [vmem:[#allocation2 + $0x10] sm:$0xff] 0.0
    %19 = vst [vmem:[#allocation2 + $0x18] sm:$0xff] 0.0
  $region13: #{transformer_forward.45} parent=0 // pred_fallthru
    _
  %v20 = vld [vmem:[#allocation2] sm:$0xff]
  %v21 = vld [vmem:[#allocation2 + $0x8] sm:$0xff]
  %v22 = vld [vmem:[#allocation2 + $0x10] sm:$0xff]
  %v23 = vld [vmem:[#allocation2 + $0x18] sm:$0xff]
  %v24 = vld [vmem:[%s0] sm:$0xf]
  %v25 = vld [vmem:[%s0 + $0x4] sm:$0xf]
  %v26 = vld [vmem:[%s1] sm:$0xff]
  %v27 = vld [vmem:[%s1 + $0x8] sm:$0xff]
  %v28 = vld [vmem:[%s1 + $0x10] sm:$0xff]
  %v29 = vld [vmem:[%s1 + $0x18] sm:$0xff]
  %v30 = vld [vmem:[%s1 + $0x20] sm:$0xff]
  %v31 = vld [vmem:[%s1 + $0x28] sm:$0xff]
  %v32 = vld [vmem:[%s1 + $0x30] sm:$0xff]
  %v33 = vld [vmem:[%s1 + $0x38] sm:$0xff]
  %v34 = vld [vmem:[%s1 + $0x40] sm:$0xff]
  %v35 = vld [vmem:[%s1 + $0x48] sm:$0xff]
  %v36 = vld [vmem:[%s1 + $0x50] sm:$0xff]
  %v37 = vld [vmem:[%s1 + $0x58] sm:$0xff]
  %v38 = vld [vmem:[%s1 + $0x60] sm:$0xff]
  %v39 = vld [vmem:[%s1 + $0x68] sm:$0xff]
  %v40 = vld [vmem:[%s1 + $0x70] sm:$0xff]
  %v41 = vld [vmem:[%s1 + $0x78] sm:$0xff]
  %v44 = vunpack.c.l.b16 %v24
  %v45 = vunpack.c.l.b16 %v25
  %v46 = vpack.c.b16 %v45, %v44
  %v64 = vunpack.c.l.b16 %v26
  %v65 = vunpack.c.h.b16 %v26
  %v66 = vunpack.c.l.b16 %v27
  %v67 = vunpack.c.h.b16 %v27
  %v68 = vunpack.c.l.b16 %v28
  %v69 = vunpack.c.h.b16 %v28
  %v70 = vunpack.c.l.b16 %v29
  %v71 = vunpack.c.h.b16 %v29
  %v72 = vunpack.c.l.b16 %v30
  %v73 = vunpack.c.h.b16 %v30
  %v74 = vunpack.c.l.b16 %v31
  %v75 = vunpack.c.h.b16 %v31
  %v76 = vunpack.c.l.b16 %v32
  %v77 = vunpack.c.h.b16 %v32
  %v78 = vunpack.c.l.b16 %v33
  %v79 = vunpack.c.h.b16 %v33
  %v80 = vunpack.c.l.b16 %v34
  %v81 = vunpack.c.h.b16 %v34
  %v82 = vunpack.c.l.b16 %v35
  %v83 = vunpack.c.h.b16 %v35
  %v84 = vunpack.c.l.b16 %v36
  %v85 = vunpack.c.h.b16 %v36
  %v86 = vunpack.c.l.b16 %v37
  %v87 = vunpack.c.h.b16 %v37
  %v88 = vunpack.c.l.b16 %v38
  %v89 = vunpack.c.h.b16 %v38
  %v90 = vunpack.c.l.b16 %v39
  %v91 = vunpack.c.h.b16 %v39
  %v92 = vunpack.c.l.b16 %v40
  %v93 = vunpack.c.h.b16 %v40
  %v94 = vunpack.c.l.b16 %v41
  %v95 = vunpack.c.h.b16 %v41
  %v96 = vpack.c.b16 %v66, %v64
  %v97 = vpack.c.b16 %v67, %v65
  %v98 = vpack.c.b16 %v70, %v68
  %v99 = vpack.c.b16 %v71, %v69
  %v100 = vpack.c.b16 %v74, %v72
  %v101 = vpack.c.b16 %v75, %v73
  %v102 = vpack.c.b16 %v78, %v76
  %v103 = vpack.c.b16 %v79, %v77
  %v104 = vpack.c.b16 %v82, %v80
  %v105 = vpack.c.b16 %v83, %v81
  %v106 = vpack.c.b16 %v86, %v84
  %v107 = vpack.c.b16 %v87, %v85
  %v108 = vpack.c.b16 %v90, %v88
  %v109 = vpack.c.b16 %v91, %v89
  %v110 = vpack.c.b16 %v94, %v92
  %v111 = vpack.c.b16 %v95, %v93
  %128 = vmatprep.subr.bf16.mxu0 %v97
  %129 = vmatpush1.bf16.msra.mxu0 %v96
  %130 = vmatprep.subr.bf16.mxu0 %v99
  %131 = vmatpush1.bf16.msra.mxu0 %v98
  %132 = vmatprep.subr.bf16.mxu0 %v101
  %133 = vmatpush1.bf16.msra.mxu0 %v100
  %134 = vmatprep.subr.bf16.mxu0 %v103
  %135 = vmatpush1.bf16.msra.mxu0 %v102
  %136 = vmatprep.subr.bf16.mxu0 %v105
  %137 = vmatpush1.bf16.msra.mxu0 %v104
  %138 = vmatprep.subr.bf16.mxu0 %v107
  %139 = vmatpush1.bf16.msra.mxu0 %v106
  %140 = vmatprep.subr.bf16.mxu0 %v109
  %141 = vmatpush1.bf16.msra.mxu0 %v108
  %142 = vmatprep.subr.bf16.mxu0 %v111
  %143 = vmatpush1.bf16.msra.mxu0 %v110
  %144 = vmatprep.subr.bf16.mxu0 0
  %145 = vmatpush1.bf16.msra.mxu0 0
  %146 = vmatprep.subr.bf16.mxu0 0
  %147 = vmatpush1.bf16.msra.mxu0 0
  %148 = vmatprep.subr.bf16.mxu0 0
  %149 = vmatpush1.bf16.msra.mxu0 0
  %150 = vmatprep.subr.bf16.mxu0 0
  %151 = vmatpush1.bf16.msra.mxu0 0
  %152 = vmatprep.subr.bf16.mxu0 0
  %153 = vmatpush1.bf16.msra.mxu0 0
  %154 = vmatprep.subr.bf16.mxu0 0
  %155 = vmatpush1.bf16.msra.mxu0 0
  %156 = vmatprep.subr.bf16.mxu0 0
  %157 = vmatpush1.bf16.msra.mxu0 0
  %158 = vmatprep.subr.bf16.mxu0 0
  %159 = vmatpush1.bf16.msra.mxu0 0
  %160 = vmatprep.mubr.bf16.mxu0 0
  %161 = vmatmul.mubr.bf16.gmra.mrb[0].mxu0 %v46
  %v162 = vpop.f32.mrb[0].mxu0
  %v163 = vadd.f32 0.0, %v162
  %v164 = vpop.f32.mrb[0].mxu0
  %v165 = vadd.f32 0.0, %v164
  %v166 = vpop.f32.mrb[0].mxu0
  %v167 = vadd.f32 0.0, %v166
  %v168 = vpop.f32.mrb[0].mxu0
  %v169 = vadd.f32 0.0, %v168
  %170 = vdwg.mxu0
  %v171 = vadd.f32 %v20, %v163
  %v172 = vadd.f32 %v21, %v165
  %v173 = vadd.f32 %v22, %v167
  %v174 = vadd.f32 %v23, %v169
  %175 = vst [vmem:[#allocation2] sm:$0xff] %v171
  %176 = vst [vmem:[#allocation2 + $0x8] sm:$0xff] %v172
  %177 = vst [vmem:[#allocation2 + $0x10] sm:$0xff] %v173
  %178 = vst [vmem:[#allocation2 + $0x18] sm:$0xff] %v174
  // Predicated region
  $region14: #{transformer_forward.45} parent=0 // pred_check
    %p179 = pneg %p12
  $region15: #{transformer_forward.45} parent=0 // pred_check_branch
    %181 = sbr.rel (%p179) target = $region17
  $region16: #{transformer_forward.45} parent=0 // pred_region
    %v182 = vld [vmem:[#allocation2] sm:$0xff]
    %v183 = vld [vmem:[#allocation2 + $0x8] sm:$0xff]
    %v184 = vld [vmem:[#allocation2 + $0x10] sm:$0xff]
    %v185 = vld [vmem:[#allocation2 + $0x18] sm:$0xff]
    %v186 = vpack.c.bf16 %v184, %v182
    %v187 = vpack.c.bf16 %v185, %v183
    %v190 = vunpack.c.l.b16 %v186
    %v191 = vunpack.c.l.b16 %v187
    %v192 = vunpack.c.h.b16 %v186
    %v193 = vunpack.c.h.b16 %v187
    %v194 = vpack.c.b16 %v191, %v190
    %v195 = vpack.c.b16 %v193, %v192
    %198 = vst [vmem:[%s2] sm:$0xff] %v194
    %199 = vst [vmem:[%s2 + $0x8] sm:$0xff] %v195
  $region17: #{transformer_forward.45} parent=0 // pred_fallthru
    _
  // Predicated region
  $region18: #{transformer_forward.45} parent=0 // pred_check
    _
  $region19: #{transformer_forward.45} parent=0 // pred_check_branch
    %201 = sbr.rel (0) target = $region21
  $region20: #{transformer_forward.45} parent=0 // pred_region
    _
  $region21: #{transformer_forward.45} parent=0 // pred_fallthru
    _
  // Predicated region
  $region22: #{transformer_forward.45} parent=0 // pred_check
    _
  $region23: #{transformer_forward.45} parent=0 // pred_check_branch
    %203 = sbr.rel (0) target = $region25
  $region24: #{transformer_forward.45} parent=0 // pred_region
    _
  $region25: #{transformer_forward.45} parent=0 // pred_fallthru
    _

// kernel: transformer_forward.36
$region0: #{transformer_forward.36}
  #allocation0 [shape = 'u32[]', space=smem, size = 0x4, offset = 0x4, fixed_abs, tag = 'smem constant byte address 0x4 - core index']
  #allocation1 [shape = 'u32[144,128]{1,0:T(1,128)}', space=vmem, size = 0x12000, scoped, tag = 'internal scratch']
  #allocation2 [shape = 'f32[16,128]{1,0:T(8,128)}', space=vmem, size = 0x2000, scoped, tag = 'scratch operand']
  %s0 = inlined_call_operand.vmem [shape: bf16[16,128], index: 0, kind: input, shape index: {}]
  %s1 = inlined_call_operand.vmem [shape: bf16[128,128], index: 1, kind: input, shape index: {}]
  %s2 = inlined_call_operand.vmem [shape: bf16[16,128], index: 2, kind: output, shape index: {}]
  %s3 = sld [smem:[#allocation0]]
  $region26: #{transformer_forward.36} parent=0
    _
  %s5 = ssub.s32 1, %s3
  %s6 = scalar_select 0, %s5, %s3
  // Predicated region
  $region2: #{transformer_forward.36} parent=0 // pred_check
    _
  $region3: #{transformer_forward.36} parent=0 // pred_check_branch
    %8 = sbr.rel (0) target = $region5
  $region4: #{transformer_forward.36} parent=0 // pred_region
    _
  $region5: #{transformer_forward.36} parent=0 // pred_fallthru
    _
  // Predicated region
  $region6: #{transformer_forward.36} parent=0 // pred_check
    _
  $region7: #{transformer_forward.36} parent=0 // pred_check_branch
    %10 = sbr.rel (0) target = $region9
  $region8: #{transformer_forward.36} parent=0 // pred_region
    _
  $region9: #{transformer_forward.36} parent=0 // pred_fallthru
    _
  %p12 = scmp.eq.s32.totalorder 0, 0
  // Predicated region
  $region10: #{transformer_forward.36} parent=0 // pred_check
    %p13 = pneg %p12
  $region11: #{transformer_forward.36} parent=0 // pred_check_branch
    %15 = sbr.rel (%p13) target = $region13
  $region12: #{transformer_forward.36} parent=0 // pred_region
    %16 = vst [vmem:[#allocation2] sm:$0xff] 0.0
    %17 = vst [vmem:[#allocation2 + $0x8] sm:$0xff] 0.0
  $region13: #{transformer_forward.36} parent=0 // pred_fallthru
    _
  %v18 = vld [vmem:[#allocation2] sm:$0xff]
  %v19 = vld [vmem:[#allocation2 + $0x8] sm:$0xff]
  %v20 = vld [vmem:[%s0] sm:$0xf]
  %v21 = vld [vmem:[%s0 + $0x4] sm:$0xf]
  %v22 = vld [vmem:[%s1] sm:$0xf]
  %v23 = vld [vmem:[%s1 + $0x4] sm:$0xf]
  %v24 = vld [vmem:[%s1 + $0x8] sm:$0xf]
  %v25 = vld [vmem:[%s1 + $0xc] sm:$0xf]
  %v26 = vld [vmem:[%s1 + $0x10] sm:$0xf]
  %v27 = vld [vmem:[%s1 + $0x14] sm:$0xf]
  %v28 = vld [vmem:[%s1 + $0x18] sm:$0xf]
  %v29 = vld [vmem:[%s1 + $0x1c] sm:$0xf]
  %v30 = vld [vmem:[%s1 + $0x20] sm:$0xf]
  %v31 = vld [vmem:[%s1 + $0x24] sm:$0xf]
  %v32 = vld [vmem:[%s1 + $0x28] sm:$0xf]
  %v33 = vld [vmem:[%s1 + $0x2c] sm:$0xf]
  %v34 = vld [vmem:[%s1 + $0x30] sm:$0xf]
  %v35 = vld [vmem:[%s1 + $0x34] sm:$0xf]
  %v36 = vld [vmem:[%s1 + $0x38] sm:$0xf]
  %v37 = vld [vmem:[%s1 + $0x3c] sm:$0xf]
  %v40 = vunpack.c.l.b16 %v20
  %v41 = vunpack.c.l.b16 %v21
  %v42 = vpack.c.b16 %v41, %v40
  %v60 = vunpack.c.l.b16 %v22
  %v61 = vunpack.c.l.b16 %v23
  %v62 = vunpack.c.l.b16 %v24
  %v63 = vunpack.c.l.b16 %v25
  %v64 = vunpack.c.l.b16 %v26
  %v65 = vunpack.c.l.b16 %v27
  %v66 = vunpack.c.l.b16 %v28
  %v67 = vunpack.c.l.b16 %v29
  %v68 = vunpack.c.l.b16 %v30
  %v69 = vunpack.c.l.b16 %v31
  %v70 = vunpack.c.l.b16 %v32
  %v71 = vunpack.c.l.b16 %v33
  %v72 = vunpack.c.l.b16 %v34
  %v73 = vunpack.c.l.b16 %v35
  %v74 = vunpack.c.l.b16 %v36
  %v75 = vunpack.c.l.b16 %v37
  %v76 = vpack.c.b16 %v61, %v60
  %v77 = vpack.c.b16 %v63, %v62
  %v78 = vpack.c.b16 %v65, %v64
  %v79 = vpack.c.b16 %v67, %v66
  %v80 = vpack.c.b16 %v69, %v68
  %v81 = vpack.c.b16 %v71, %v70
  %v82 = vpack.c.b16 %v73, %v72
  %v83 = vpack.c.b16 %v75, %v74
  %92 = vmatprep.subr.bf16.mxu0 0
  %93 = vmatpush1.bf16.msra.mxu0 %v76
  %94 = vmatprep.subr.bf16.mxu0 0
  %95 = vmatpush1.bf16.msra.mxu0 %v77
  %96 = vmatprep.subr.bf16.mxu0 0
  %97 = vmatpush1.bf16.msra.mxu0 %v78
  %98 = vmatprep.subr.bf16.mxu0 0
  %99 = vmatpush1.bf16.msra.mxu0 %v79
  %100 = vmatprep.subr.bf16.mxu0 0
  %101 = vmatpush1.bf16.msra.mxu0 %v80
  %102 = vmatprep.subr.bf16.mxu0 0
  %103 = vmatpush1.bf16.msra.mxu0 %v81
  %104 = vmatprep.subr.bf16.mxu0 0
  %105 = vmatpush1.bf16.msra.mxu0 %v82
  %106 = vmatprep.subr.bf16.mxu0 0
  %107 = vmatpush1.bf16.msra.mxu0 %v83
  %108 = vmatprep.subr.bf16.mxu0 0
  %109 = vmatpush1.bf16.msra.mxu0 0
  %110 = vmatprep.subr.bf16.mxu0 0
  %111 = vmatpush1.bf16.msra.mxu0 0
  %112 = vmatprep.subr.bf16.mxu0 0
  %113 = vmatpush1.bf16.msra.mxu0 0
  %114 = vmatprep.subr.bf16.mxu0 0
  %115 = vmatpush1.bf16.msra.mxu0 0
  %116 = vmatprep.subr.bf16.mxu0 0
  %117 = vmatpush1.bf16.msra.mxu0 0
  %118 = vmatprep.subr.bf16.mxu0 0
  %119 = vmatpush1.bf16.msra.mxu0 0
  %120 = vmatprep.subr.bf16.mxu0 0
  %121 = vmatpush1.bf16.msra.mxu0 0
  %122 = vmatprep.subr.bf16.mxu0 0
  %123 = vmatpush1.bf16.msra.mxu0 0
  %124 = vmatprep.mubr.bf16.mxu0 0
  %125 = vmatmul.mubr.bf16.gmra.mrb[0].mxu0 %v42
  %v126 = vpop.f32.mrb[0].mxu0
  %v127 = vadd.f32 0.0, %v126
  %v128 = vpop.f32.mrb[0].mxu0
  %v129 = vpop.f32.mrb[0].mxu0
  %v130 = vadd.f32 0.0, %v129
  %v131 = vpop.f32.mrb[0].mxu0
  %132 = vdwg.mxu0
  %v133 = vadd.f32 %v18, %v127
  %v134 = vadd.f32 %v19, %v130
  %135 = vst [vmem:[#allocation2] sm:$0xff] %v133
  %136 = vst [vmem:[#allocation2 + $0x8] sm:$0xff] %v134
  // Predicated region
  $region14: #{transformer_forward.36} parent=0 // pred_check
    %p137 = pneg %p12
  $region15: #{transformer_forward.36} parent=0 // pred_check_branch
    %139 = sbr.rel (%p137) target = $region17
  $region16: #{transformer_forward.36} parent=0 // pred_region
    %v140 = vld [vmem:[#allocation2] sm:$0xff]
    %v141 = vld [vmem:[#allocation2 + $0x8] sm:$0xff]
    %v142 = vpack.c.bf16 %v141, %v140
    %v144 = vunpack.c.l.b16 %v142
    %v145 = vunpack.c.h.b16 %v142
    %v146 = vpack.c.b16 %v144, %v144
    %v147 = vpack.c.b16 %v145, %v145
    %150 = vst [vmem:[%s2] sm:$0xf] %v146
    %151 = vst [vmem:[%s2 + $0x4] sm:$0xf] %v147
  $region17: #{transformer_forward.36} parent=0 // pred_fallthru
    _
  // Predicated region
  $region18: #{transformer_forward.36} parent=0 // pred_check
    _
  $region19: #{transformer_forward.36} parent=0 // pred_check_branch
    %153 = sbr.rel (0) target = $region21
  $region20: #{transformer_forward.36} parent=0 // pred_region
    _
  $region21: #{transformer_forward.36} parent=0 // pred_fallthru
    _
  // Predicated region
  $region22: #{transformer_forward.36} parent=0 // pred_check
    _
  $region23: #{transformer_forward.36} parent=0 // pred_check_branch
    %155 = sbr.rel (0) target = $region25
  $region24: #{transformer_forward.36} parent=0 // pred_region
    _
  $region25: #{transformer_forward.36} parent=0 // pred_fallthru
    _

// kernel: transformer_forward.38
$region0: #{transformer_forward.38}
  #allocation0 [shape = 'u32[]', space=smem, size = 0x4, offset = 0x4, fixed_abs, tag = 'smem constant byte address 0x4 - core index']
  #allocation1 [shape = 'u32[144,128]{1,0:T(1,128)}', space=vmem, size = 0x12000, scoped, tag = 'internal scratch']
  %s0 = inlined_call_operand.vmem [shape: bf16[2,8,128], index: 0, kind: input, shape index: {}]
  %s1 = inlined_call_operand.vmem [shape: bf16[2,8,256], index: 1, kind: input, shape index: {}, may-alias: {1,2}]
  %s2 = inlined_call_operand.vmem [shape: bf16[2,8,256], index: 2, kind: input, shape index: {}, may-alias: {1,2}]
  %s3 = inlined_call_operand.vmem [shape: bf16[2,8,128], index: 3, kind: output, shape index: {}]
  %s4 = sld [smem:[#allocation0]]
  $region45: #{transformer_forward.38} parent=0
    _
  %s6 = ssub.s32 1, %s4
  %s7 = scalar_select 0, %s6, %s4
  loop: start=0, step=1, limit=4
  $region2: #{transformer_forward.38} parent=0 // loop_pre_header
    _
  $region3: #{transformer_forward.38} parent=0 // loop_header
    %s9 = sphi 0, %s13
    %p10 = scmp.ge.s32.totalorder %s9, 4
    %s16 = sphi 0, %s28
    %s17 = sphi 0, %s24
    %s18 = sphi 0, %s16
    %s19 = sphi 0, %s17
    %s20 = sphi 0, %s18
    %s21 = sphi 0, %s19
    %s33 = sphi 0, %s35
    %s36 = sphi 0, %s33
    %s37 = sphi 0, %s36
    %s53 = sphi 0, %s37
    %s59 = sphi 0, %s61
    %s62 = sphi 0, %s59
    %s63 = sphi 0, %s62
    %s79 = sphi 0, %s63
    %s85 = sphi 0, %s87
    %s88 = sphi 0, %s85
    %s89 = sphi 0, %s88
    %s105 = sphi 0, %s89
    %s113 = sphi 0, %s115
    %s116 = sphi 0, %s113
    %s117 = sphi 0, %s116
    %s133 = sphi 0, %s117
  $region4: #{transformer_forward.38} parent=0 // loop_header_branch
    %12 = sbr.rel (%p10) target = $region8
  $region5: #{transformer_forward.38} parent=0 // loop_body
    %s14 = ssub.s32 %s9, 1
    %s15 = ssub.s32 %s9, 2
    %s22 = sadd.s32 1, %s17
    %p23 = scmp.ge.s32.totalorder %s22, 1
    %s24 = scalar_select %p23, 0, %s22
    %s25 = sadd.s32 1, %s16
    %s26 = scalar_select %p23, %s25, %s16
    %p27 = scmp.ge.s32.totalorder %s26, 2
    %s28 = scalar_select %p27, 0, %s26
    %s29 = ssub.s32 %s16, %s28
    %s30 = ssub.s32 %s17, %s24
    %s31 = sor.u32 %s29, %s30
    %p32 = scmp.eq.s32.totalorder %s31, 0
    %s34 = sadd.s32 %s33, 1
    %s35 = scalar_select %p32, %s33, %s34
    %p38 = pneg %p32
    %p39 = scmp.eq.s32.totalorder %s9, 1
    %p40 = por %p38, %p39
    %p41 = scmp.ne.s32.totalorder %s33, %s36
    %p42 = scmp.eq.s32.totalorder %s9, 0
    %p43 = por %p41, %p42
    %p44 = scmp.ne.s32.totalorder %s33, %s36
    %p45 = scmp.eq.s32.totalorder %s14, 1
    %p46 = por %p44, %p45
    %p47 = scmp.ne.s32.totalorder %s36, %s37
    %p48 = scmp.eq.s32.totalorder %s14, 0
    %p49 = por %p47, %p48
    %p50 = scmp.ne.s32.totalorder %s36, %s37
    %p51 = scmp.eq.s32.totalorder %s15, 1
    %p52 = por %p50, %p51
    %p54 = scmp.ne.s32.totalorder %s37, %s53
    %p55 = scmp.eq.s32.totalorder %s15, 0
    %p56 = por %p54, %p55
    %s57 = ssub.s32 %s16, %s28
    %p58 = scmp.eq.s32.totalorder %s57, 0
    %s60 = sadd.s32 %s59, 1
    %s61 = scalar_select %p58, %s59, %s60
    %p64 = pneg %p58
    %p65 = scmp.eq.s32.totalorder %s9, 1
    %p66 = por %p64, %p65
    %p67 = scmp.ne.s32.totalorder %s59, %s62
    %p68 = scmp.eq.s32.totalorder %s9, 0
    %p69 = por %p67, %p68
    %p70 = scmp.ne.s32.totalorder %s59, %s62
    %p71 = scmp.eq.s32.totalorder %s14, 1
    %p72 = por %p70, %p71
    %p73 = scmp.ne.s32.totalorder %s62, %s63
    %p74 = scmp.eq.s32.totalorder %s14, 0
    %p75 = por %p73, %p74
    %p76 = scmp.ne.s32.totalorder %s62, %s63
    %p77 = scmp.eq.s32.totalorder %s15, 1
    %p78 = por %p76, %p77
    %p80 = scmp.ne.s32.totalorder %s63, %s79
    %p81 = scmp.eq.s32.totalorder %s15, 0
    %p82 = por %p80, %p81
    %s83 = ssub.s32 %s16, %s28
    %p84 = scmp.eq.s32.totalorder %s83, 0
    %s86 = sadd.s32 %s85, 1
    %s87 = scalar_select %p84, %s85, %s86
    %p90 = pneg %p84
    %p91 = scmp.eq.s32.totalorder %s9, 1
    %p92 = por %p90, %p91
    %p93 = scmp.ne.s32.totalorder %s85, %s88
    %p94 = scmp.eq.s32.totalorder %s9, 0
    %p95 = por %p93, %p94
    %p96 = scmp.ne.s32.totalorder %s85, %s88
    %p97 = scmp.eq.s32.totalorder %s14, 1
    %p98 = por %p96, %p97
    %p99 = scmp.ne.s32.totalorder %s88, %s89
    %p100 = scmp.eq.s32.totalorder %s14, 0
    %p101 = por %p99, %p100
    %p102 = scmp.ne.s32.totalorder %s88, %s89
    %p103 = scmp.eq.s32.totalorder %s15, 1
    %p104 = por %p102, %p103
    %p106 = scmp.ne.s32.totalorder %s89, %s105
    %p107 = scmp.eq.s32.totalorder %s15, 0
    %p108 = por %p106, %p107
    %s109 = ssub.s32 %s16, %s28
    %s110 = ssub.s32 %s17, %s24
    %s111 = sor.u32 %s109, %s110
    %p112 = scmp.eq.s32.totalorder %s111, 0
    %s114 = sadd.s32 %s113, 1
    %s115 = scalar_select %p112, %s113, %s114
    %p118 = pneg %p112
    %p119 = scmp.eq.s32.totalorder %s9, 1
    %p120 = por %p118, %p119
    %p121 = scmp.ne.s32.totalorder %s113, %s116
    %p122 = scmp.eq.s32.totalorder %s9, 0
    %p123 = por %p121, %p122
    %p124 = scmp.ne.s32.totalorder %s113, %s116
    %p125 = scmp.eq.s32.totalorder %s14, 1
    %p126 = por %p124, %p125
    %p127 = scmp.ne.s32.totalorder %s116, %s117
    %p128 = scmp.eq.s32.totalorder %s14, 0
    %p129 = por %p127, %p128
    %p130 = scmp.ne.s32.totalorder %s116, %s117
    %p131 = scmp.eq.s32.totalorder %s15, 1
    %p132 = por %p130, %p131
    %p134 = scmp.ne.s32.totalorder %s117, %s133
    %p135 = scmp.eq.s32.totalorder %s15, 0
    %p136 = por %p134, %p135
    %p137 = scmp.le.s32.totalorder 1, %s9
    %p138 = scmp.lt.s32.totalorder %s9, 3
    %p139 = pnand %p137, %p138
    %p140 = pneg %p139
    // Predicated region
    $region9: #{transformer_forward.38} parent=5 // pred_check
      _
    $region10: #{transformer_forward.38} parent=5 // pred_check_branch
      %142 = sbr.rel (%p139) target = $region12
    $region11: #{transformer_forward.38} parent=5 // pred_region
      %s143 = ssub.s32 %s9, 1
    $region12: #{transformer_forward.38} parent=5 // pred_fallthru
      _
    %p144 = scmp.lt.s32.totalorder %s9, 2
    // Predicated region
    $region13: #{transformer_forward.38} parent=5 // pred_check
      %p145 = pneg %p144
    $region14: #{transformer_forward.38} parent=5 // pred_check_branch
      %147 = sbr.rel (%p145) target = $region16
    $region15: #{transformer_forward.38} parent=5 // pred_region
      // Predicated region
      $region17: #{transformer_forward.38} parent=15 // pred_check
        %p148 = pneg %p43
      $region18: #{transformer_forward.38} parent=15 // pred_check_branch
        %150 = sbr.rel (%p148) target = $region20
      $region19: #{transformer_forward.38} parent=15 // pred_region
        %p151 = scmp.lt.s32.totalorder %s16, 1
        %s152 = scalar_select %p151, %s16, 1
        %p153 = scmp.lt.s32.totalorder %s17, 0
        %s154 = scalar_select %p153, %s17, 0
        %s155 = sadd.s32 %s154, %s152
        %s156 = smul.addr %s155, 4
        %s157 = scalar_lea.vmem %s0, %s156
      $region20: #{transformer_forward.38} parent=15 // pred_fallthru
        _
      // Predicated region
      $region21: #{transformer_forward.38} parent=15 // pred_check
        %p158 = pneg %p69
      $region22: #{transformer_forward.38} parent=15 // pred_check_branch
        %160 = sbr.rel (%p158) target = $region24
      $region23: #{transformer_forward.38} parent=15 // pred_region
        %p161 = scmp.lt.s32.totalorder %s16, 1
        %s162 = scalar_select %p161, %s16, 1
        %s163 = smul.addr %s162, 2
        %s164 = smul.addr %s163, 4
        %s165 = scalar_lea.vmem %s1, %s164
      $region24: #{transformer_forward.38} parent=15 // pred_fallthru
        _
      // Predicated region
      $region25: #{transformer_forward.38} parent=15 // pred_check
        %p166 = pneg %p95
      $region26: #{transformer_forward.38} parent=15 // pred_check_branch
        %168 = sbr.rel (%p166) target = $region28
      $region27: #{transformer_forward.38} parent=15 // pred_region
        %p169 = scmp.lt.s32.totalorder %s16, 1
        %s170 = scalar_select %p169, %s16, 1
        %s171 = smul.addr %s170, 2
        %s172 = sadd.s32 1, %s171
        %s173 = smul.addr %s172, 4
        %s174 = scalar_lea.vmem %s2, %s173
      $region28: #{transformer_forward.38} parent=15 // pred_fallthru
        _
    $region16: #{transformer_forward.38} parent=5 // pred_fallthru
      _
    %p175 = scmp.le.s32.totalorder 1, %s9
    %p176 = scmp.lt.s32.totalorder %s9, 3
    %p177 = pnand %p175, %p176
    %p178 = pneg %p177
    // Predicated region
    $region29: #{transformer_forward.38} parent=5 // pred_check
      _
    $region30: #{transformer_forward.38} parent=5 // pred_check_branch
      %180 = sbr.rel (%p177) target = $region32
    $region31: #{transformer_forward.38} parent=5 // pred_region
      %s181 = ssub.s32 %s9, 1
      %p182 = scmp.lt.s32.totalorder %s18, 1
      %s183 = scalar_select %p182, %s18, 1
      %p184 = scmp.lt.s32.totalorder %s19, 0
      %s185 = scalar_select %p184, %s19, 0
      %s186 = sadd.s32 %s185, %s183
      %s187 = smul.addr %s186, 4
      %s188 = scalar_lea.vmem %s0, %s187
      %p189 = pneg %p49
      %p190 = pneg %p46
      %p191 = scmp.lt.s32.totalorder %s18, 1
      %s192 = scalar_select %p191, %s18, 1
      %s193 = smul.addr %s192, 2
      %s194 = smul.addr %s193, 4
      %s195 = scalar_lea.vmem %s1, %s194
      %p196 = pneg %p75
      %p197 = pneg %p72
      %p198 = scmp.lt.s32.totalorder %s18, 1
      %s199 = scalar_select %p198, %s18, 1
      %s200 = smul.addr %s199, 2
      %s201 = sadd.s32 1, %s200
      %s202 = smul.addr %s201, 4
      %s203 = scalar_lea.vmem %s2, %s202
      %p204 = pneg %p101
      %p205 = pneg %p98
      %p206 = pneg %p129
      %p207 = pneg %p126
      %p208 = scmp.lt.s32.totalorder %s18, 1
      %s209 = scalar_select %p208, %s18, 1
      %p210 = scmp.lt.s32.totalorder %s19, 0
      %s211 = scalar_select %p210, %s19, 0
      %s212 = sadd.s32 %s211, %s209
      %s213 = smul.addr %s212, 4
      %s214 = scalar_lea.vmem %s3, %s213
      %p215 = scmp.lt.s32.totalorder %s18, 1
      %s216 = scalar_select %p215, %s18, 1
      %p217 = scmp.lt.s32.totalorder %s19, 0
      %s218 = scalar_select %p217, %s19, 0
      %s219 = sadd.s32 %s218, %s216
      %s220 = smul.addr %s219, 4
      %s221 = scalar_lea.vmem %s0, %s220
      %p222 = scmp.lt.s32.totalorder %s18, 1
      %s223 = scalar_select %p222, %s18, 1
      %s224 = smul.addr %s223, 2
      %s225 = smul.addr %s224, 4
      %s226 = scalar_lea.vmem %s1, %s225
      %p227 = scmp.lt.s32.totalorder %s18, 1
      %s228 = scalar_select %p227, %s18, 1
      %s229 = smul.addr %s228, 2
      %s230 = sadd.s32 1, %s229
      %s231 = smul.addr %s230, 4
      %s232 = scalar_lea.vmem %s2, %s231
      %p233 = scmp.lt.s32.totalorder %s18, 1
      %s234 = scalar_select %p233, %s18, 1
      %p235 = scmp.lt.s32.totalorder %s19, 0
      %s236 = scalar_select %p235, %s19, 0
      %s237 = sadd.s32 %s236, %s234
      %s238 = smul.addr %s237, 4
      %s239 = scalar_lea.vmem %s3, %s238
      %v241 = vld [vmem:[%s221] sm:$0xf]
      %v242 = vld [vmem:[%s226] sm:$0xf]
      %v243 = vld [vmem:[%s232] sm:$0xf]
      %v244 = vunpack.c.l.bf16 %v241
      %v245 = vmul.f32 %v244, 0.17677669
      %v246 = vpack.c.bf16 %v245, %v245
      %vm247 = vcmask 261120
      %v249 = vsel %vm247, %v246, 0
      %v252 = vsel %vm247, %v242, 0
      %254 = vmatprep.subr.bf16.mxu0 0
      %255 = vmatpush1.bf16.xpose.msra.mxu0 %v252
      %256 = vmatprep.subr.bf16.mxu0 0
      %257 = vmatpush1.bf16.xpose.msra.mxu0 0
      %258 = vmatprep.subr.bf16.mxu0 0
      %259 = vmatpush1.bf16.xpose.msra.mxu0 0
      %260 = vmatprep.subr.bf16.mxu0 0
      %261 = vmatpush1.bf16.xpose.msra.mxu0 0
      %262 = vmatprep.subr.bf16.mxu0 0
      %263 = vmatpush1.bf16.xpose.msra.mxu0 0
      %264 = vmatprep.subr.bf16.mxu0 0
      %265 = vmatpush1.bf16.xpose.msra.mxu0 0
      %266 = vmatprep.subr.bf16.mxu0 0
      %267 = vmatpush1.bf16.xpose.msra.mxu0 0
      %268 = vmatprep.subr.bf16.mxu0 0
      %269 = vmatpush1.bf16.xpose.msra.mxu0 0
      %270 = vmatprep.subr.bf16.mxu0 0
      %271 = vmatpush1.bf16.xpose.msra.mxu0 0
      %272 = vmatprep.subr.bf16.mxu0 0
      %273 = vmatpush1.bf16.xpose.msra.mxu0 0
      %274 = vmatprep.subr.bf16.mxu0 0
      %275 = vmatpush1.bf16.xpose.msra.mxu0 0
      %276 = vmatprep.subr.bf16.mxu0 0
      %277 = vmatpush1.bf16.xpose.msra.mxu0 0
      %278 = vmatprep.subr.bf16.mxu0 0
      %279 = vmatpush1.bf16.xpose.msra.mxu0 0
      %280 = vmatprep.subr.bf16.mxu0 0
      %281 = vmatpush1.bf16.xpose.msra.mxu0 0
      %282 = vmatprep.subr.bf16.mxu0 0
      %283 = vmatpush1.bf16.xpose.msra.mxu0 0
      %284 = vmatprep.subr.bf16.mxu0 0
      %285 = vmatpush1.bf16.xpose.msra.mxu0 0
      %286 = vmatprep.mubr.bf16.mxu0 0
      %287 = vmatmul.mubr.bf16.gmra.mrb[0].mxu0 %v249
      %v288 = vpop.f32.mrb[0].mxu0
      %v289 = vadd.f32 0.0, %v288
      %v290 = vpop.f32.mrb[0].mxu0
      %v291 = vpop.f32.mrb[0].mxu0
      %v292 = vpop.f32.mrb[0].mxu0
      %293 = vdwg.mxu0
      %vm294 = vcmask 64512
      %v295 = vsel %vm294, %v289, -inf
      %296 = vmax.xlane.f32.xlu0 %v295
      %v297 = vpop.xlane.xlu0 %296
      %v298 = vsub.f32 %v289, %v297
      %v299 = vmul.f32 %v298, 1.442695
      %v300 = vpow.pop %v299
      %v301 = vsel %vm294, %v300, 0.0
      %302 = vadd.xlane.f32.xlu0 %v301
      %v303 = vpop.xlane.xlu0 %302
      %v304 = vrcp.pop %v303
      %v305 = vmul.f32 %v300, %v304
      %v306 = vpack.c.bf16 %v305, %v305
      %v308 = vsel %vm294, %v306, 0
      %vm310 = vcmask 1043456
      %v312 = vsel %vm310, %v243, 0
      %314 = vmatprep.subr.bf16.mxu0 0
      %315 = vmatpush1.bf16.msra.mxu0 %v312
      %316 = vmatprep.subr.bf16.mxu0 0
      %317 = vmatpush1.bf16.msra.mxu0 0
      %318 = vmatprep.subr.bf16.mxu0 0
      %319 = vmatpush1.bf16.msra.mxu0 0
      %320 = vmatprep.subr.bf16.mxu0 0
      %321 = vmatpush1.bf16.msra.mxu0 0
      %322 = vmatprep.subr.bf16.mxu0 0
      %323 = vmatpush1.bf16.msra.mxu0 0
      %324 = vmatprep.subr.bf16.mxu0 0
      %325 = vmatpush1.bf16.msra.mxu0 0
      %326 = vmatprep.subr.bf16.mxu0 0
      %327 = vmatpush1.bf16.msra.mxu0 0
      %328 = vmatprep.subr.bf16.mxu0 0
      %329 = vmatpush1.bf16.msra.mxu0 0
      %330 = vmatprep.subr.bf16.mxu0 0
      %331 = vmatpush1.bf16.msra.mxu0 0
      %332 = vmatprep.subr.bf16.mxu0 0
      %333 = vmatpush1.bf16.msra.mxu0 0
      %334 = vmatprep.subr.bf16.mxu0 0
      %335 = vmatpush1.bf16.msra.mxu0 0
      %336 = vmatprep.subr.bf16.mxu0 0
      %337 = vmatpush1.bf16.msra.mxu0 0
      %338 = vmatprep.subr.bf16.mxu0 0
      %339 = vmatpush1.bf16.msra.mxu0 0
      %340 = vmatprep.subr.bf16.mxu0 0
      %341 = vmatpush1.bf16.msra.mxu0 0
      %342 = vmatprep.subr.bf16.mxu0 0
      %343 = vmatpush1.bf16.msra.mxu0 0
      %344 = vmatprep.subr.bf16.mxu0 0
      %345 = vmatpush1.bf16.msra.mxu0 0
      %346 = vmatprep.mubr.bf16.mxu0 0
      %347 = vmatmul.mubr.bf16.gmra.mrb[0].mxu0 %v308
      %v348 = vpop.f32.mrb[0].mxu0
      %v349 = vadd.f32 0.0, %v348
      %v350 = vpop.f32.mrb[0].mxu0
      %v351 = vpop.f32.mrb[0].mxu0
      %v352 = vpop.f32.mrb[0].mxu0
      %353 = vdwg.mxu0
      %v354 = vpack.c.bf16 %v349, %v349
      %vm355 = vcmask 257024
      %356 = vst.msk [vmem:[%s239] sm:$0xf] %vm355, %v354
      %358 = vrot.lane.b32.xlu0 %v246, 96
      %v359 = vpop.permute.xlu0 %358
      %v361 = vunpack.c.l.b16 %v242
      %v362 = vpack.c.b16 %v361, %v361
      %363 = vrot.lane.b32.xlu0 %v362, 96
      %v364 = vpop.permute.xlu0 %363
      %v366 = vsel %vm247, %v359, 0
      %v369 = vsel %vm247, %v364, 0
      %371 = vmatprep.subr.bf16.mxu0 0
      %372 = vmatpush1.bf16.xpose.msra.mxu0 %v369
      %373 = vmatprep.subr.bf16.mxu0 0
      %374 = vmatpush1.bf16.xpose.msra.mxu0 0
      %375 = vmatprep.subr.bf16.mxu0 0
      %376 = vmatpush1.bf16.xpose.msra.mxu0 0
      %377 = vmatprep.subr.bf16.mxu0 0
      %378 = vmatpush1.bf16.xpose.msra.mxu0 0
      %379 = vmatprep.subr.bf16.mxu0 0
      %380 = vmatpush1.bf16.xpose.msra.mxu0 0
      %381 = vmatprep.subr.bf16.mxu0 0
      %382 = vmatpush1.bf16.xpose.msra.mxu0 0
      %383 = vmatprep.subr.bf16.mxu0 0
      %384 = vmatpush1.bf16.xpose.msra.mxu0 0
      %385 = vmatprep.subr.bf16.mxu0 0
      %386 = vmatpush1.bf16.xpose.msra.mxu0 0
      %387 = vmatprep.subr.bf16.mxu0 0
      %388 = vmatpush1.bf16.xpose.msra.mxu0 0
      %389 = vmatprep.subr.bf16.mxu0 0
      %390 = vmatpush1.bf16.xpose.msra.mxu0 0
      %391 = vmatprep.subr.bf16.mxu0 0
      %392 = vmatpush1.bf16.xpose.msra.mxu0 0
      %393 = vmatprep.subr.bf16.mxu0 0
      %394 = vmatpush1.bf16.xpose.msra.mxu0 0
      %395 = vmatprep.subr.bf16.mxu0 0
      %396 = vmatpush1.bf16.xpose.msra.mxu0 0
      %397 = vmatprep.subr.bf16.mxu0 0
      %398 = vmatpush1.bf16.xpose.msra.mxu0 0
      %399 = vmatprep.subr.bf16.mxu0 0
      %400 = vmatpush1.bf16.xpose.msra.mxu0 0
      %401 = vmatprep.subr.bf16.mxu0 0
      %402 = vmatpush1.bf16.xpose.msra.mxu0 0
      %403 = vmatprep.mubr.bf16.mxu0 0
      %404 = vmatmul.mubr.bf16.gmra.mrb[0].mxu0 %v366
      %v405 = vpop.f32.mrb[0].mxu0
      %v406 = vadd.f32 0.0, %v405
      %v407 = vpop.f32.mrb[0].mxu0
      %v408 = vpop.f32.mrb[0].mxu0
      %v409 = vpop.f32.mrb[0].mxu0
      %410 = vdwg.mxu0
      %v411 = vsel %vm294, %v406, -inf
      %412 = vmax.xlane.f32.xlu0 %v411
      %v413 = vpop.xlane.xlu0 %412
      %v414 = vsub.f32 %v406, %v413
      %v415 = vmul.f32 %v414, 1.442695
      %v416 = vpow.pop %v415
      %v417 = vsel %vm294, %v416, 0.0
      %418 = vadd.xlane.f32.xlu0 %v417
      %v419 = vpop.xlane.xlu0 %418
      %v420 = vrcp.pop %v419
      %v421 = vmul.f32 %v416, %v420
      %v422 = vpack.c.bf16 %v421, %v421
      %v424 = vunpack.c.l.b16 %v243
      %v425 = vpack.c.b16 %v424, %v424
      %426 = vrot.lane.b32.xlu0 %v425, 96
      %v427 = vpop.permute.xlu0 %426
      %v429 = vsel %vm294, %v422, 0
      %v432 = vsel %vm310, %v427, 0
      %434 = vmatprep.subr.bf16.mxu0 0
      %435 = vmatpush1.bf16.msra.mxu0 %v432
      %436 = vmatprep.subr.bf16.mxu0 0
      %437 = vmatpush1.bf16.msra.mxu0 0
      %438 = vmatprep.subr.bf16.mxu0 0
      %439 = vmatpush1.bf16.msra.mxu0 0
      %440 = vmatprep.subr.bf16.mxu0 0
      %441 = vmatpush1.bf16.msra.mxu0 0
      %442 = vmatprep.subr.bf16.mxu0 0
      %443 = vmatpush1.bf16.msra.mxu0 0
      %444 = vmatprep.subr.bf16.mxu0 0
      %445 = vmatpush1.bf16.msra.mxu0 0
      %446 = vmatprep.subr.bf16.mxu0 0
      %447 = vmatpush1.bf16.msra.mxu0 0
      %448 = vmatprep.subr.bf16.mxu0 0
      %449 = vmatpush1.bf16.msra.mxu0 0
      %450 = vmatprep.subr.bf16.mxu0 0
      %451 = vmatpush1.bf16.msra.mxu0 0
      %452 = vmatprep.subr.bf16.mxu0 0
      %453 = vmatpush1.bf16.msra.mxu0 0
      %454 = vmatprep.subr.bf16.mxu0 0
      %455 = vmatpush1.bf16.msra.mxu0 0
      %456 = vmatprep.subr.bf16.mxu0 0
      %457 = vmatpush1.bf16.msra.mxu0 0
      %458 = vmatprep.subr.bf16.mxu0 0
      %459 = vmatpush1.bf16.msra.mxu0 0
      %460 = vmatprep.subr.bf16.mxu0 0
      %461 = vmatpush1.bf16.msra.mxu0 0
      %462 = vmatprep.subr.bf16.mxu0 0
      %463 = vmatpush1.bf16.msra.mxu0 0
      %464 = vmatprep.subr.bf16.mxu0 0
      %465 = vmatpush1.bf16.msra.mxu0 0
      %466 = vmatprep.mubr.bf16.mxu0 0
      %467 = vmatmul.mubr.bf16.gmra.mrb[0].mxu0 %v429
      %v468 = vpop.f32.mrb[0].mxu0
      %v469 = vadd.f32 0.0, %v468
      %v470 = vpop.f32.mrb[0].mxu0
      %v471 = vpop.f32.mrb[0].mxu0
      %v472 = vpop.f32.mrb[0].mxu0
      %473 = vdwg.mxu0
      %v474 = vpack.c.bf16 %v469, %v469
      %v476 = vunpack.c.l.b16 %v474
      %v477 = vpack.c.b16 %v476, %v476
      %478 = vrot.lane.b32.xlu0 %v477, 32
      %v479 = vpop.permute.xlu0 %478
      %vm481 = vcmask 519424
      %482 = vst.msk [vmem:[%s239] sm:$0xf] %vm481, %v479
      %483 = vrot.lane.b32.xlu0 %v246, 64
      %v484 = vpop.permute.xlu0 %483
      %485 = vrot.lane.b32.xlu0 %v362, 64
      %v486 = vpop.permute.xlu0 %485
      %v488 = vsel %vm247, %v484, 0
      %v491 = vsel %vm247, %v486, 0
      %493 = vmatprep.subr.bf16.mxu0 0
      %494 = vmatpush1.bf16.xpose.msra.mxu0 %v491
      %495 = vmatprep.subr.bf16.mxu0 0
      %496 = vmatpush1.bf16.xpose.msra.mxu0 0
      %497 = vmatprep.subr.bf16.mxu0 0
      %498 = vmatpush1.bf16.xpose.msra.mxu0 0
      %499 = vmatprep.subr.bf16.mxu0 0
      %500 = vmatpush1.bf16.xpose.msra.mxu0 0
      %501 = vmatprep.subr.bf16.mxu0 0
      %502 = vmatpush1.bf16.xpose.msra.mxu0 0
      %503 = vmatprep.subr.bf16.mxu0 0
      %504 = vmatpush1.bf16.xpose.msra.mxu0 0
      %505 = vmatprep.subr.bf16.mxu0 0
      %506 = vmatpush1.bf16.xpose.msra.mxu0 0
      %507 = vmatprep.subr.bf16.mxu0 0
      %508 = vmatpush1.bf16.xpose.msra.mxu0 0
      %509 = vmatprep.subr.bf16.mxu0 0
      %510 = vmatpush1.bf16.xpose.msra.mxu0 0
      %511 = vmatprep.subr.bf16.mxu0 0
      %512 = vmatpush1.bf16.xpose.msra.mxu0 0
      %513 = vmatprep.subr.bf16.mxu0 0
      %514 = vmatpush1.bf16.xpose.msra.mxu0 0
      %515 = vmatprep.subr.bf16.mxu0 0
      %516 = vmatpush1.bf16.xpose.msra.mxu0 0
      %517 = vmatprep.subr.bf16.mxu0 0
      %518 = vmatpush1.bf16.xpose.msra.mxu0 0
      %519 = vmatprep.subr.bf16.mxu0 0
      %520 = vmatpush1.bf16.xpose.msra.mxu0 0
      %521 = vmatprep.subr.bf16.mxu0 0
      %522 = vmatpush1.bf16.xpose.msra.mxu0 0
      %523 = vmatprep.subr.bf16.mxu0 0
      %524 = vmatpush1.bf16.xpose.msra.mxu0 0
      %525 = vmatprep.mubr.bf16.mxu0 0
      %526 = vmatmul.mubr.bf16.gmra.mrb[0].mxu0 %v488
      %v527 = vpop.f32.mrb[0].mxu0
      %v528 = vadd.f32 0.0, %v527
      %v529 = vpop.f32.mrb[0].mxu0
      %v530 = vpop.f32.mrb[0].mxu0
      %v531 = vpop.f32.mrb[0].mxu0
      %532 = vdwg.mxu0
      %v533 = vsel %vm294, %v528, -inf
      %534 = vmax.xlane.f32.xlu0 %v533
      %v535 = vpop.xlane.xlu0 %534
      %v536 = vsub.f32 %v528, %v535
      %v537 = vmul.f32 %v536, 1.442695
      %v538 = vpow.pop %v537
      %v539 = vsel %vm294, %v538, 0.0
      %540 = vadd.xlane.f32.xlu0 %v539
      %v541 = vpop.xlane.xlu0 %540
      %v542 = vrcp.pop %v541
      %v543 = vmul.f32 %v538, %v542
      %v544 = vpack.c.bf16 %v543, %v543
      %545 = vrot.lane.b32.xlu0 %v425, 64
      %v546 = vpop.permute.xlu0 %545
      %v548 = vsel %vm294, %v544, 0
      %v551 = vsel %vm310, %v546, 0
      %553 = vmatprep.subr.bf16.mxu0 0
      %554 = vmatpush1.bf16.msra.mxu0 %v551
      %555 = vmatprep.subr.bf16.mxu0 0
      %556 = vmatpush1.bf16.msra.mxu0 0
      %557 = vmatprep.subr.bf16.mxu0 0
      %558 = vmatpush1.bf16.msra.mxu0 0
      %559 = vmatprep.subr.bf16.mxu0 0
      %560 = vmatpush1.bf16.msra.mxu0 0
      %561 = vmatprep.subr.bf16.mxu0 0
      %562 = vmatpush1.bf16.msra.mxu0 0
      %563 = vmatprep.subr.bf16.mxu0 0
      %564 = vmatpush1.bf16.msra.mxu0 0
      %565 = vmatprep.subr.bf16.mxu0 0
      %566 = vmatpush1.bf16.msra.mxu0 0
      %567 = vmatprep.subr.bf16.mxu0 0
      %568 = vmatpush1.bf16.msra.mxu0 0
      %569 = vmatprep.subr.bf16.mxu0 0
      %570 = vmatpush1.bf16.msra.mxu0 0
      %571 = vmatprep.subr.bf16.mxu0 0
      %572 = vmatpush1.bf16.msra.mxu0 0
      %573 = vmatprep.subr.bf16.mxu0 0
      %574 = vmatpush1.bf16.msra.mxu0 0
      %575 = vmatprep.subr.bf16.mxu0 0
      %576 = vmatpush1.bf16.msra.mxu0 0
      %577 = vmatprep.subr.bf16.mxu0 0
      %578 = vmatpush1.bf16.msra.mxu0 0
      %579 = vmatprep.subr.bf16.mxu0 0
      %580 = vmatpush1.bf16.msra.mxu0 0
      %581 = vmatprep.subr.bf16.mxu0 0
      %582 = vmatpush1.bf16.msra.mxu0 0
      %583 = vmatprep.subr.bf16.mxu0 0
      %584 = vmatpush1.bf16.msra.mxu0 0
      %585 = vmatprep.mubr.bf16.mxu0 0
      %586 = vmatmul.mubr.bf16.gmra.mrb[0].mxu0 %v548
      %v587 = vpop.f32.mrb[0].mxu0
      %v588 = vadd.f32 0.0, %v587
      %v589 = vpop.f32.mrb[0].mxu0
      %v590 = vpop.f32.mrb[0].mxu0
      %v591 = vpop.f32.mrb[0].mxu0
      %592 = vdwg.mxu0
      %v593 = vpack.c.bf16 %v588, %v588
      %v595 = vunpack.c.l.b16 %v593
      %v596 = vpack.c.b16 %v595, %v595
      %597 = vrot.lane.b32.xlu0 %v596, 64
      %v598 = vpop.permute.xlu0 %597
      %vm600 = vcmask 781824
      %601 = vst.msk [vmem:[%s239] sm:$0xf] %vm600, %v598
      %602 = vrot.lane.b32.xlu0 %v246, 32
      %v603 = vpop.permute.xlu0 %602
      %604 = vrot.lane.b32.xlu0 %v362, 32
      %v605 = vpop.permute.xlu0 %604
      %v607 = vsel %vm247, %v603, 0
      %v610 = vsel %vm247, %v605, 0
      %612 = vmatprep.subr.bf16.mxu0 0
      %613 = vmatpush1.bf16.xpose.msra.mxu0 %v610
      %614 = vmatprep.subr.bf16.mxu0 0
      %615 = vmatpush1.bf16.xpose.msra.mxu0 0
      %616 = vmatprep.subr.bf16.mxu0 0
      %617 = vmatpush1.bf16.xpose.msra.mxu0 0
      %618 = vmatprep.subr.bf16.mxu0 0
      %619 = vmatpush1.bf16.xpose.msra.mxu0 0
      %620 = vmatprep.subr.bf16.mxu0 0
      %621 = vmatpush1.bf16.xpose.msra.mxu0 0
      %622 = vmatprep.subr.bf16.mxu0 0
      %623 = vmatpush1.bf16.xpose.msra.mxu0 0
      %624 = vmatprep.subr.bf16.mxu0 0
      %625 = vmatpush1.bf16.xpose.msra.mxu0 0
      %626 = vmatprep.subr.bf16.mxu0 0
      %627 = vmatpush1.bf16.xpose.msra.mxu0 0
      %628 = vmatprep.subr.bf16.mxu0 0
      %629 = vmatpush1.bf16.xpose.msra.mxu0 0
      %630 = vmatprep.subr.bf16.mxu0 0
      %631 = vmatpush1.bf16.xpose.msra.mxu0 0
      %632 = vmatprep.subr.bf16.mxu0 0
      %633 = vmatpush1.bf16.xpose.msra.mxu0 0
      %634 = vmatprep.subr.bf16.mxu0 0
      %635 = vmatpush1.bf16.xpose.msra.mxu0 0
      %636 = vmatprep.subr.bf16.mxu0 0
      %637 = vmatpush1.bf16.xpose.msra.mxu0 0
      %638 = vmatprep.subr.bf16.mxu0 0
      %639 = vmatpush1.bf16.xpose.msra.mxu0 0
      %640 = vmatprep.subr.bf16.mxu0 0
      %641 = vmatpush1.bf16.xpose.msra.mxu0 0
      %642 = vmatprep.subr.bf16.mxu0 0
      %643 = vmatpush1.bf16.xpose.msra.mxu0 0
      %644 = vmatprep.mubr.bf16.mxu0 0
      %645 = vmatmul.mubr.bf16.gmra.mrb[0].mxu0 %v607
      %v646 = vpop.f32.mrb[0].mxu0
      %v647 = vadd.f32 0.0, %v646
      %v648 = vpop.f32.mrb[0].mxu0
      %v649 = vpop.f32.mrb[0].mxu0
      %v650 = vpop.f32.mrb[0].mxu0
      %651 = vdwg.mxu0
      %v652 = vsel %vm294, %v647, -inf
      %653 = vmax.xlane.f32.xlu0 %v652
      %v654 = vpop.xlane.xlu0 %653
      %v655 = vsub.f32 %v647, %v654
      %v656 = vmul.f32 %v655, 1.442695
      %v657 = vpow.pop %v656
      %v658 = vsel %vm294, %v657, 0.0
      %659 = vadd.xlane.f32.xlu0 %v658
      %v660 = vpop.xlane.xlu0 %659
      %v661 = vrcp.pop %v660
      %v662 = vmul.f32 %v657, %v661
      %v663 = vpack.c.bf16 %v662, %v662
      %664 = vrot.lane.b32.xlu0 %v425, 32
      %v665 = vpop.permute.xlu0 %664
      %v667 = vsel %vm294, %v663, 0
      %v670 = vsel %vm310, %v665, 0
      %672 = vmatprep.subr.bf16.mxu0 0
      %673 = vmatpush1.bf16.msra.mxu0 %v670
      %674 = vmatprep.subr.bf16.mxu0 0
      %675 = vmatpush1.bf16.msra.mxu0 0
      %676 = vmatprep.subr.bf16.mxu0 0
      %677 = vmatpush1.bf16.msra.mxu0 0
      %678 = vmatprep.subr.bf16.mxu0 0
      %679 = vmatpush1.bf16.msra.mxu0 0
      %680 = vmatprep.subr.bf16.mxu0 0
      %681 = vmatpush1.bf16.msra.mxu0 0
      %682 = vmatprep.subr.bf16.mxu0 0
      %683 = vmatpush1.bf16.msra.mxu0 0
      %684 = vmatprep.subr.bf16.mxu0 0
      %685 = vmatpush1.bf16.msra.mxu0 0
      %686 = vmatprep.subr.bf16.mxu0 0
      %687 = vmatpush1.bf16.msra.mxu0 0
      %688 = vmatprep.subr.bf16.mxu0 0
      %689 = vmatpush1.bf16.msra.mxu0 0
      %690 = vmatprep.subr.bf16.mxu0 0
      %691 = vmatpush1.bf16.msra.mxu0 0
      %692 = vmatprep.subr.bf16.mxu0 0
      %693 = vmatpush1.bf16.msra.mxu0 0
      %694 = vmatprep.subr.bf16.mxu0 0
      %695 = vmatpush1.bf16.msra.mxu0 0
      %696 = vmatprep.subr.bf16.mxu0 0
      %697 = vmatpush1.bf16.msra.mxu0 0
      %698 = vmatprep.subr.bf16.mxu0 0
      %699 = vmatpush1.bf16.msra.mxu0 0
      %700 = vmatprep.subr.bf16.mxu0 0
      %701 = vmatpush1.bf16.msra.mxu0 0
      %702 = vmatprep.subr.bf16.mxu0 0
      %703 = vmatpush1.bf16.msra.mxu0 0
      %704 = vmatprep.mubr.bf16.mxu0 0
      %705 = vmatmul.mubr.bf16.gmra.mrb[0].mxu0 %v667
      %v706 = vpop.f32.mrb[0].mxu0
      %v707 = vadd.f32 0.0, %v706
      %v708 = vpop.f32.mrb[0].mxu0
      %v709 = vpop.f32.mrb[0].mxu0
      %v710 = vpop.f32.mrb[0].mxu0
      %711 = vdwg.mxu0
      %v712 = vpack.c.bf16 %v707, %v707
      %v714 = vunpack.c.l.b16 %v712
      %v715 = vpack.c.b16 %v714, %v714
      %716 = vrot.lane.b32.xlu0 %v715, 96
      %v717 = vpop.permute.xlu0 %716
      %vm719 = vcmask 1044224
      %720 = vst.msk [vmem:[%s239] sm:$0xf] %vm719, %v717
      %p721 = scmp.lt.s32.totalorder %s18, 1
      %s722 = scalar_select %p721, %s18, 1
      %p723 = scmp.lt.s32.totalorder %s19, 0
      %s724 = scalar_select %p723, %s19, 0
      %s725 = sadd.s32 %s724, %s722
      %s726 = smul.addr %s725, 4
      %s727 = scalar_lea.vmem %s3, %s726
      // Predicated region
      $region33: #{transformer_forward.38} parent=31 // pred_check
        %p728 = pneg %p126
      $region34: #{transformer_forward.38} parent=31 // pred_check_branch
        %730 = sbr.rel (%p728) target = $region36
      $region35: #{transformer_forward.38} parent=31 // pred_region
        _
      $region36: #{transformer_forward.38} parent=31 // pred_fallthru
        _
    $region32: #{transformer_forward.38} parent=5 // pred_fallthru
      _
    %p731 = scmp.le.s32.totalorder 2, %s9
    // Predicated region
    $region37: #{transformer_forward.38} parent=5 // pred_check
      %p732 = pneg %p731
    $region38: #{transformer_forward.38} parent=5 // pred_check_branch
      %734 = sbr.rel (%p732) target = $region40
    $region39: #{transformer_forward.38} parent=5 // pred_region
      %s735 = ssub.s32 %s9, 2
      // Predicated region
      $region41: #{transformer_forward.38} parent=39 // pred_check
        %p736 = pneg %p132
      $region42: #{transformer_forward.38} parent=39 // pred_check_branch
        %738 = sbr.rel (%p736) target = $region44
      $region43: #{transformer_forward.38} parent=39 // pred_region
        %p739 = scmp.lt.s32.totalorder %s20, 1
        %s740 = scalar_select %p739, %s20, 1
        %p741 = scmp.lt.s32.totalorder %s21, 0
        %s742 = scalar_select %p741, %s21, 0
        %s743 = sadd.s32 %s742, %s740
        %s744 = smul.addr %s743, 4
        %s745 = scalar_lea.vmem %s3, %s744
      $region44: #{transformer_forward.38} parent=39 // pred_fallthru
        _
    $region40: #{transformer_forward.38} parent=5 // pred_fallthru
      _
  $region6: #{transformer_forward.38} parent=0 // loop_footer
    %s13 = sadd.s32 1, %s9
  $region7: #{transformer_forward.38} parent=0 // loop_footer_branch
    %8 = sbr.rel target = $region3
  $region8: #{transformer_forward.38} parent=0 // loop_exit
    _

// kernel: transformer_forward.34
$region0: #{transformer_forward.34}
  #allocation0 [shape = 'u32[]', space=smem, size = 0x4, offset = 0x4, fixed_abs, tag = 'smem constant byte address 0x4 - core index']
  #allocation1 [shape = 'u32[144,128]{1,0:T(1,128)}', space=vmem, size = 0x12000, scoped, tag = 'internal scratch']
  %s0 = inlined_call_operand.vmem [shape: bf16[2,8,384], index: 0, kind: input, shape index: {}, may-alias: {0,1,2}]
  %s1 = inlined_call_operand.vmem [shape: bf16[2,8,384], index: 1, kind: input, shape index: {}, may-alias: {0,1,2}]
  %s2 = inlined_call_operand.vmem [shape: bf16[2,8,384], index: 2, kind: input, shape index: {}, may-alias: {0,1,2}]
  %s3 = inlined_call_operand.vmem [shape: bf16[2,8,128], index: 3, kind: output, shape index: {}]
  %s4 = sld [smem:[#allocation0]]
  $region45: #{transformer_forward.34} parent=0
    _
  %s6 = ssub.s32 1, %s4
  %s7 = scalar_select 0, %s6, %s4
  loop: start=0, step=1, limit=4
  $region2: #{transformer_forward.34} parent=0 // loop_pre_header
    _
  $region3: #{transformer_forward.34} parent=0 // loop_header
    %s9 = sphi 0, %s13
    %p10 = scmp.ge.s32.totalorder %s9, 4
    %s16 = sphi 0, %s28
    %s17 = sphi 0, %s24
    %s18 = sphi 0, %s16
    %s19 = sphi 0, %s17
    %s20 = sphi 0, %s18
    %s21 = sphi 0, %s19
    %s33 = sphi 0, %s35
    %s36 = sphi 0, %s33
    %s37 = sphi 0, %s36
    %s53 = sphi 0, %s37
    %s59 = sphi 0, %s61
    %s62 = sphi 0, %s59
    %s63 = sphi 0, %s62
    %s79 = sphi 0, %s63
    %s85 = sphi 0, %s87
    %s88 = sphi 0, %s85
    %s89 = sphi 0, %s88
    %s105 = sphi 0, %s89
    %s113 = sphi 0, %s115
    %s116 = sphi 0, %s113
    %s117 = sphi 0, %s116
    %s133 = sphi 0, %s117
  $region4: #{transformer_forward.34} parent=0 // loop_header_branch
    %12 = sbr.rel (%p10) target = $region8
  $region5: #{transformer_forward.34} parent=0 // loop_body
    %s14 = ssub.s32 %s9, 1
    %s15 = ssub.s32 %s9, 2
    %s22 = sadd.s32 1, %s17
    %p23 = scmp.ge.s32.totalorder %s22, 1
    %s24 = scalar_select %p23, 0, %s22
    %s25 = sadd.s32 1, %s16
    %s26 = scalar_select %p23, %s25, %s16
    %p27 = scmp.ge.s32.totalorder %s26, 2
    %s28 = scalar_select %p27, 0, %s26
    %s29 = ssub.s32 %s16, %s28
    %s30 = ssub.s32 %s17, %s24
    %s31 = sor.u32 %s29, %s30
    %p32 = scmp.eq.s32.totalorder %s31, 0
    %s34 = sadd.s32 %s33, 1
    %s35 = scalar_select %p32, %s33, %s34
    %p38 = pneg %p32
    %p39 = scmp.eq.s32.totalorder %s9, 1
    %p40 = por %p38, %p39
    %p41 = scmp.ne.s32.totalorder %s33, %s36
    %p42 = scmp.eq.s32.totalorder %s9, 0
    %p43 = por %p41, %p42
    %p44 = scmp.ne.s32.totalorder %s33, %s36
    %p45 = scmp.eq.s32.totalorder %s14, 1
    %p46 = por %p44, %p45
    %p47 = scmp.ne.s32.totalorder %s36, %s37
    %p48 = scmp.eq.s32.totalorder %s14, 0
    %p49 = por %p47, %p48
    %p50 = scmp.ne.s32.totalorder %s36, %s37
    %p51 = scmp.eq.s32.totalorder %s15, 1
    %p52 = por %p50, %p51
    %p54 = scmp.ne.s32.totalorder %s37, %s53
    %p55 = scmp.eq.s32.totalorder %s15, 0
    %p56 = por %p54, %p55
    %s57 = ssub.s32 %s16, %s28
    %p58 = scmp.eq.s32.totalorder %s57, 0
    %s60 = sadd.s32 %s59, 1
    %s61 = scalar_select %p58, %s59, %s60
    %p64 = pneg %p58
    %p65 = scmp.eq.s32.totalorder %s9, 1
    %p66 = por %p64, %p65
    %p67 = scmp.ne.s32.totalorder %s59, %s62
    %p68 = scmp.eq.s32.totalorder %s9, 0
    %p69 = por %p67, %p68
    %p70 = scmp.ne.s32.totalorder %s59, %s62
    %p71 = scmp.eq.s32.totalorder %s14, 1
    %p72 = por %p70, %p71
    %p73 = scmp.ne.s32.totalorder %s62, %s63
    %p74 = scmp.eq.s32.totalorder %s14, 0
    %p75 = por %p73, %p74
    %p76 = scmp.ne.s32.totalorder %s62, %s63
    %p77 = scmp.eq.s32.totalorder %s15, 1
    %p78 = por %p76, %p77
    %p80 = scmp.ne.s32.totalorder %s63, %s79
    %p81 = scmp.eq.s32.totalorder %s15, 0
    %p82 = por %p80, %p81
    %s83 = ssub.s32 %s16, %s28
    %p84 = scmp.eq.s32.totalorder %s83, 0
    %s86 = sadd.s32 %s85, 1
    %s87 = scalar_select %p84, %s85, %s86
    %p90 = pneg %p84
    %p91 = scmp.eq.s32.totalorder %s9, 1
    %p92 = por %p90, %p91
    %p93 = scmp.ne.s32.totalorder %s85, %s88
    %p94 = scmp.eq.s32.totalorder %s9, 0
    %p95 = por %p93, %p94
    %p96 = scmp.ne.s32.totalorder %s85, %s88
    %p97 = scmp.eq.s32.totalorder %s14, 1
    %p98 = por %p96, %p97
    %p99 = scmp.ne.s32.totalorder %s88, %s89
    %p100 = scmp.eq.s32.totalorder %s14, 0
    %p101 = por %p99, %p100
    %p102 = scmp.ne.s32.totalorder %s88, %s89
    %p103 = scmp.eq.s32.totalorder %s15, 1
    %p104 = por %p102, %p103
    %p106 = scmp.ne.s32.totalorder %s89, %s105
    %p107 = scmp.eq.s32.totalorder %s15, 0
    %p108 = por %p106, %p107
    %s109 = ssub.s32 %s16, %s28
    %s110 = ssub.s32 %s17, %s24
    %s111 = sor.u32 %s109, %s110
    %p112 = scmp.eq.s32.totalorder %s111, 0
    %s114 = sadd.s32 %s113, 1
    %s115 = scalar_select %p112, %s113, %s114
    %p118 = pneg %p112
    %p119 = scmp.eq.s32.totalorder %s9, 1
    %p120 = por %p118, %p119
    %p121 = scmp.ne.s32.totalorder %s113, %s116
    %p122 = scmp.eq.s32.totalorder %s9, 0
    %p123 = por %p121, %p122
    %p124 = scmp.ne.s32.totalorder %s113, %s116
    %p125 = scmp.eq.s32.totalorder %s14, 1
    %p126 = por %p124, %p125
    %p127 = scmp.ne.s32.totalorder %s116, %s117
    %p128 = scmp.eq.s32.totalorder %s14, 0
    %p129 = por %p127, %p128
    %p130 = scmp.ne.s32.totalorder %s116, %s117
    %p131 = scmp.eq.s32.totalorder %s15, 1
    %p132 = por %p130, %p131
    %p134 = scmp.ne.s32.totalorder %s117, %s133
    %p135 = scmp.eq.s32.totalorder %s15, 0
    %p136 = por %p134, %p135
    %p137 = scmp.le.s32.totalorder 1, %s9
    %p138 = scmp.lt.s32.totalorder %s9, 3
    %p139 = pnand %p137, %p138
    %p140 = pneg %p139
    // Predicated region
    $region9: #{transformer_forward.34} parent=5 // pred_check
      _
    $region10: #{transformer_forward.34} parent=5 // pred_check_branch
      %142 = sbr.rel (%p139) target = $region12
    $region11: #{transformer_forward.34} parent=5 // pred_region
      %s143 = ssub.s32 %s9, 1
    $region12: #{transformer_forward.34} parent=5 // pred_fallthru
      _
    %p144 = scmp.lt.s32.totalorder %s9, 2
    // Predicated region
    $region13: #{transformer_forward.34} parent=5 // pred_check
      %p145 = pneg %p144
    $region14: #{transformer_forward.34} parent=5 // pred_check_branch
      %147 = sbr.rel (%p145) target = $region16
    $region15: #{transformer_forward.34} parent=5 // pred_region
      // Predicated region
      $region17: #{transformer_forward.34} parent=15 // pred_check
        %p148 = pneg %p43
      $region18: #{transformer_forward.34} parent=15 // pred_check_branch
        %150 = sbr.rel (%p148) target = $region20
      $region19: #{transformer_forward.34} parent=15 // pred_region
        %p151 = scmp.lt.s32.totalorder %s16, 1
        %s152 = scalar_select %p151, %s16, 1
        %p153 = scmp.lt.s32.totalorder %s17, 0
        %s154 = scalar_select %p153, %s17, 0
        %s155 = smul.addr %s154, 3
        %s156 = smul.addr %s152, 3
        %s157 = sadd.s32 %s155, %s156
        %s158 = smul.addr %s157, 4
        %s159 = scalar_lea.vmem %s0, %s158
      $region20: #{transformer_forward.34} parent=15 // pred_fallthru
        _
      // Predicated region
      $region21: #{transformer_forward.34} parent=15 // pred_check
        %p160 = pneg %p69
      $region22: #{transformer_forward.34} parent=15 // pred_check_branch
        %162 = sbr.rel (%p160) target = $region24
      $region23: #{transformer_forward.34} parent=15 // pred_region
        %p163 = scmp.lt.s32.totalorder %s16, 1
        %s164 = scalar_select %p163, %s16, 1
        %s165 = smul.addr %s164, 3
        %s166 = sadd.s32 1, %s165
        %s167 = smul.addr %s166, 4
        %s168 = scalar_lea.vmem %s1, %s167
      $region24: #{transformer_forward.34} parent=15 // pred_fallthru
        _
      // Predicated region
      $region25: #{transformer_forward.34} parent=15 // pred_check
        %p169 = pneg %p95
      $region26: #{transformer_forward.34} parent=15 // pred_check_branch
        %171 = sbr.rel (%p169) target = $region28
      $region27: #{transformer_forward.34} parent=15 // pred_region
        %p172 = scmp.lt.s32.totalorder %s16, 1
        %s173 = scalar_select %p172, %s16, 1
        %s174 = smul.addr %s173, 3
        %s175 = sadd.s32 2, %s174
        %s176 = smul.addr %s175, 4
        %s177 = scalar_lea.vmem %s2, %s176
      $region28: #{transformer_forward.34} parent=15 // pred_fallthru
        _
    $region16: #{transformer_forward.34} parent=5 // pred_fallthru
      _
    %p178 = scmp.le.s32.totalorder 1, %s9
    %p179 = scmp.lt.s32.totalorder %s9, 3
    %p180 = pnand %p178, %p179
    %p181 = pneg %p180
    // Predicated region
    $region29: #{transformer_forward.34} parent=5 // pred_check
      _
    $region30: #{transformer_forward.34} parent=5 // pred_check_branch
      %183 = sbr.rel (%p180) target = $region32
    $region31: #{transformer_forward.34} parent=5 // pred_region
      %s184 = ssub.s32 %s9, 1
      %p185 = scmp.lt.s32.totalorder %s18, 1
      %s186 = scalar_select %p185, %s18, 1
      %p187 = scmp.lt.s32.totalorder %s19, 0
      %s188 = scalar_select %p187, %s19, 0
      %s189 = smul.addr %s188, 3
      %s190 = smul.addr %s186, 3
      %s191 = sadd.s32 %s189, %s190
      %s192 = smul.addr %s191, 4
      %s193 = scalar_lea.vmem %s0, %s192
      %p194 = pneg %p49
      %p195 = pneg %p46
      %p196 = scmp.lt.s32.totalorder %s18, 1
      %s197 = scalar_select %p196, %s18, 1
      %s198 = smul.addr %s197, 3
      %s199 = sadd.s32 1, %s198
      %s200 = smul.addr %s199, 4
      %s201 = scalar_lea.vmem %s1, %s200
      %p202 = pneg %p75
      %p203 = pneg %p72
      %p204 = scmp.lt.s32.totalorder %s18, 1
      %s205 = scalar_select %p204, %s18, 1
      %s206 = smul.addr %s205, 3
      %s207 = sadd.s32 2, %s206
      %s208 = smul.addr %s207, 4
      %s209 = scalar_lea.vmem %s2, %s208
      %p210 = pneg %p101
      %p211 = pneg %p98
      %p212 = pneg %p129
      %p213 = pneg %p126
      %p214 = scmp.lt.s32.totalorder %s18, 1
      %s215 = scalar_select %p214, %s18, 1
      %p216 = scmp.lt.s32.totalorder %s19, 0
      %s217 = scalar_select %p216, %s19, 0
      %s218 = sadd.s32 %s217, %s215
      %s219 = smul.addr %s218, 4
      %s220 = scalar_lea.vmem %s3, %s219
      %p221 = scmp.lt.s32.totalorder %s18, 1
      %s222 = scalar_select %p221, %s18, 1
      %p223 = scmp.lt.s32.totalorder %s19, 0
      %s224 = scalar_select %p223, %s19, 0
      %s225 = smul.addr %s224, 3
      %s226 = smul.addr %s222, 3
      %s227 = sadd.s32 %s225, %s226
      %s228 = smul.addr %s227, 4
      %s229 = scalar_lea.vmem %s0, %s228
      %p230 = scmp.lt.s32.totalorder %s18, 1
      %s231 = scalar_select %p230, %s18, 1
      %s232 = smul.addr %s231, 3
      %s233 = sadd.s32 1, %s232
      %s234 = smul.addr %s233, 4
      %s235 = scalar_lea.vmem %s1, %s234
      %p236 = scmp.lt.s32.totalorder %s18, 1
      %s237 = scalar_select %p236, %s18, 1
      %s238 = smul.addr %s237, 3
      %s239 = sadd.s32 2, %s238
      %s240 = smul.addr %s239, 4
      %s241 = scalar_lea.vmem %s2, %s240
      %p242 = scmp.lt.s32.totalorder %s18, 1
      %s243 = scalar_select %p242, %s18, 1
      %p244 = scmp.lt.s32.totalorder %s19, 0
      %s245 = scalar_select %p244, %s19, 0
      %s246 = sadd.s32 %s245, %s243
      %s247 = smul.addr %s246, 4
      %s248 = scalar_lea.vmem %s3, %s247
      %v250 = vld [vmem:[%s229] sm:$0xf]
      %v251 = vld [vmem:[%s235] sm:$0xf]
      %v252 = vld [vmem:[%s241] sm:$0xf]
      %s253 = smul.u32 %s19, 8
      %v254 = vlaneseq
      %v255 = vshrl.u32 %v254, 7
      %v256 = vstv %s253
      %v257 = vadd.s32 %v256, %v255
      %v258 = vlaneseq
      %v259 = vand.u32 %v258, 127
      %vm260 = vcmp.le.s32.totalorder %v259, %v257
      %v261 = vunpack.c.l.bf16 %v250
      %v262 = vmul.f32 %v261, 0.17677669
      %v263 = vpack.c.bf16 %v262, %v262
      %vm264 = vcmask 261120
      %v266 = vsel %vm264, %v263, 0
      %v269 = vsel %vm264, %v251, 0
      %271 = vmatprep.subr.bf16.mxu0 0
      %272 = vmatpush1.bf16.xpose.msra.mxu0 %v269
      %273 = vmatprep.subr.bf16.mxu0 0
      %274 = vmatpush1.bf16.xpose.msra.mxu0 0
      %275 = vmatprep.subr.bf16.mxu0 0
      %276 = vmatpush1.bf16.xpose.msra.mxu0 0
      %277 = vmatprep.subr.bf16.mxu0 0
      %278 = vmatpush1.bf16.xpose.msra.mxu0 0
      %279 = vmatprep.subr.bf16.mxu0 0
      %280 = vmatpush1.bf16.xpose.msra.mxu0 0
      %281 = vmatprep.subr.bf16.mxu0 0
      %282 = vmatpush1.bf16.xpose.msra.mxu0 0
      %283 = vmatprep.subr.bf16.mxu0 0
      %284 = vmatpush1.bf16.xpose.msra.mxu0 0
      %285 = vmatprep.subr.bf16.mxu0 0
      %286 = vmatpush1.bf16.xpose.msra.mxu0 0
      %287 = vmatprep.subr.bf16.mxu0 0
      %288 = vmatpush1.bf16.xpose.msra.mxu0 0
      %289 = vmatprep.subr.bf16.mxu0 0
      %290 = vmatpush1.bf16.xpose.msra.mxu0 0
      %291 = vmatprep.subr.bf16.mxu0 0
      %292 = vmatpush1.bf16.xpose.msra.mxu0 0
      %293 = vmatprep.subr.bf16.mxu0 0
      %294 = vmatpush1.bf16.xpose.msra.mxu0 0
      %295 = vmatprep.subr.bf16.mxu0 0
      %296 = vmatpush1.bf16.xpose.msra.mxu0 0
      %297 = vmatprep.subr.bf16.mxu0 0
      %298 = vmatpush1.bf16.xpose.msra.mxu0 0
      %299 = vmatprep.subr.bf16.mxu0 0
      %300 = vmatpush1.bf16.xpose.msra.mxu0 0
      %301 = vmatprep.subr.bf16.mxu0 0
      %302 = vmatpush1.bf16.xpose.msra.mxu0 0
      %303 = vmatprep.mubr.bf16.mxu0 0
      %304 = vmatmul.mubr.bf16.gmra.mrb[0].mxu0 %v266
      %v305 = vpop.f32.mrb[0].mxu0
      %v306 = vadd.f32 0.0, %v305
      %v307 = vpop.f32.mrb[0].mxu0
      %v308 = vpop.f32.mrb[0].mxu0
      %v309 = vpop.f32.mrb[0].mxu0
      %310 = vdwg.mxu0
      %v311 = vsel %vm260, %v306, -1e+30
      %vm312 = vcmask 64512
      %v313 = vsel %vm312, %v311, -inf
      %314 = vmax.xlane.f32.xlu0 %v313
      %v315 = vpop.xlane.xlu0 %314
      %v316 = vsub.f32 %v311, %v315
      %v317 = vmul.f32 %v316, 1.442695
      %v318 = vpow.pop %v317
      %v319 = vsel %vm312, %v318, 0.0
      %320 = vadd.xlane.f32.xlu0 %v319
      %v321 = vpop.xlane.xlu0 %320
      %v322 = vrcp.pop %v321
      %v323 = vmul.f32 %v318, %v322
      %v324 = vpack.c.bf16 %v323, %v323
      %v326 = vsel %vm312, %v324, 0
      %vm328 = vcmask 1043456
      %v330 = vsel %vm328, %v252, 0
      %332 = vmatprep.subr.bf16.mxu0 0
      %333 = vmatpush1.bf16.msra.mxu0 %v330
      %334 = vmatprep.subr.bf16.mxu0 0
      %335 = vmatpush1.bf16.msra.mxu0 0
      %336 = vmatprep.subr.bf16.mxu0 0
      %337 = vmatpush1.bf16.msra.mxu0 0
      %338 = vmatprep.subr.bf16.mxu0 0
      %339 = vmatpush1.bf16.msra.mxu0 0
      %340 = vmatprep.subr.bf16.mxu0 0
      %341 = vmatpush1.bf16.msra.mxu0 0
      %342 = vmatprep.subr.bf16.mxu0 0
      %343 = vmatpush1.bf16.msra.mxu0 0
      %344 = vmatprep.subr.bf16.mxu0 0
      %345 = vmatpush1.bf16.msra.mxu0 0
      %346 = vmatprep.subr.bf16.mxu0 0
      %347 = vmatpush1.bf16.msra.mxu0 0
      %348 = vmatprep.subr.bf16.mxu0 0
      %349 = vmatpush1.bf16.msra.mxu0 0
      %350 = vmatprep.subr.bf16.mxu0 0
      %351 = vmatpush1.bf16.msra.mxu0 0
      %352 = vmatprep.subr.bf16.mxu0 0
      %353 = vmatpush1.bf16.msra.mxu0 0
      %354 = vmatprep.subr.bf16.mxu0 0
      %355 = vmatpush1.bf16.msra.mxu0 0
      %356 = vmatprep.subr.bf16.mxu0 0
      %357 = vmatpush1.bf16.msra.mxu0 0
      %358 = vmatprep.subr.bf16.mxu0 0
      %359 = vmatpush1.bf16.msra.mxu0 0
      %360 = vmatprep.subr.bf16.mxu0 0
      %361 = vmatpush1.bf16.msra.mxu0 0
      %362 = vmatprep.subr.bf16.mxu0 0
      %363 = vmatpush1.bf16.msra.mxu0 0
      %364 = vmatprep.mubr.bf16.mxu0 0
      %365 = vmatmul.mubr.bf16.gmra.mrb[0].mxu0 %v326
      %v366 = vpop.f32.mrb[0].mxu0
      %v367 = vadd.f32 0.0, %v366
      %v368 = vpop.f32.mrb[0].mxu0
      %v369 = vpop.f32.mrb[0].mxu0
      %v370 = vpop.f32.mrb[0].mxu0
      %371 = vdwg.mxu0
      %v372 = vpack.c.bf16 %v367, %v367
      %vm373 = vcmask 257024
      %374 = vst.msk [vmem:[%s248] sm:$0xf] %vm373, %v372
      %376 = vrot.lane.b32.xlu0 %v263, 96
      %v377 = vpop.permute.xlu0 %376
      %v379 = vunpack.c.l.b16 %v251
      %v380 = vpack.c.b16 %v379, %v379
      %381 = vrot.lane.b32.xlu0 %v380, 96
      %v382 = vpop.permute.xlu0 %381
      %v384 = vsel %vm264, %v377, 0
      %v387 = vsel %vm264, %v382, 0
      %389 = vmatprep.subr.bf16.mxu0 0
      %390 = vmatpush1.bf16.xpose.msra.mxu0 %v387
      %391 = vmatprep.subr.bf16.mxu0 0
      %392 = vmatpush1.bf16.xpose.msra.mxu0 0
      %393 = vmatprep.subr.bf16.mxu0 0
      %394 = vmatpush1.bf16.xpose.msra.mxu0 0
      %395 = vmatprep.subr.bf16.mxu0 0
      %396 = vmatpush1.bf16.xpose.msra.mxu0 0
      %397 = vmatprep.subr.bf16.mxu0 0
      %398 = vmatpush1.bf16.xpose.msra.mxu0 0
      %399 = vmatprep.subr.bf16.mxu0 0
      %400 = vmatpush1.bf16.xpose.msra.mxu0 0
      %401 = vmatprep.subr.bf16.mxu0 0
      %402 = vmatpush1.bf16.xpose.msra.mxu0 0
      %403 = vmatprep.subr.bf16.mxu0 0
      %404 = vmatpush1.bf16.xpose.msra.mxu0 0
      %405 = vmatprep.subr.bf16.mxu0 0
      %406 = vmatpush1.bf16.xpose.msra.mxu0 0
      %407 = vmatprep.subr.bf16.mxu0 0
      %408 = vmatpush1.bf16.xpose.msra.mxu0 0
      %409 = vmatprep.subr.bf16.mxu0 0
      %410 = vmatpush1.bf16.xpose.msra.mxu0 0
      %411 = vmatprep.subr.bf16.mxu0 0
      %412 = vmatpush1.bf16.xpose.msra.mxu0 0
      %413 = vmatprep.subr.bf16.mxu0 0
      %414 = vmatpush1.bf16.xpose.msra.mxu0 0
      %415 = vmatprep.subr.bf16.mxu0 0
      %416 = vmatpush1.bf16.xpose.msra.mxu0 0
      %417 = vmatprep.subr.bf16.mxu0 0
      %418 = vmatpush1.bf16.xpose.msra.mxu0 0
      %419 = vmatprep.subr.bf16.mxu0 0
      %420 = vmatpush1.bf16.xpose.msra.mxu0 0
      %421 = vmatprep.mubr.bf16.mxu0 0
      %422 = vmatmul.mubr.bf16.gmra.mrb[0].mxu0 %v384
      %v423 = vpop.f32.mrb[0].mxu0
      %v424 = vadd.f32 0.0, %v423
      %v425 = vpop.f32.mrb[0].mxu0
      %v426 = vpop.f32.mrb[0].mxu0
      %v427 = vpop.f32.mrb[0].mxu0
      %428 = vdwg.mxu0
      %v429 = vsel %vm260, %v424, -1e+30
      %v430 = vsel %vm312, %v429, -inf
      %431 = vmax.xlane.f32.xlu0 %v430
      %v432 = vpop.xlane.xlu0 %431
      %v433 = vsub.f32 %v429, %v432
      %v434 = vmul.f32 %v433, 1.442695
      %v435 = vpow.pop %v434
      %v436 = vsel %vm312, %v435, 0.0
      %437 = vadd.xlane.f32.xlu0 %v436
      %v438 = vpop.xlane.xlu0 %437
      %v439 = vrcp.pop %v438
      %v440 = vmul.f32 %v435, %v439
      %v441 = vpack.c.bf16 %v440, %v440
      %v443 = vunpack.c.l.b16 %v252
      %v444 = vpack.c.b16 %v443, %v443
      %445 = vrot.lane.b32.xlu0 %v444, 96
      %v446 = vpop.permute.xlu0 %445
      %v448 = vsel %vm312, %v441, 0
      %v451 = vsel %vm328, %v446, 0
      %453 = vmatprep.subr.bf16.mxu0 0
      %454 = vmatpush1.bf16.msra.mxu0 %v451
      %455 = vmatprep.subr.bf16.mxu0 0
      %456 = vmatpush1.bf16.msra.mxu0 0
      %457 = vmatprep.subr.bf16.mxu0 0
      %458 = vmatpush1.bf16.msra.mxu0 0
      %459 = vmatprep.subr.bf16.mxu0 0
      %460 = vmatpush1.bf16.msra.mxu0 0
      %461 = vmatprep.subr.bf16.mxu0 0
      %462 = vmatpush1.bf16.msra.mxu0 0
      %463 = vmatprep.subr.bf16.mxu0 0
      %464 = vmatpush1.bf16.msra.mxu0 0
      %465 = vmatprep.subr.bf16.mxu0 0
      %466 = vmatpush1.bf16.msra.mxu0 0
      %467 = vmatprep.subr.bf16.mxu0 0
      %468 = vmatpush1.bf16.msra.mxu0 0
      %469 = vmatprep.subr.bf16.mxu0 0
      %470 = vmatpush1.bf16.msra.mxu0 0
      %471 = vmatprep.subr.bf16.mxu0 0
      %472 = vmatpush1.bf16.msra.mxu0 0
      %473 = vmatprep.subr.bf16.mxu0 0
      %474 = vmatpush1.bf16.msra.mxu0 0
      %475 = vmatprep.subr.bf16.mxu0 0
      %476 = vmatpush1.bf16.msra.mxu0 0
      %477 = vmatprep.subr.bf16.mxu0 0
      %478 = vmatpush1.bf16.msra.mxu0 0
      %479 = vmatprep.subr.bf16.mxu0 0
      %480 = vmatpush1.bf16.msra.mxu0 0
      %481 = vmatprep.subr.bf16.mxu0 0
      %482 = vmatpush1.bf16.msra.mxu0 0
      %483 = vmatprep.subr.bf16.mxu0 0
      %484 = vmatpush1.bf16.msra.mxu0 0
      %485 = vmatprep.mubr.bf16.mxu0 0
      %486 = vmatmul.mubr.bf16.gmra.mrb[0].mxu0 %v448
      %v487 = vpop.f32.mrb[0].mxu0
      %v488 = vadd.f32 0.0, %v487
      %v489 = vpop.f32.mrb[0].mxu0
      %v490 = vpop.f32.mrb[0].mxu0
      %v491 = vpop.f32.mrb[0].mxu0
      %492 = vdwg.mxu0
      %v493 = vpack.c.bf16 %v488, %v488
      %v495 = vunpack.c.l.b16 %v493
      %v496 = vpack.c.b16 %v495, %v495
      %497 = vrot.lane.b32.xlu0 %v496, 32
      %v498 = vpop.permute.xlu0 %497
      %vm500 = vcmask 519424
      %501 = vst.msk [vmem:[%s248] sm:$0xf] %vm500, %v498
      %502 = vrot.lane.b32.xlu0 %v263, 64
      %v503 = vpop.permute.xlu0 %502
      %504 = vrot.lane.b32.xlu0 %v380, 64
      %v505 = vpop.permute.xlu0 %504
      %v507 = vsel %vm264, %v503, 0
      %v510 = vsel %vm264, %v505, 0
      %512 = vmatprep.subr.bf16.mxu0 0
      %513 = vmatpush1.bf16.xpose.msra.mxu0 %v510
      %514 = vmatprep.subr.bf16.mxu0 0
      %515 = vmatpush1.bf16.xpose.msra.mxu0 0
      %516 = vmatprep.subr.bf16.mxu0 0
      %517 = vmatpush1.bf16.xpose.msra.mxu0 0
      %518 = vmatprep.subr.bf16.mxu0 0
      %519 = vmatpush1.bf16.xpose.msra.mxu0 0
      %520 = vmatprep.subr.bf16.mxu0 0
      %521 = vmatpush1.bf16.xpose.msra.mxu0 0
      %522 = vmatprep.subr.bf16.mxu0 0
      %523 = vmatpush1.bf16.xpose.msra.mxu0 0
      %524 = vmatprep.subr.bf16.mxu0 0
      %525 = vmatpush1.bf16.xpose.msra.mxu0 0
      %526 = vmatprep.subr.bf16.mxu0 0
      %527 = vmatpush1.bf16.xpose.msra.mxu0 0
      %528 = vmatprep.subr.bf16.mxu0 0
      %529 = vmatpush1.bf16.xpose.msra.mxu0 0
      %530 = vmatprep.subr.bf16.mxu0 0
      %531 = vmatpush1.bf16.xpose.msra.mxu0 0
      %532 = vmatprep.subr.bf16.mxu0 0
      %533 = vmatpush1.bf16.xpose.msra.mxu0 0
      %534 = vmatprep.subr.bf16.mxu0 0
      %535 = vmatpush1.bf16.xpose.msra.mxu0 0
      %536 = vmatprep.subr.bf16.mxu0 0
      %537 = vmatpush1.bf16.xpose.msra.mxu0 0
      %538 = vmatprep.subr.bf16.mxu0 0
      %539 = vmatpush1.bf16.xpose.msra.mxu0 0
      %540 = vmatprep.subr.bf16.mxu0 0
      %541 = vmatpush1.bf16.xpose.msra.mxu0 0
      %542 = vmatprep.subr.bf16.mxu0 0
      %543 = vmatpush1.bf16.xpose.msra.mxu0 0
      %544 = vmatprep.mubr.bf16.mxu0 0
      %545 = vmatmul.mubr.bf16.gmra.mrb[0].mxu0 %v507
      %v546 = vpop.f32.mrb[0].mxu0
      %v547 = vadd.f32 0.0, %v546
      %v548 = vpop.f32.mrb[0].mxu0
      %v549 = vpop.f32.mrb[0].mxu0
      %v550 = vpop.f32.mrb[0].mxu0
      %551 = vdwg.mxu0
      %v552 = vsel %vm260, %v547, -1e+30
      %v553 = vsel %vm312, %v552, -inf
      %554 = vmax.xlane.f32.xlu0 %v553
      %v555 = vpop.xlane.xlu0 %554
      %v556 = vsub.f32 %v552, %v555
      %v557 = vmul.f32 %v556, 1.442695
      %v558 = vpow.pop %v557
      %v559 = vsel %vm312, %v558, 0.0
      %560 = vadd.xlane.f32.xlu0 %v559
      %v561 = vpop.xlane.xlu0 %560
      %v562 = vrcp.pop %v561
      %v563 = vmul.f32 %v558, %v562
      %v564 = vpack.c.bf16 %v563, %v563
      %565 = vrot.lane.b32.xlu0 %v444, 64
      %v566 = vpop.permute.xlu0 %565
      %v568 = vsel %vm312, %v564, 0
      %v571 = vsel %vm328, %v566, 0
      %573 = vmatprep.subr.bf16.mxu0 0
      %574 = vmatpush1.bf16.msra.mxu0 %v571
      %575 = vmatprep.subr.bf16.mxu0 0
      %576 = vmatpush1.bf16.msra.mxu0 0
      %577 = vmatprep.subr.bf16.mxu0 0
      %578 = vmatpush1.bf16.msra.mxu0 0
      %579 = vmatprep.subr.bf16.mxu0 0
      %580 = vmatpush1.bf16.msra.mxu0 0
      %581 = vmatprep.subr.bf16.mxu0 0
      %582 = vmatpush1.bf16.msra.mxu0 0
      %583 = vmatprep.subr.bf16.mxu0 0
      %584 = vmatpush1.bf16.msra.mxu0 0
      %585 = vmatprep.subr.bf16.mxu0 0
      %586 = vmatpush1.bf16.msra.mxu0 0
      %587 = vmatprep.subr.bf16.mxu0 0
      %588 = vmatpush1.bf16.msra.mxu0 0
      %589 = vmatprep.subr.bf16.mxu0 0
      %590 = vmatpush1.bf16.msra.mxu0 0
      %591 = vmatprep.subr.bf16.mxu0 0
      %592 = vmatpush1.bf16.msra.mxu0 0
      %593 = vmatprep.subr.bf16.mxu0 0
      %594 = vmatpush1.bf16.msra.mxu0 0
      %595 = vmatprep.subr.bf16.mxu0 0
      %596 = vmatpush1.bf16.msra.mxu0 0
      %597 = vmatprep.subr.bf16.mxu0 0
      %598 = vmatpush1.bf16.msra.mxu0 0
      %599 = vmatprep.subr.bf16.mxu0 0
      %600 = vmatpush1.bf16.msra.mxu0 0
      %601 = vmatprep.subr.bf16.mxu0 0
      %602 = vmatpush1.bf16.msra.mxu0 0
      %603 = vmatprep.subr.bf16.mxu0 0
      %604 = vmatpush1.bf16.msra.mxu0 0
      %605 = vmatprep.mubr.bf16.mxu0 0
      %606 = vmatmul.mubr.bf16.gmra.mrb[0].mxu0 %v568
      %v607 = vpop.f32.mrb[0].mxu0
      %v608 = vadd.f32 0.0, %v607
      %v609 = vpop.f32.mrb[0].mxu0
      %v610 = vpop.f32.mrb[0].mxu0
      %v611 = vpop.f32.mrb[0].mxu0
      %612 = vdwg.mxu0
      %v613 = vpack.c.bf16 %v608, %v608
      %v615 = vunpack.c.l.b16 %v613
      %v616 = vpack.c.b16 %v615, %v615
      %617 = vrot.lane.b32.xlu0 %v616, 64
      %v618 = vpop.permute.xlu0 %617
      %vm620 = vcmask 781824
      %621 = vst.msk [vmem:[%s248] sm:$0xf] %vm620, %v618
      %622 = vrot.lane.b32.xlu0 %v263, 32
      %v623 = vpop.permute.xlu0 %622
      %624 = vrot.lane.b32.xlu0 %v380, 32
      %v625 = vpop.permute.xlu0 %624
      %v627 = vsel %vm264, %v623, 0
      %v630 = vsel %vm264, %v625, 0
      %632 = vmatprep.subr.bf16.mxu0 0
      %633 = vmatpush1.bf16.xpose.msra.mxu0 %v630
      %634 = vmatprep.subr.bf16.mxu0 0
      %635 = vmatpush1.bf16.xpose.msra.mxu0 0
      %636 = vmatprep.subr.bf16.mxu0 0
      %637 = vmatpush1.bf16.xpose.msra.mxu0 0
      %638 = vmatprep.subr.bf16.mxu0 0
      %639 = vmatpush1.bf16.xpose.msra.mxu0 0
      %640 = vmatprep.subr.bf16.mxu0 0
      %641 = vmatpush1.bf16.xpose.msra.mxu0 0
      %642 = vmatprep.subr.bf16.mxu0 0
      %643 = vmatpush1.bf16.xpose.msra.mxu0 0
      %644 = vmatprep.subr.bf16.mxu0 0
      %645 = vmatpush1.bf16.xpose.msra.mxu0 0
      %646 = vmatprep.subr.bf16.mxu0 0
      %647 = vmatpush1.bf16.xpose.msra.mxu0 0
      %648 = vmatprep.subr.bf16.mxu0 0
      %649 = vmatpush1.bf16.xpose.msra.mxu0 0
      %650 = vmatprep.subr.bf16.mxu0 0
      %651 = vmatpush1.bf16.xpose.msra.mxu0 0
      %652 = vmatprep.subr.bf16.mxu0 0
      %653 = vmatpush1.bf16.xpose.msra.mxu0 0
      %654 = vmatprep.subr.bf16.mxu0 0
      %655 = vmatpush1.bf16.xpose.msra.mxu0 0
      %656 = vmatprep.subr.bf16.mxu0 0
      %657 = vmatpush1.bf16.xpose.msra.mxu0 0
      %658 = vmatprep.subr.bf16.mxu0 0
      %659 = vmatpush1.bf16.xpose.msra.mxu0 0
      %660 = vmatprep.subr.bf16.mxu0 0
      %661 = vmatpush1.bf16.xpose.msra.mxu0 0
      %662 = vmatprep.subr.bf16.mxu0 0
      %663 = vmatpush1.bf16.xpose.msra.mxu0 0
      %664 = vmatprep.mubr.bf16.mxu0 0
      %665 = vmatmul.mubr.bf16.gmra.mrb[0].mxu0 %v627
      %v666 = vpop.f32.mrb[0].mxu0
      %v667 = vadd.f32 0.0, %v666
      %v668 = vpop.f32.mrb[0].mxu0
      %v669 = vpop.f32.mrb[0].mxu0
      %v670 = vpop.f32.mrb[0].mxu0
      %671 = vdwg.mxu0
      %v672 = vsel %vm260, %v667, -1e+30
      %v673 = vsel %vm312, %v672, -inf
      %674 = vmax.xlane.f32.xlu0 %v673
      %v675 = vpop.xlane.xlu0 %674
      %v676 = vsub.f32 %v672, %v675
      %v677 = vmul.f32 %v676, 1.442695
      %v678 = vpow.pop %v677
      %v679 = vsel %vm312, %v678, 0.0
      %680 = vadd.xlane.f32.xlu0 %v679
      %v681 = vpop.xlane.xlu0 %680
      %v682 = vrcp.pop %v681
      %v683 = vmul.f32 %v678, %v682
      %v684 = vpack.c.bf16 %v683, %v683
      %685 = vrot.lane.b32.xlu0 %v444, 32
      %v686 = vpop.permute.xlu0 %685
      %v688 = vsel %vm312, %v684, 0
      %v691 = vsel %vm328, %v686, 0
      %693 = vmatprep.subr.bf16.mxu0 0
      %694 = vmatpush1.bf16.msra.mxu0 %v691
      %695 = vmatprep.subr.bf16.mxu0 0
      %696 = vmatpush1.bf16.msra.mxu0 0
      %697 = vmatprep.subr.bf16.mxu0 0
      %698 = vmatpush1.bf16.msra.mxu0 0
      %699 = vmatprep.subr.bf16.mxu0 0
      %700 = vmatpush1.bf16.msra.mxu0 0
      %701 = vmatprep.subr.bf16.mxu0 0
      %702 = vmatpush1.bf16.msra.mxu0 0
      %703 = vmatprep.subr.bf16.mxu0 0
      %704 = vmatpush1.bf16.msra.mxu0 0
      %705 = vmatprep.subr.bf16.mxu0 0
      %706 = vmatpush1.bf16.msra.mxu0 0
      %707 = vmatprep.subr.bf16.mxu0 0
      %708 = vmatpush1.bf16.msra.mxu0 0
      %709 = vmatprep.subr.bf16.mxu0 0
      %710 = vmatpush1.bf16.msra.mxu0 0
      %711 = vmatprep.subr.bf16.mxu0 0
      %712 = vmatpush1.bf16.msra.mxu0 0
      %713 = vmatprep.subr.bf16.mxu0 0
      %714 = vmatpush1.bf16.msra.mxu0 0
      %715 = vmatprep.subr.bf16.mxu0 0
      %716 = vmatpush1.bf16.msra.mxu0 0
      %717 = vmatprep.subr.bf16.mxu0 0
      %718 = vmatpush1.bf16.msra.mxu0 0
      %719 = vmatprep.subr.bf16.mxu0 0
      %720 = vmatpush1.bf16.msra.mxu0 0
      %721 = vmatprep.subr.bf16.mxu0 0
      %722 = vmatpush1.bf16.msra.mxu0 0
      %723 = vmatprep.subr.bf16.mxu0 0
      %724 = vmatpush1.bf16.msra.mxu0 0
      %725 = vmatprep.mubr.bf16.mxu0 0
      %726 = vmatmul.mubr.bf16.gmra.mrb[0].mxu0 %v688
      %v727 = vpop.f32.mrb[0].mxu0
      %v728 = vadd.f32 0.0, %v727
      %v729 = vpop.f32.mrb[0].mxu0
      %v730 = vpop.f32.mrb[0].mxu0
      %v731 = vpop.f32.mrb[0].mxu0
      %732 = vdwg.mxu0
      %v733 = vpack.c.bf16 %v728, %v728
      %v735 = vunpack.c.l.b16 %v733
      %v736 = vpack.c.b16 %v735, %v735
      %737 = vrot.lane.b32.xlu0 %v736, 96
      %v738 = vpop.permute.xlu0 %737
      %vm740 = vcmask 1044224
      %741 = vst.msk [vmem:[%s248] sm:$0xf] %vm740, %v738
      %p742 = scmp.lt.s32.totalorder %s18, 1
      %s743 = scalar_select %p742, %s18, 1
      %p744 = scmp.lt.s32.totalorder %s19, 0
      %s745 = scalar_select %p744, %s19, 0
      %s746 = sadd.s32 %s745, %s743
      %s747 = smul.addr %s746, 4
      %s748 = scalar_lea.vmem %s3, %s747
      // Predicated region
      $region33: #{transformer_forward.34} parent=31 // pred_check
        %p749 = pneg %p126
      $region34: #{transformer_forward.34} parent=31 // pred_check_branch
        %751 = sbr.rel (%p749) target = $region36
      $region35: #{transformer_forward.34} parent=31 // pred_region
        _
      $region36: #{transformer_forward.34} parent=31 // pred_fallthru
        _
    $region32: #{transformer_forward.34} parent=5 // pred_fallthru
      _
    %p752 = scmp.le.s32.totalorder 2, %s9
    // Predicated region
    $region37: #{transformer_forward.34} parent=5 // pred_check
      %p753 = pneg %p752
    $region38: #{transformer_forward.34} parent=5 // pred_check_branch
      %755 = sbr.rel (%p753) target = $region40
    $region39: #{transformer_forward.34} parent=5 // pred_region
      %s756 = ssub.s32 %s9, 2
      // Predicated region
      $region41: #{transformer_forward.34} parent=39 // pred_check
        %p757 = pneg %p132
      $region42: #{transformer_forward.34} parent=39 // pred_check_branch
        %759 = sbr.rel (%p757) target = $region44
      $region43: #{transformer_forward.34} parent=39 // pred_region
        %p760 = scmp.lt.s32.totalorder %s20, 1
        %s761 = scalar_select %p760, %s20, 1
        %p762 = scmp.lt.s32.totalorder %s21, 0
        %s763 = scalar_select %p762, %s21, 0
        %s764 = sadd.s32 %s763, %s761
        %s765 = smul.addr %s764, 4
        %s766 = scalar_lea.vmem %s3, %s765
      $region44: #{transformer_forward.34} parent=39 // pred_fallthru
        _
    $region40: #{transformer_forward.34} parent=5 // pred_fallthru
      _
  $region6: #{transformer_forward.34} parent=0 // loop_footer
    %s13 = sadd.s32 1, %s9
  $region7: #{transformer_forward.34} parent=0 // loop_footer_branch
    %8 = sbr.rel target = $region3
  $region8: #{transformer_forward.34} parent=0 // loop_exit
    _

// kernel: transformer_forward.49
$region0: #{transformer_forward.49}
  #allocation0 [shape = 'u32[]', space=smem, size = 0x4, offset = 0x4, fixed_abs, tag = 'smem constant byte address 0x4 - core index']
  #allocation1 [shape = 'u32[144,128]{1,0:T(1,128)}', space=vmem, size = 0x12000, scoped, tag = 'internal scratch']
  #allocation2 [shape = 'f32[16,512]{1,0:T(8,128)}', space=vmem, size = 0x8000, scoped, tag = 'scratch operand']
  %s0 = inlined_call_operand.vmem [shape: bf16[16,128], index: 0, kind: input, shape index: {}]
  %s1 = inlined_call_operand.vmem [shape: bf16[128,1024], index: 1, kind: input, shape index: {}]
  %s2 = inlined_call_operand.hbm [shape: f32[16,1024], index: 2, kind: output, shape index: {}]
  %s3 = sld [smem:[#allocation0]]
  $region72: #{transformer_forward.49} parent=0
    _
  %s5 = ssub.s32 1, %s3
  %s6 = scalar_select 0, %s5, %s3
  $region1: #{transformer_forward.49} parent=0
    #allocation3 [shape = 'u8[262144]{0}', space=vmem, size = 0x40000, scoped, tag = 'input window, operand 1']
    #allocation4 [shape = 'u8[65536]{0}', space=vmem, size = 0x10000, scoped, tag = 'output window, operand 0']
    #allocation5 [shape = 's32[2]{0}', space=sflag, size = 0x8, scoped, tag = 'scoped memory for transformer_forward.49']
    %7 = vsyncpa [#allocation5], 0
    %s8 = scalar_lea.sflag [#allocation5], 1
    %9 = vsyncpa %s8, 0
    loop: start=0, step=1, limit=4
    $region2: #{transformer_forward.49} parent=1 // loop_pre_header
      _
    $region3: #{transformer_forward.49} parent=1 // loop_header
      %s11 = sphi 0, %s15
      %p12 = scmp.ge.s32.totalorder %s11, 4
      %s18 = sphi 0, %s37
      %s19 = sphi 0, %s33
      %s20 = sphi 0, %s29
      %s21 = sphi 0, %s18
      %s22 = sphi 0, %s19
      %s23 = sphi 0, %s20
      %s24 = sphi 0, %s21
      %s25 = sphi 0, %s22
      %s26 = sphi 0, %s23
      %s42 = sphi 0, %s44
      %s45 = sphi 0, %s42
      %s46 = sphi 0, %s45
      %s62 = sphi 0, %s46
      %s70 = sphi 0, %s72
      %s73 = sphi 0, %s70
      %s74 = sphi 0, %s73
      %s90 = sphi 0, %s74
      %s98 = sphi 0, %s100
      %s101 = sphi 0, %s98
      %s102 = sphi 0, %s101
      %s118 = sphi 0, %s102
    $region4: #{transformer_forward.49} parent=1 // loop_header_branch
      %14 = sbr.rel (%p12) target = $region8
    $region5: #{transformer_forward.49} parent=1 // loop_body
      %s16 = ssub.s32 %s11, 1
      %s17 = ssub.s32 %s11, 2
      %s27 = sadd.s32 1, %s20
      %p28 = scmp.ge.s32.totalorder %s27, 1
      %s29 = scalar_select %p28, 0, %s27
      %s30 = sadd.s32 1, %s19
      %s31 = scalar_select %p28, %s30, %s19
      %p32 = scmp.ge.s32.totalorder %s31, 2
      %s33 = scalar_select %p32, 0, %s31
      %s34 = sadd.s32 1, %s18
      %s35 = scalar_select %p32, %s34, %s18
      %p36 = scmp.ge.s32.totalorder %s35, 1
      %s37 = scalar_select %p36, 0, %s35
      %s38 = ssub.s32 %s18, %s37
      %s39 = ssub.s32 %s20, %s29
      %s40 = sor.u32 %s38, %s39
      %p41 = scmp.eq.s32.totalorder %s40, 0
      %s43 = sadd.s32 %s42, 1
      %s44 = scalar_select %p41, %s42, %s43
      %p47 = pneg %p41
      %p48 = scmp.eq.s32.totalorder %s11, 1
      %p49 = por %p47, %p48
      %p50 = scmp.ne.s32.totalorder %s42, %s45
      %p51 = scmp.eq.s32.totalorder %s11, 0
      %p52 = por %p50, %p51
      %p53 = scmp.ne.s32.totalorder %s42, %s45
      %p54 = scmp.eq.s32.totalorder %s16, 1
      %p55 = por %p53, %p54
      %p56 = scmp.ne.s32.totalorder %s45, %s46
      %p57 = scmp.eq.s32.totalorder %s16, 0
      %p58 = por %p56, %p57
      %p59 = scmp.ne.s32.totalorder %s45, %s46
      %p60 = scmp.eq.s32.totalorder %s17, 1
      %p61 = por %p59, %p60
      %p63 = scmp.ne.s32.totalorder %s46, %s62
      %p64 = scmp.eq.s32.totalorder %s17, 0
      %p65 = por %p63, %p64
      %s66 = ssub.s32 %s20, %s29
      %s67 = ssub.s32 %s19, %s33
      %s68 = sor.u32 %s66, %s67
      %p69 = scmp.eq.s32.totalorder %s68, 0
      %s71 = sadd.s32 %s70, 1
      %s72 = scalar_select %p69, %s70, %s71
      %p75 = pneg %p69
      %p76 = scmp.eq.s32.totalorder %s11, 1
      %p77 = por %p75, %p76
      %p78 = scmp.ne.s32.totalorder %s70, %s73
      %p79 = scmp.eq.s32.totalorder %s11, 0
      %p80 = por %p78, %p79
      %p81 = scmp.ne.s32.totalorder %s70, %s73
      %p82 = scmp.eq.s32.totalorder %s16, 1
      %p83 = por %p81, %p82
      %p84 = scmp.ne.s32.totalorder %s73, %s74
      %p85 = scmp.eq.s32.totalorder %s16, 0
      %p86 = por %p84, %p85
      %p87 = scmp.ne.s32.totalorder %s73, %s74
      %p88 = scmp.eq.s32.totalorder %s17, 1
      %p89 = por %p87, %p88
      %p91 = scmp.ne.s32.totalorder %s74, %s90
      %p92 = scmp.eq.s32.totalorder %s17, 0
      %p93 = por %p91, %p92
      %s94 = ssub.s32 %s18, %s37
      %s95 = ssub.s32 %s19, %s33
      %s96 = sor.u32 %s94, %s95
      %p97 = scmp.eq.s32.totalorder %s96, 0
      %s99 = sadd.s32 %s98, 1
      %s100 = scalar_select %p97, %s98, %s99
      %p103 = pneg %p97
      %p104 = scmp.eq.s32.totalorder %s11, 1
      %p105 = por %p103, %p104
      %p106 = scmp.ne.s32.totalorder %s98, %s101
      %p107 = scmp.eq.s32.totalorder %s11, 0
      %p108 = por %p106, %p107
      %p109 = scmp.ne.s32.totalorder %s98, %s101
      %p110 = scmp.eq.s32.totalorder %s16, 1
      %p111 = por %p109, %p110
      %p112 = scmp.ne.s32.totalorder %s101, %s102
      %p113 = scmp.eq.s32.totalorder %s16, 0
      %p114 = por %p112, %p113
      %p115 = scmp.ne.s32.totalorder %s101, %s102
      %p116 = scmp.eq.s32.totalorder %s17, 1
      %p117 = por %p115, %p116
      %p119 = scmp.ne.s32.totalorder %s102, %s118
      %p120 = scmp.eq.s32.totalorder %s17, 0
      %p121 = por %p119, %p120
      %p122 = scmp.le.s32.totalorder 1, %s11
      %p123 = scmp.lt.s32.totalorder %s11, 3
      %p124 = pnand %p122, %p123
      %p125 = pneg %p124
      // Predicated region
      $region9: #{transformer_forward.49} parent=5 // pred_check
        _
      $region10: #{transformer_forward.49} parent=5 // pred_check_branch
        %127 = sbr.rel (%p124) target = $region12
      $region11: #{transformer_forward.49} parent=5 // pred_region
        %s128 = ssub.s32 %s11, 1
        // Predicated region
        $region13: #{transformer_forward.49} parent=11 // pred_check
          %p129 = pneg %p58
        $region14: #{transformer_forward.49} parent=11 // pred_check_branch
          %131 = sbr.rel (%p129) target = $region16
        $region15: #{transformer_forward.49} parent=11 // pred_region
          %s132 = smul.u32 2, %s21
          %p133 = scmp.lt.s32.totalorder %s132, 1
          %s134 = scalar_select %p133, %s132, 1
          %p135 = scmp.lt.s32.totalorder %s23, 0
          %s136 = scalar_select %p135, %s23, 0
          %s137 = sadd.s32 %s136, %s134
          %s138 = smul.addr %s137, 4
          %s139 = scalar_lea.vmem %s0, %s138
          %s140 = smul.u32 2, %s21
        $region16: #{transformer_forward.49} parent=11 // pred_fallthru
          _
      $region12: #{transformer_forward.49} parent=5 // pred_fallthru
        _
      %p141 = scmp.lt.s32.totalorder %s11, 2
      // Predicated region
      $region17: #{transformer_forward.49} parent=5 // pred_check
        %p142 = pneg %p141
      $region18: #{transformer_forward.49} parent=5 // pred_check_branch
        %144 = sbr.rel (%p142) target = $region20
      $region19: #{transformer_forward.49} parent=5 // pred_region
        // Predicated region
        $region21: #{transformer_forward.49} parent=19 // pred_check
          %p145 = pneg %p80
        $region22: #{transformer_forward.49} parent=19 // pred_check_branch
          %147 = sbr.rel (%p145) target = $region24
        $region23: #{transformer_forward.49} parent=19 // pred_region
          %s148 = sand.u32 %s70, 1
          %s149 = sand.u32 %s70, 1
          %s150 = smul.addr %s149, 256
          %s151 = scalar_lea.vmem [#allocation3], %s150
          %s152 = smul.u32 16, %s20
          %s153 = smul.u32 4, %s19
          %s154 = smul.addr %s152, 8
          %s155 = sadd.s32 %s153, %s154
          %s156 = smul.addr %s155, 4
          %s157 = scalar_lea.vmem %s1, %s156
          // Predicated region
          $region25: #{transformer_forward.49} parent=23 // pred_check
            _
          $region26: #{transformer_forward.49} parent=23 // pred_check_branch
            %159 = sbr.rel (0) target = $region28
          $region27: #{transformer_forward.49} parent=23 // pred_region
            // Predicated region
            $region29: #{transformer_forward.49} parent=27 // pred_check
              _
            $region30: #{transformer_forward.49} parent=27 // pred_check_branch
              %161 = sbr.rel (0) target = $region32
            $region31: #{transformer_forward.49} parent=27 // pred_region
              loop: start=0, step=1, limit=1
              $region33: #{transformer_forward.49} parent=31 // loop_pre_header
                _
              $region34: #{transformer_forward.49} parent=31 // loop_header
                %s163 = sphi 0, %s167
                %p164 = scmp.ge.s32.totalorder %s163, 1
                %s168 = sphi %s157, %s157
                %s169 = sphi %s151, %s151
              $region35: #{transformer_forward.49} parent=31 // loop_header_branch
                %166 = sbr.rel (%p164) target = $region39
              $region36: #{transformer_forward.49} parent=31 // loop_body
                %v170 = vld [vmem:[%s168] sm:$0xff]
                %171 = vst [vmem:[%s169] sm:$0xff] %v170
                %v172 = vld [vmem:[%s168 + $0x8] sm:$0xff]
                %173 = vst [vmem:[%s169 + $0x8] sm:$0xff] %v172
                %v174 = vld [vmem:[%s168 + $0x20] sm:$0xff]
                %175 = vst [vmem:[%s169 + $0x10] sm:$0xff] %v174
                %v176 = vld [vmem:[%s168 + $0x28] sm:$0xff]
                %177 = vst [vmem:[%s169 + $0x18] sm:$0xff] %v176
                %v178 = vld [vmem:[%s168 + $0x40] sm:$0xff]
                %179 = vst [vmem:[%s169 + $0x20] sm:$0xff] %v178
                %v180 = vld [vmem:[%s168 + $0x48] sm:$0xff]
                %181 = vst [vmem:[%s169 + $0x28] sm:$0xff] %v180
                %v182 = vld [vmem:[%s168 + $0x60] sm:$0xff]
                %183 = vst [vmem:[%s169 + $0x30] sm:$0xff] %v182
                %v184 = vld [vmem:[%s168 + $0x68] sm:$0xff]
                %185 = vst [vmem:[%s169 + $0x38] sm:$0xff] %v184
                %v186 = vld [vmem:[%s168 + $0x80] sm:$0xff]
                %187 = vst [vmem:[%s169 + $0x40] sm:$0xff] %v186
                %v188 = vld [vmem:[%s168 + $0x88] sm:$0xff]
                %189 = vst [vmem:[%s169 + $0x48] sm:$0xff] %v188
                %v190 = vld [vmem:[%s168 + $0xa0] sm:$0xff]
                %191 = vst [vmem:[%s169 + $0x50] sm:$0xff] %v190
                %v192 = vld [vmem:[%s168 + $0xa8] sm:$0xff]
                %193 = vst [vmem:[%s169 + $0x58] sm:$0xff] %v192
                %v194 = vld [vmem:[%s168 + $0xc0] sm:$0xff]
                %195 = vst [vmem:[%s169 + $0x60] sm:$0xff] %v194
                %v196 = vld [vmem:[%s168 + $0xc8] sm:$0xff]
                %197 = vst [vmem:[%s169 + $0x68] sm:$0xff] %v196
                %v198 = vld [vmem:[%s168 + $0xe0] sm:$0xff]
                %199 = vst [vmem:[%s169 + $0x70] sm:$0xff] %v198
                %v200 = vld [vmem:[%s168 + $0xe8] sm:$0xff]
                %201 = vst [vmem:[%s169 + $0x78] sm:$0xff] %v200
                %v202 = vld [vmem:[%s168 + $0x100] sm:$0xff]
                %203 = vst [vmem:[%s169 + $0x80] sm:$0xff] %v202
                %v204 = vld [vmem:[%s168 + $0x108] sm:$0xff]
                %205 = vst [vmem:[%s169 + $0x88] sm:$0xff] %v204
                %v206 = vld [vmem:[%s168 + $0x120] sm:$0xff]
                %207 = vst [vmem:[%s169 + $0x90] sm:$0xff] %v206
                %v208 = vld [vmem:[%s168 + $0x128] sm:$0xff]
                %209 = vst [vmem:[%s169 + $0x98] sm:$0xff] %v208
                %v210 = vld [vmem:[%s168 + $0x140] sm:$0xff]
                %211 = vst [vmem:[%s169 + $0xa0] sm:$0xff] %v210
                %v212 = vld [vmem:[%s168 + $0x148] sm:$0xff]
                %213 = vst [vmem:[%s169 + $0xa8] sm:$0xff] %v212
                %v214 = vld [vmem:[%s168 + $0x160] sm:$0xff]
                %215 = vst [vmem:[%s169 + $0xb0] sm:$0xff] %v214
                %v216 = vld [vmem:[%s168 + $0x168] sm:$0xff]
                %217 = vst [vmem:[%s169 + $0xb8] sm:$0xff] %v216
                %v218 = vld [vmem:[%s168 + $0x180] sm:$0xff]
                %219 = vst [vmem:[%s169 + $0xc0] sm:$0xff] %v218
                %v220 = vld [vmem:[%s168 + $0x188] sm:$0xff]
                %221 = vst [vmem:[%s169 + $0xc8] sm:$0xff] %v220
                %v222 = vld [vmem:[%s168 + $0x1a0] sm:$0xff]
                %223 = vst [vmem:[%s169 + $0xd0] sm:$0xff] %v222
                %v224 = vld [vmem:[%s168 + $0x1a8] sm:$0xff]
                %225 = vst [vmem:[%s169 + $0xd8] sm:$0xff] %v224
                %v226 = vld [vmem:[%s168 + $0x1c0] sm:$0xff]
                %227 = vst [vmem:[%s169 + $0xe0] sm:$0xff] %v226
                %v228 = vld [vmem:[%s168 + $0x1c8] sm:$0xff]
                %229 = vst [vmem:[%s169 + $0xe8] sm:$0xff] %v228
                %v230 = vld [vmem:[%s168 + $0x1e0] sm:$0xff]
                %231 = vst [vmem:[%s169 + $0xf0] sm:$0xff] %v230
                %v232 = vld [vmem:[%s168 + $0x1e8] sm:$0xff]
                %233 = vst [vmem:[%s169 + $0xf8] sm:$0xff] %v232
              $region37: #{transformer_forward.49} parent=31 // loop_footer
                %s167 = sadd.s32 1, %s163
              $region38: #{transformer_forward.49} parent=31 // loop_footer_branch
                %162 = sbr.rel target = $region34
              $region39: #{transformer_forward.49} parent=31 // loop_exit
                _
            $region32: #{transformer_forward.49} parent=27 // pred_fallthru
              _
            // Predicated region
            $region40: #{transformer_forward.49} parent=27 // pred_check
              _
            $region41: #{transformer_forward.49} parent=27 // pred_check_branch
              %235 = sbr.rel target = $region43
            $region42: #{transformer_forward.49} parent=27 // pred_region
              _
            $region43: #{transformer_forward.49} parent=27 // pred_fallthru
              _
          $region28: #{transformer_forward.49} parent=23 // pred_fallthru
            _
          %236 = vnop
        $region24: #{transformer_forward.49} parent=19 // pred_fallthru
          _
      $region20: #{transformer_forward.49} parent=5 // pred_fallthru
        _
      %p237 = scmp.le.s32.totalorder 1, %s11
      %p238 = scmp.lt.s32.totalorder %s11, 3
      %p239 = pnand %p237, %p238
      %p240 = pneg %p239
      // Predicated region
      $region44: #{transformer_forward.49} parent=5 // pred_check
        _
      $region45: #{transformer_forward.49} parent=5 // pred_check_branch
        %242 = sbr.rel (%p239) target = $region47
      $region46: #{transformer_forward.49} parent=5 // pred_region
        %s243 = ssub.s32 %s11, 1
        %s244 = sand.u32 %s73, 1
        %s245 = sand.u32 %s73, 1
        %s246 = smul.addr %s245, 256
        %s247 = scalar_lea.vmem [#allocation3], %s246
        // Predicated region
        $region48: #{transformer_forward.49} parent=46 // pred_check
          %p248 = pneg %p86
        $region49: #{transformer_forward.49} parent=46 // pred_check_branch
          %250 = sbr.rel (%p248) target = $region51
        $region50: #{transformer_forward.49} parent=46 // pred_region
          _
        $region51: #{transformer_forward.49} parent=46 // pred_fallthru
          _
        %s251 = smul.u32 2, %s21
        %p252 = scmp.lt.s32.totalorder %s251, 1
        %s253 = scalar_select %p252, %s251, 1
        %p254 = scmp.lt.s32.totalorder %s23, 0
        %s255 = scalar_select %p254, %s23, 0
        %s256 = sadd.s32 %s255, %s253
        %s257 = smul.addr %s256, 4
        %s258 = scalar_lea.vmem %s0, %s257
        %p259 = pneg %p58
        %p260 = pneg %p55
        %s261 = sand.u32 %s73, 1
        %s262 = sand.u32 %s73, 1
        %s263 = smul.addr %s262, 256
        %s264 = scalar_lea.vmem [#allocation3], %s263
        %p265 = pneg %p86
        %p266 = pneg %p83
        %p267 = pneg %p114
        %p268 = pneg %p111
        %s269 = sand.u32 %s101, 1
        %s270 = scalar_lea.sflag [#allocation5], %s269
        %s271 = sand.u32 %s101, 1
        %s272 = smul.addr %s271, 64
        %s273 = scalar_lea.vmem [#allocation4], %s272
        %s274 = smul.u32 2, %s21
        %p275 = scmp.lt.s32.totalorder %s274, 1
        %s276 = scalar_select %p275, %s274, 1
        %p277 = scmp.lt.s32.totalorder %s23, 0
        %s278 = scalar_select %p277, %s23, 0
        %s279 = sadd.s32 %s278, %s276
        %s280 = smul.addr %s279, 4
        %s281 = scalar_lea.vmem %s0, %s280
        %s282 = smul.u32 2, %s21
        %s283 = smul.u32 16, %s23
        %s284 = smul.u32 4, %s22
        %s285 = smul.u32 2, %s21
        %s286 = smul.u32 4, %s22
        %p288 = scmp.eq.s32.totalorder %s23, 0
        // Predicated region
        $region52: #{transformer_forward.49} parent=46 // pred_check
          %p289 = pneg %p288
        $region53: #{transformer_forward.49} parent=46 // pred_check_branch
          %291 = sbr.rel (%p289) target = $region55
        $region54: #{transformer_forward.49} parent=46 // pred_region
          %292 = vst [vmem:[#allocation2] sm:$0xff] 0.0
          %293 = vst [vmem:[#allocation2 + $0x8] sm:$0xff] 0.0
          %294 = vst [vmem:[#allocation2 + $0x10] sm:$0xff] 0.0
          %295 = vst [vmem:[#allocation2 + $0x18] sm:$0xff] 0.0
          %296 = vst [vmem:[#allocation2 + $0x20] sm:$0xff] 0.0
          %297 = vst [vmem:[#allocation2 + $0x28] sm:$0xff] 0.0
          %298 = vst [vmem:[#allocation2 + $0x30] sm:$0xff] 0.0
          %299 = vst [vmem:[#allocation2 + $0x38] sm:$0xff] 0.0
        $region55: #{transformer_forward.49} parent=46 // pred_fallthru
          _
        %v300 = vld [vmem:[#allocation2] sm:$0xff]
        %v301 = vld [vmem:[#allocation2 + $0x8] sm:$0xff]
        %v302 = vld [vmem:[#allocation2 + $0x10] sm:$0xff]
        %v303 = vld [vmem:[#allocation2 + $0x18] sm:$0xff]
        %v304 = vld [vmem:[#allocation2 + $0x20] sm:$0xff]
        %v305 = vld [vmem:[#allocation2 + $0x28] sm:$0xff]
        %v306 = vld [vmem:[#allocation2 + $0x30] sm:$0xff]
        %v307 = vld [vmem:[#allocation2 + $0x38] sm:$0xff]
        %v308 = vld [vmem:[%s281] sm:$0xf]
        %v309 = vld [vmem:[%s281 + $0x4] sm:$0xf]
        %v310 = vld [vmem:[%s247] sm:$0xff]
        %v311 = vld [vmem:[%s247 + $0x8] sm:$0xff]
        %v312 = vld [vmem:[%s247 + $0x10] sm:$0xff]
        %v313 = vld [vmem:[%s247 + $0x18] sm:$0xff]
        %v314 = vld [vmem:[%s247 + $0x20] sm:$0xff]
        %v315 = vld [vmem:[%s247 + $0x28] sm:$0xff]
        %v316 = vld [vmem:[%s247 + $0x30] sm:$0xff]
        %v317 = vld [vmem:[%s247 + $0x38] sm:$0xff]
        %v318 = vld [vmem:[%s247 + $0x40] sm:$0xff]
        %v319 = vld [vmem:[%s247 + $0x48] sm:$0xff]
        %v320 = vld [vmem:[%s247 + $0x50] sm:$0xff]
        %v321 = vld [vmem:[%s247 + $0x58] sm:$0xff]
        %v322 = vld [vmem:[%s247 + $0x60] sm:$0xff]
        %v323 = vld [vmem:[%s247 + $0x68] sm:$0xff]
        %v324 = vld [vmem:[%s247 + $0x70] sm:$0xff]
        %v325 = vld [vmem:[%s247 + $0x78] sm:$0xff]
        %v326 = vld [vmem:[%s247 + $0x80] sm:$0xff]
        %v327 = vld [vmem:[%s247 + $0x88] sm:$0xff]
        %v328 = vld [vmem:[%s247 + $0x90] sm:$0xff]
        %v329 = vld [vmem:[%s247 + $0x98] sm:$0xff]
        %v330 = vld [vmem:[%s247 + $0xa0] sm:$0xff]
        %v331 = vld [vmem:[%s247 + $0xa8] sm:$0xff]
        %v332 = vld [vmem:[%s247 + $0xb0] sm:$0xff]
        %v333 = vld [vmem:[%s247 + $0xb8] sm:$0xff]
        %v334 = vld [vmem:[%s247 + $0xc0] sm:$0xff]
        %v335 = vld [vmem:[%s247 + $0xc8] sm:$0xff]
        %v336 = vld [vmem:[%s247 + $0xd0] sm:$0xff]
        %v337 = vld [vmem:[%s247 + $0xd8] sm:$0xff]
        %v338 = vld [vmem:[%s247 + $0xe0] sm:$0xff]
        %v339 = vld [vmem:[%s247 + $0xe8] sm:$0xff]
        %v340 = vld [vmem:[%s247 + $0xf0] sm:$0xff]
        %v341 = vld [vmem:[%s247 + $0xf8] sm:$0xff]
        %v344 = vunpack.c.l.b16 %v308
        %v345 = vunpack.c.l.b16 %v309
        %v346 = vpack.c.b16 %v345, %v344
        %v380 = vunpack.c.l.b16 %v310
        %v381 = vunpack.c.h.b16 %v310
        %v382 = vunpack.c.l.b16 %v311
        %v383 = vunpack.c.h.b16 %v311
        %v384 = vunpack.c.l.b16 %v312
        %v385 = vunpack.c.h.b16 %v312
        %v386 = vunpack.c.l.b16 %v313
        %v387 = vunpack.c.h.b16 %v313
        %v388 = vunpack.c.l.b16 %v314
        %v389 = vunpack.c.h.b16 %v314
        %v390 = vunpack.c.l.b16 %v315
        %v391 = vunpack.c.h.b16 %v315
        %v392 = vunpack.c.l.b16 %v316
        %v393 = vunpack.c.h.b16 %v316
        %v394 = vunpack.c.l.b16 %v317
        %v395 = vunpack.c.h.b16 %v317
        %v396 = vunpack.c.l.b16 %v318
        %v397 = vunpack.c.h.b16 %v318
        %v398 = vunpack.c.l.b16 %v319
        %v399 = vunpack.c.h.b16 %v319
        %v400 = vunpack.c.l.b16 %v320
        %v401 = vunpack.c.h.b16 %v320
        %v402 = vunpack.c.l.b16 %v321
        %v403 = vunpack.c.h.b16 %v321
        %v404 = vunpack.c.l.b16 %v322
        %v405 = vunpack.c.h.b16 %v322
        %v406 = vunpack.c.l.b16 %v323
        %v407 = vunpack.c.h.b16 %v323
        %v408 = vunpack.c.l.b16 %v324
        %v409 = vunpack.c.h.b16 %v324
        %v410 = vunpack.c.l.b16 %v325
        %v411 = vunpack.c.h.b16 %v325
        %v412 = vunpack.c.l.b16 %v326
        %v413 = vunpack.c.h.b16 %v326
        %v414 = vunpack.c.l.b16 %v327
        %v415 = vunpack.c.h.b16 %v327
        %v416 = vunpack.c.l.b16 %v328
        %v417 = vunpack.c.h.b16 %v328
        %v418 = vunpack.c.l.b16 %v329
        %v419 = vunpack.c.h.b16 %v329
        %v420 = vunpack.c.l.b16 %v330
        %v421 = vunpack.c.h.b16 %v330
        %v422 = vunpack.c.l.b16 %v331
        %v423 = vunpack.c.h.b16 %v331
        %v424 = vunpack.c.l.b16 %v332
        %v425 = vunpack.c.h.b16 %v332
        %v426 = vunpack.c.l.b16 %v333
        %v427 = vunpack.c.h.b16 %v333
        %v428 = vunpack.c.l.b16 %v334
        %v429 = vunpack.c.h.b16 %v334
        %v430 = vunpack.c.l.b16 %v335
        %v431 = vunpack.c.h.b16 %v335
        %v432 = vunpack.c.l.b16 %v336
        %v433 = vunpack.c.h.b16 %v336
        %v434 = vunpack.c.l.b16 %v337
        %v435 = vunpack.c.h.b16 %v337
        %v436 = vunpack.c.l.b16 %v338
        %v437 = vunpack.c.h.b16 %v338
        %v438 = vunpack.c.l.b16 %v339
        %v439 = vunpack.c.h.b16 %v339
        %v440 = vunpack.c.l.b16 %v340
        %v441 = vunpack.c.h.b16 %v340
        %v442 = vunpack.c.l.b16 %v341
        %v443 = vunpack.c.h.b16 %v341
        %v444 = vpack.c.b16 %v384, %v380
        %v445 = vpack.c.b16 %v385, %v381
        %v446 = vpack.c.b16 %v386, %v382
        %v447 = vpack.c.b16 %v387, %v383
        %v448 = vpack.c.b16 %v392, %v388
        %v449 = vpack.c.b16 %v393, %v389
        %v450 = vpack.c.b16 %v394, %v390
        %v451 = vpack.c.b16 %v395, %v391
        %v452 = vpack.c.b16 %v400, %v396
        %v453 = vpack.c.b16 %v401, %v397
        %v454 = vpack.c.b16 %v402, %v398
        %v455 = vpack.c.b16 %v403, %v399
        %v456 = vpack.c.b16 %v408, %v404
        %v457 = vpack.c.b16 %v409, %v405
        %v458 = vpack.c.b16 %v410, %v406
        %v459 = vpack.c.b16 %v411, %v407
        %v460 = vpack.c.b16 %v416, %v412
        %v461 = vpack.c.b16 %v417, %v413
        %v462 = vpack.c.b16 %v418, %v414
        %v463 = vpack.c.b16 %v419, %v415
        %v464 = vpack.c.b16 %v424, %v420
        %v465 = vpack.c.b16 %v425, %v421
        %v466 = vpack.c.b16 %v426, %v422
        %v467 = vpack.c.b16 %v427, %v423
        %v468 = vpack.c.b16 %v432, %v428
        %v469 = vpack.c.b16 %v433, %v429
        %v470 = vpack.c.b16 %v434, %v430
        %v471 = vpack.c.b16 %v435, %v431
        %v472 = vpack.c.b16 %v440, %v436
        %v473 = vpack.c.b16 %v441, %v437
        %v474 = vpack.c.b16 %v442, %v438
        %v475 = vpack.c.b16 %v443, %v439
        %508 = vmatprep.subr.bf16.mxu0 %v445
        %509 = vmatpush1.bf16.msra.mxu0 %v444
        %510 = vmatprep.subr.bf16.mxu0 %v449
        %511 = vmatpush1.bf16.msra.mxu0 %v448
        %512 = vmatprep.subr.bf16.mxu0 %v453
        %513 = vmatpush1.bf16.msra.mxu0 %v452
        %514 = vmatprep.subr.bf16.mxu0 %v457
        %515 = vmatpush1.bf16.msra.mxu0 %v456
        %516 = vmatprep.subr.bf16.mxu0 %v461
        %517 = vmatpush1.bf16.msra.mxu0 %v460
        %518 = vmatprep.subr.bf16.mxu0 %v465
        %519 = vmatpush1.bf16.msra.mxu0 %v464
        %520 = vmatprep.subr.bf16.mxu0 %v469
        %521 = vmatpush1.bf16.msra.mxu0 %v468
        %522 = vmatprep.subr.bf16.mxu0 %v473
        %523 = vmatpush1.bf16.msra.mxu0 %v472
        %524 = vmatprep.subr.bf16.mxu0 0
        %525 = vmatpush1.bf16.msra.mxu0 0
        %526 = vmatprep.subr.bf16.mxu0 0
        %527 = vmatpush1.bf16.msra.mxu0 0
        %528 = vmatprep.subr.bf16.mxu0 0
        %529 = vmatpush1.bf16.msra.mxu0 0
        %530 = vmatprep.subr.bf16.mxu0 0
        %531 = vmatpush1.bf16.msra.mxu0 0
        %532 = vmatprep.subr.bf16.mxu0 0
        %533 = vmatpush1.bf16.msra.mxu0 0
        %534 = vmatprep.subr.bf16.mxu0 0
        %535 = vmatpush1.bf16.msra.mxu0 0
        %536 = vmatprep.subr.bf16.mxu0 0
        %537 = vmatpush1.bf16.msra.mxu0 0
        %538 = vmatprep.subr.bf16.mxu0 0
        %539 = vmatpush1.bf16.msra.mxu0 0
        %540 = vmatprep.mubr.bf16.mxu0 0
        %541 = vmatmul.mubr.bf16.gmra.mrb[0].mxu0 %v346
        %v542 = vpop.f32.mrb[0].mxu0
        %v543 = vadd.f32 0.0, %v542
        %v544 = vpop.f32.mrb[0].mxu0
        %v545 = vadd.f32 0.0, %v544
        %v546 = vpop.f32.mrb[0].mxu0
        %v547 = vadd.f32 0.0, %v546
        %v548 = vpop.f32.mrb[0].mxu0
        %v549 = vadd.f32 0.0, %v548
        %550 = vdwg.mxu0
        %551 = vmatprep.subr.bf16.mxu0 %v447
        %552 = vmatpush1.bf16.msra.mxu0 %v446
        %553 = vmatprep.subr.bf16.mxu0 %v451
        %554 = vmatpush1.bf16.msra.mxu0 %v450
        %555 = vmatprep.subr.bf16.mxu0 %v455
        %556 = vmatpush1.bf16.msra.mxu0 %v454
        %557 = vmatprep.subr.bf16.mxu0 %v459
        %558 = vmatpush1.bf16.msra.mxu0 %v458
        %559 = vmatprep.subr.bf16.mxu0 %v463
        %560 = vmatpush1.bf16.msra.mxu0 %v462
        %561 = vmatprep.subr.bf16.mxu0 %v467
        %562 = vmatpush1.bf16.msra.mxu0 %v466
        %563 = vmatprep.subr.bf16.mxu0 %v471
        %564 = vmatpush1.bf16.msra.mxu0 %v470
        %565 = vmatprep.subr.bf16.mxu0 %v475
        %566 = vmatpush1.bf16.msra.mxu0 %v474
        %567 = vmatprep.subr.bf16.mxu0 0
        %568 = vmatpush1.bf16.msra.mxu0 0
        %569 = vmatprep.subr.bf16.mxu0 0
        %570 = vmatpush1.bf16.msra.mxu0 0
        %571 = vmatprep.subr.bf16.mxu0 0
        %572 = vmatpush1.bf16.msra.mxu0 0
        %573 = vmatprep.subr.bf16.mxu0 0
        %574 = vmatpush1.bf16.msra.mxu0 0
        %575 = vmatprep.subr.bf16.mxu0 0
        %576 = vmatpush1.bf16.msra.mxu0 0
        %577 = vmatprep.subr.bf16.mxu0 0
        %578 = vmatpush1.bf16.msra.mxu0 0
        %579 = vmatprep.subr.bf16.mxu0 0
        %580 = vmatpush1.bf16.msra.mxu0 0
        %581 = vmatprep.subr.bf16.mxu0 0
        %582 = vmatpush1.bf16.msra.mxu0 0
        %583 = vmatprep.mubr.bf16.mxu0 0
        %584 = vmatmul.mubr.bf16.gmra.mrb[0].mxu0 %v346
        %v585 = vpop.f32.mrb[0].mxu0
        %v586 = vadd.f32 0.0, %v585
        %v587 = vpop.f32.mrb[0].mxu0
        %v588 = vadd.f32 0.0, %v587
        %v589 = vpop.f32.mrb[0].mxu0
        %v590 = vadd.f32 0.0, %v589
        %v591 = vpop.f32.mrb[0].mxu0
        %v592 = vadd.f32 0.0, %v591
        %593 = vdwg.mxu0
        %v594 = vadd.f32 %v300, %v543
        %v595 = vadd.f32 %v301, %v545
        %v596 = vadd.f32 %v302, %v586
        %v597 = vadd.f32 %v303, %v588
        %v598 = vadd.f32 %v304, %v547
        %v599 = vadd.f32 %v305, %v549
        %v600 = vadd.f32 %v306, %v590
        %v601 = vadd.f32 %v307, %v592
        %602 = vst [vmem:[#allocation2] sm:$0xff] %v594
        %603 = vst [vmem:[#allocation2 + $0x8] sm:$0xff] %v595
        %604 = vst [vmem:[#allocation2 + $0x10] sm:$0xff] %v596
        %605 = vst [vmem:[#allocation2 + $0x18] sm:$0xff] %v597
        %606 = vst [vmem:[#allocation2 + $0x20] sm:$0xff] %v598
        %607 = vst [vmem:[#allocation2 + $0x28] sm:$0xff] %v599
        %608 = vst [vmem:[#allocation2 + $0x30] sm:$0xff] %v600
        %609 = vst [vmem:[#allocation2 + $0x38] sm:$0xff] %v601
        // Predicated region
        $region56: #{transformer_forward.49} parent=46 // pred_check
          %p610 = pneg %p288
        $region57: #{transformer_forward.49} parent=46 // pred_check_branch
          %612 = sbr.rel (%p610) target = $region59
        $region58: #{transformer_forward.49} parent=46 // pred_region
          %v613 = vld [vmem:[#allocation2] sm:$0xff]
          %v614 = vld [vmem:[#allocation2 + $0x8] sm:$0xff]
          %v615 = vld [vmem:[#allocation2 + $0x10] sm:$0xff]
          %v616 = vld [vmem:[#allocation2 + $0x18] sm:$0xff]
          %v617 = vld [vmem:[#allocation2 + $0x20] sm:$0xff]
          %v618 = vld [vmem:[#allocation2 + $0x28] sm:$0xff]
          %v619 = vld [vmem:[#allocation2 + $0x30] sm:$0xff]
          %v620 = vld [vmem:[#allocation2 + $0x38] sm:$0xff]
          %621 = vst [vmem:[%s273] sm:$0xff] %v613
          %622 = vst [vmem:[%s273 + $0x8] sm:$0xff] %v614
          %623 = vst [vmem:[%s273 + $0x10] sm:$0xff] %v615
          %624 = vst [vmem:[%s273 + $0x18] sm:$0xff] %v616
          %625 = vst [vmem:[%s273 + $0x20] sm:$0xff] %v617
          %626 = vst [vmem:[%s273 + $0x28] sm:$0xff] %v618
          %627 = vst [vmem:[%s273 + $0x30] sm:$0xff] %v619
          %628 = vst [vmem:[%s273 + $0x38] sm:$0xff] %v620
        $region59: #{transformer_forward.49} parent=46 // pred_fallthru
          _
        %s629 = sand.u32 %s101, 1
        %s630 = scalar_lea.sflag [#allocation5], %s629
        %s631 = sand.u32 %s101, 1
        %s632 = smul.addr %s631, 64
        %s633 = scalar_lea.vmem [#allocation4], %s632
        // Predicated region
        $region60: #{transformer_forward.49} parent=46 // pred_check
          %p634 = pneg %p111
        $region61: #{transformer_forward.49} parent=46 // pred_check_branch
          %636 = sbr.rel (%p634) target = $region63
        $region62: #{transformer_forward.49} parent=46 // pred_region
          %s637 = smul.u32 2, %s21
          %s638 = smul.u32 4, %s22
          %s640 = ssub.s32 1024, 1024
          %641 = vsyncadd %s630, %s640
          %s642 = smul.addr %s637, 8
          %s643 = sadd.s32 %s638, %s642
          %s644 = smul.addr %s643, 128
          %s645 = scalar_lea.hbm %s2, %s644
          %s646 = sshll.u32 %s633, 4
          %s647 = int_to_ptr.vmem [resolvable:$true] %s646
          %652 = dma.vmem_to_hbm [thread:$0]  %s647, 1024, %s645, %s630, 512, 1024, 32
        $region63: #{transformer_forward.49} parent=46 // pred_fallthru
          _
      $region47: #{transformer_forward.49} parent=5 // pred_fallthru
        _
      %p653 = scmp.le.s32.totalorder 2, %s11
      // Predicated region
      $region64: #{transformer_forward.49} parent=5 // pred_check
        %p654 = pneg %p653
      $region65: #{transformer_forward.49} parent=5 // pred_check_branch
        %656 = sbr.rel (%p654) target = $region67
      $region66: #{transformer_forward.49} parent=5 // pred_region
        %s657 = ssub.s32 %s11, 2
        // Predicated region
        $region68: #{transformer_forward.49} parent=66 // pred_check
          %p658 = pneg %p117
        $region69: #{transformer_forward.49} parent=66 // pred_check_branch
          %660 = sbr.rel (%p658) target = $region71
        $region70: #{transformer_forward.49} parent=66 // pred_region
          %s661 = sand.u32 %s102, 1
          %s662 = scalar_lea.sflag [#allocation5], %s661
          %s663 = sand.u32 %s102, 1
          %s664 = smul.addr %s663, 64
          %s665 = scalar_lea.vmem [#allocation4], %s664
          %666 = dma.done %s662, 1024
        $region71: #{transformer_forward.49} parent=66 // pred_fallthru
          _
      $region67: #{transformer_forward.49} parent=5 // pred_fallthru
        _
    $region6: #{transformer_forward.49} parent=1 // loop_footer
      %s15 = sadd.s32 1, %s11
    $region7: #{transformer_forward.49} parent=1 // loop_footer_branch
      %10 = sbr.rel target = $region3
    $region8: #{transformer_forward.49} parent=1 // loop_exit
      _
    %667 = vsyncpa [#allocation5], 1
    %s668 = scalar_lea.sflag [#allocation5], 1
    %669 = vsyncpa %s668, 1

</llo_original>
